<compile_context>
chip_gen: v7x
topology: tpu7x:2x2x1
jax: 0.10.0
libtpu: 0.0.40
codegen_flags: <defaults>
</compile_context>

<pallas_src>
import functools

import jax
import jax.numpy as jnp
from jax import lax
from jax.experimental import pallas as pl
from jax.experimental.pallas import tpu as pltpu

EPS = 1e-5  # matches torch.nn.BatchNorm2d default


# ------------------------------ fused kernel -------------------------------- #

def _conv2_conv3_residual(a1, res, w2_ref, b2_ref, w3_ref, b3_ref, o_ref, xp_ref,
                          *, stride):
    """Shared tail of the fused block: 3x3 conv2 + BN2 + ReLU, 1x1 conv3 + BN3,
    residual add, final ReLU.

    a1:  (H*W, P) f32 conv1 activation (post BN1+ReLU).
    res: (Ho*Wo, C4) f32 residual (identity x or projected shortcut).
    """
    _, Ho, Wo, C4 = o_ref.shape
    _, Hp, Wp, P = xp_ref.shape
    H, W = Hp - 2, Wp - 2
    cdt = w2_ref.dtype                     # MXU operand dtype (bf16 or f32)

    # conv1 output lands directly in the interior of the padded VMEM scratch.
    xp_ref[:, 1:H + 1, 1:W + 1, :] = a1.reshape(1, H, W, P).astype(xp_ref.dtype)
    # Zero ONLY the 1-pixel border, re-done every grid step (megacore-safe).
    zrow = jnp.zeros((1, 1, Wp, P), xp_ref.dtype)
    zcol = jnp.zeros((1, Hp, 1, P), xp_ref.dtype)
    xp_ref[:, 0:1, :, :] = zrow
    xp_ref[:, H + 1:H + 2, :, :] = zrow
    xp_ref[:, :, 0:1, :] = zcol
    xp_ref[:, :, W + 1:W + 2, :] = zcol

    # 3x3 conv as 9 MXU dots of K=P (no channel concat -> no cross-lane moves).
    acc = jnp.zeros((Ho * Wo, P), jnp.float32)
    for dy in range(3):
        w_dy = w2_ref[dy]                                     # (3, P, P)
        for dx in range(3):
            if stride == 1:
                tap = xp_ref[:, dy:dy + Ho, dx:dx + Wo, :]
            else:
                # TODO(synk): stride>1 path not exercised by the demo configs.
                tap = xp_ref[:, pl.ds(dy, Ho, stride=stride),
                             pl.ds(dx, Wo, stride=stride), :]
            tap = tap.reshape(Ho * Wo, P).astype(cdt)
            acc = acc + jnp.dot(tap, w_dy[dx],
                                preferred_element_type=jnp.float32)
    a2 = jnp.maximum(acc + b2_ref[...], 0.0).astype(cdt)

    y = jnp.dot(a2, w3_ref[...], preferred_element_type=jnp.float32)
    y = jnp.maximum(y + b3_ref[...] + res, 0.0)
    o_ref[...] = y.reshape(1, Ho, Wo, C4).astype(o_ref.dtype)


def _bneck_identity_kernel(x_ref, w1_ref, b1_ref, w2_ref, b2_ref, w3_ref, b3_ref,
                           o_ref, xp_ref):
    """Fused Bottleneck, identity shortcut (stride == 1 and Cin == 4*planes)."""
    _, H, W, Cin = x_ref.shape
    cdt = w1_ref.dtype
    x = x_ref[...].reshape(H * W, Cin)                        # f32
    a1 = jnp.dot(x.astype(cdt), w1_ref[...], preferred_element_type=jnp.float32)
    a1 = jnp.maximum(a1 + b1_ref[...], 0.0)
    _conv2_conv3_residual(a1, x, w2_ref, b2_ref, w3_ref, b3_ref,
                          o_ref, xp_ref, stride=1)


def _bneck_projection_kernel(x_ref, w1sc_ref, b1sc_ref, w2_ref, b2_ref, w3_ref,
                             b3_ref, o_ref, xp_ref, *, stride):
    """Fused Bottleneck with 1x1 projection shortcut (+BN) on the residual."""
    _, H, W, Cin = x_ref.shape
    _, Ho, Wo, C4 = o_ref.shape
    P = b2_ref.shape[1]
    cdt = w1sc_ref.dtype

    x = x_ref[...].reshape(H * W, Cin)                        # f32
    xc = x.astype(cdt)

    if stride == 1:
        # conv1 and the projection shortcut share ONE MXU pass:
        # w1sc = [w1*s1 | w_sc*s_sc]  (Cin, P + C4), b1sc = [b1 | b_sc].
        y1 = jnp.dot(xc, w1sc_ref[...], preferred_element_type=jnp.float32)
        y1 = y1 + b1sc_ref[...]
        a1 = jnp.maximum(y1[:, :P], 0.0)
        res = y1[:, P:]                                        # BN only, no ReLU
    else:
        # TODO(synk): stride>1 path not exercised by the demo configs.
        a1 = jnp.dot(xc, w1sc_ref[:, :P], preferred_element_type=jnp.float32)
        a1 = jnp.maximum(a1 + b1sc_ref[:, :P], 0.0)
        xs = x_ref[:, pl.ds(0, Ho, stride=stride),
                   pl.ds(0, Wo, stride=stride), :]
        xs = xs.reshape(Ho * Wo, Cin).astype(cdt)
        res = jnp.dot(xs, w1sc_ref[:, P:], preferred_element_type=jnp.float32)
        res = res + b1sc_ref[:, P:]

    _conv2_conv3_residual(a1, res, w2_ref, b2_ref, w3_ref, b3_ref,
                          o_ref, xp_ref, stride=stride)


# ----------------------------- pallas_call glue ----------------------------- #

def fold_bn(gamma, beta, mean, var):
    """Fold inference-mode BatchNorm into per-channel (scale, bias)."""
    scale = gamma / jnp.sqrt(var + EPS)
    return scale, beta - mean * scale


def bottleneck(x_nhwc, params, *, stride=1, compute_dtype=jnp.bfloat16):
    """Fused Bottleneck forward (NHWC in / NHWC out, inference-mode BN)."""
    N, H, W, Cin = x_nhwc.shape
    P = params["w1"].shape[1]
    C4 = params["w3"].shape[1]                                 # expansion*planes
    Ho = (H - 1) // stride + 1
    Wo = (W - 1) // stride + 1
    cdt = compute_dtype

    # Fold BN scales into the conv weights (constant folding on weights).
    s1, b1 = fold_bn(*params["bn1"])
    s2, b2 = fold_bn(*params["bn2"])
    s3, b3 = fold_bn(*params["bn3"])
    w1f = (params["w1"] * s1[None, :]).astype(cdt)             # (Cin, P)
    w2f = (params["w2"] * s2[None, None, None, :]).astype(cdt)  # (3, 3, P, P)
    w3f = (params["w3"] * s3[None, :]).astype(cdt)             # (P, C4)
    b2r = b2.reshape(1, P).astype(jnp.float32)
    b3r = b3.reshape(1, C4).astype(jnp.float32)

    has_sc = "w_sc" in params
    if has_sc:
        ssc, bsc = fold_bn(*params["bn_sc"])
        wscf = (params["w_sc"] * ssc[None, :]).astype(cdt)     # (Cin, C4)
        w1sc = jnp.concatenate([w1f, wscf], axis=1)            # (Cin, P + C4)
        b1sc = jnp.concatenate([b1, bsc]).reshape(1, P + C4).astype(jnp.float32)
        kernel = functools.partial(_bneck_projection_kernel, stride=stride)
        operands = (x_nhwc, w1sc, b1sc, w2f, b2r, w3f, b3r)
        in_specs = [
            pl.BlockSpec((1, H, W, Cin), lambda n: (n, 0, 0, 0)),
            pl.BlockSpec((Cin, P + C4), lambda n: (0, 0)),
            pl.BlockSpec((1, P + C4), lambda n: (0, 0)),
            pl.BlockSpec((3, 3, P, P), lambda n: (0, 0, 0, 0)),
            pl.BlockSpec((1, P), lambda n: (0, 0)),
            pl.BlockSpec((P, C4), lambda n: (0, 0)),
            pl.BlockSpec((1, C4), lambda n: (0, 0)),
        ]
    else:
        assert stride == 1 and Cin == C4, \
            "identity shortcut requires stride == 1 and in_planes == 4*planes"
        b1r = b1.reshape(1, P).astype(jnp.float32)
        kernel = _bneck_identity_kernel
        operands = (x_nhwc, w1f, b1r, w2f, b2r, w3f, b3r)
        in_specs = [
            pl.BlockSpec((1, H, W, Cin), lambda n: (n, 0, 0, 0)),
            pl.BlockSpec((Cin, P), lambda n: (0, 0)),
            pl.BlockSpec((1, P), lambda n: (0, 0)),
            pl.BlockSpec((3, 3, P, P), lambda n: (0, 0, 0, 0)),
            pl.BlockSpec((1, P), lambda n: (0, 0)),
            pl.BlockSpec((P, C4), lambda n: (0, 0)),
            pl.BlockSpec((1, C4), lambda n: (0, 0)),
        ]

    # VMEM budget: double-buffered blocks + padded f32 scratch, with headroom.
    block_bytes = (x_nhwc.dtype.itemsize * H * W * Cin
                   + 4 * Ho * Wo * C4
                   + sum(int(a.size) * a.dtype.itemsize for a in operands[1:]))
    scratch_bytes = 4 * (H + 2) * (W + 2) * P
    vmem_limit = int(min(100 * 2**20,
                         max(16 * 2**20, 4 * (2 * block_bytes + scratch_bytes))))

    return pl.pallas_call(
        kernel,
        out_shape=jax.ShapeDtypeStruct((N, Ho, Wo, C4), x_nhwc.dtype),
        grid=(N,),
        in_specs=in_specs,
        out_specs=pl.BlockSpec((1, Ho, Wo, C4), lambda n: (n, 0, 0, 0)),
        scratch_shapes=[pltpu.VMEM((1, H + 2, W + 2, P), jnp.float32)],
        compiler_params=pltpu.CompilerParams(
            dimension_semantics=("parallel",),
            vmem_limit_bytes=vmem_limit),
    )(*operands)


# ------------------------------ pure-JAX reference -------------------------- #

def ref_block(x, params, *, stride=1):
    def bn(v, gamma, beta, mean, var):
        return (v - mean) / jnp.sqrt(var + EPS) * gamma + beta

    dn = ("NHWC", "HWIO", "NHWC")
    w1 = params["w1"].reshape(1, 1, *params["w1"].shape)
    out = lax.conv_general_dilated(x, w1, (1, 1), "VALID", dimension_numbers=dn)
    out = jax.nn.relu(bn(out, *params["bn1"]))
    out = lax.conv_general_dilated(out, params["w2"], (stride, stride),
                                   ((1, 1), (1, 1)), dimension_numbers=dn)
    out = jax.nn.relu(bn(out, *params["bn2"]))
    w3 = params["w3"].reshape(1, 1, *params["w3"].shape)
    out = lax.conv_general_dilated(out, w3, (1, 1), "VALID",
                                   dimension_numbers=dn)
    out = bn(out, *params["bn3"])
    if "w_sc" in params:
        wsc = params["w_sc"].reshape(1, 1, *params["w_sc"].shape)
        sc = lax.conv_general_dilated(x, wsc, (stride, stride), "VALID",
                                      dimension_numbers=dn)
        sc = bn(sc, *params["bn_sc"])
    else:
        sc = x
    return jax.nn.relu(out + sc)


# ------------------------------------ main ----------------------------------- #

if __name__ == "__main__":
    key = jax.random.PRNGKey(0)

    def bn_params(k, c):
        k1, k2, k3, k4 = jax.random.split(k, 4)
        return (jax.random.normal(k1, (c,)) * 0.1 + 1.0,                 # gamma
                jax.random.normal(k2, (c,)) * 0.1,                       # beta
                jax.random.normal(k3, (c,)) * 0.1,                       # running_mean
                jax.nn.softplus(jax.random.normal(k4, (c,))) + 0.5)      # running_var

    def make_params(k, in_planes, planes, with_sc):
        C4 = 4 * planes
        ks = jax.random.split(k, 8)
        p = {
            "w1": jax.random.normal(ks[0], (in_planes, planes)) * 0.1,
            "bn1": bn_params(ks[1], planes),
            "w2": jax.random.normal(ks[2], (3, 3, planes, planes)) * 0.1,
            "bn2": bn_params(ks[3], planes),
            "w3": jax.random.normal(ks[4], (planes, C4)) * 0.1,
            "bn3": bn_params(ks[5], C4),
        }
        if with_sc:
            p["w_sc"] = jax.random.normal(ks[6], (in_planes, C4)) * 0.1
            p["bn_sc"] = bn_params(ks[7], C4)
        return p

    N, H, W = 2, 16, 16
    # (in_planes, planes, stride, compute dtype, tolerance)
    configs = [
        (4, 8, 1, jnp.float32, 1e-4),    # projection shortcut, f32 (tight check)
        (32, 8, 1, jnp.float32, 1e-4),   # identity shortcut,   f32 (tight check)
        (4, 8, 1, jnp.bfloat16, 5e-2),   # projection shortcut, bf16 MXU operands
        (32, 8, 1, jnp.bfloat16, 5e-2),  # identity shortcut,   bf16 MXU operands
    ]

    for in_planes, planes, stride, cdt, tol in configs:
        kx, kp, key = jax.random.split(key, 3)
        with_sc = (stride != 1) or (in_planes != 4 * planes)
        params = make_params(kp, in_planes, planes, with_sc)

        # NCHW (PyTorch convention) -> NHWC (kernel layout)
        x_nchw = jax.random.normal(kx, (N, in_planes, H, W), jnp.float32)
        x_nhwc = jnp.transpose(x_nchw, (0, 2, 3, 1))

        out = bottleneck(x_nhwc, params, stride=stride, compute_dtype=cdt)
        out = jax.block_until_ready(out)

        ref = ref_block(x_nhwc, params, stride=stride)
        Ho = (H - 1) // stride + 1
        Wo = (W - 1) // stride + 1
        assert out.shape == (N, Ho, Wo, 4 * planes)
        max_err = float(jnp.max(jnp.abs(out - ref)))
        assert jnp.allclose(out, ref, atol=tol, rtol=tol), (str(cdt), max_err)

        # back to NCHW to mirror the PyTorch module's output layout
        out_nchw = jnp.transpose(out, (0, 3, 1, 2))
        jax.block_until_ready(out_nchw)

    print("KERNEL_OK")
</pallas_src>

<mosaic_0001>
module attributes {stable_mosaic.version = 11 : i64} {
  func.func @_bneck_projection_kernel(%arg0: i32, %arg1: memref<1x16x16x4xf32, #tpu.memory_space<vmem>>, %arg2: memref<4x40xf32, #tpu.memory_space<vmem>>, %arg3: memref<1x40xf32, #tpu.memory_space<vmem>>, %arg4: memref<3x3x8x8xf32, #tpu.memory_space<vmem>>, %arg5: memref<1x8xf32, #tpu.memory_space<vmem>>, %arg6: memref<8x32xf32, #tpu.memory_space<vmem>>, %arg7: memref<1x32xf32, #tpu.memory_space<vmem>>, %arg8: memref<1x16x16x32xf32, #tpu.memory_space<vmem>>, %arg9: memref<1x18x18x8xf32, #tpu.memory_space<vmem>>) attributes {dimension_semantics = [#tpu.dimension_semantics<parallel>], iteration_bounds = array<i64: 2>, scalar_prefetch = 0 : i64, scratch_operands = 1 : i64, tpu.core_type = #tpu.core_type<tc>, window_params = [{transform_indices = @transform_0, window_bounds = array<i64: 1, 16, 16, 4>}, {pipeline_mode = #tpu.pipeline_mode<synchronous>, transform_indices = @transform_1, window_bounds = array<i64: 4, 40>}, {pipeline_mode = #tpu.pipeline_mode<synchronous>, transform_indices = @transform_2, window_bounds = array<i64: 1, 40>}, {pipeline_mode = #tpu.pipeline_mode<synchronous>, transform_indices = @transform_3, window_bounds = array<i64: 3, 3, 8, 8>}, {pipeline_mode = #tpu.pipeline_mode<synchronous>, transform_indices = @transform_4, window_bounds = array<i64: 1, 8>}, {pipeline_mode = #tpu.pipeline_mode<synchronous>, transform_indices = @transform_5, window_bounds = array<i64: 8, 32>}, {pipeline_mode = #tpu.pipeline_mode<synchronous>, transform_indices = @transform_6, window_bounds = array<i64: 1, 32>}, {transform_indices = @transform_7, window_bounds = array<i64: 1, 16, 16, 32>}]} {
    %c0 = arith.constant 0 : index
    %c0_0 = arith.constant 0 : index
    %c0_1 = arith.constant 0 : index
    %c0_2 = arith.constant 0 : index
    %0 = vector.load %arg1[%c0, %c0_0, %c0_1, %c0_2] : memref<1x16x16x4xf32, #tpu.memory_space<vmem>>, vector<1x16x16x4xf32>
    %1 = vector.shape_cast %0 : vector<1x16x16x4xf32> to vector<256x4xf32>
    %c0_3 = arith.constant 0 : index
    %c0_4 = arith.constant 0 : index
    %2 = vector.load %arg2[%c0_3, %c0_4] : memref<4x40xf32, #tpu.memory_space<vmem>>, vector<4x40xf32>
    %cst = arith.constant dense<0.000000e+00> : vector<256x40xf32>
    %3 = tpu.matmul %1, %2, %cst {dimension_numbers = #tpu.dot_dimension_numbers<[1], [0], [0], [1], [0, 0, 1, 1], [], []>} : vector<256x4xf32>, vector<4x40xf32>, vector<256x40xf32> -> vector<256x40xf32>
    %c0_5 = arith.constant 0 : index
    %c0_6 = arith.constant 0 : index
    %4 = vector.load %arg3[%c0_5, %c0_6] : memref<1x40xf32, #tpu.memory_space<vmem>>, vector<1x40xf32>
    %5 = vector.broadcast %4 : vector<1x40xf32> to vector<256x40xf32>
    %6 = arith.addf %3, %5 : vector<256x40xf32>
    %7 = vector.extract_strided_slice %6 {offsets = [0, 0], sizes = [256, 8], strides = [1, 1]} : vector<256x40xf32> to vector<256x8xf32>
    %cst_7 = arith.constant 0.000000e+00 : f32
    %8 = vector.broadcast %cst_7 : f32 to vector<256x8xf32>
    %9 = arith.maximumf %7, %8 : vector<256x8xf32>
    %10 = vector.extract_strided_slice %6 {offsets = [0, 8], sizes = [256, 32], strides = [1, 1]} : vector<256x40xf32> to vector<256x32xf32>
    %11 = vector.shape_cast %9 : vector<256x8xf32> to vector<1x16x16x8xf32>
    %c0_8 = arith.constant 0 : index
    %c1 = arith.constant 1 : index
    %c1_9 = arith.constant 1 : index
    %c0_10 = arith.constant 0 : index
    %12 = vector.load %arg9[%c0_8, %c1, %c1_9, %c0_10] : memref<1x18x18x8xf32, #tpu.memory_space<vmem>>, vector<1x16x16x8xf32>
    tpu.vector_store %arg9[%c0_8, %c1, %c1_9, %c0_10], %11 {strides = array<i32>} : memref<1x18x18x8xf32, #tpu.memory_space<vmem>>, vector<1x16x16x8xf32>,
    %cst_11 = arith.constant 0.000000e+00 : f32
    %13 = vector.broadcast %cst_11 : f32 to vector<1x1x18x8xf32>
    %cst_12 = arith.constant 0.000000e+00 : f32
    %14 = vector.broadcast %cst_12 : f32 to vector<1x18x1x8xf32>
    %c0_13 = arith.constant 0 : index
    %c0_14 = arith.constant 0 : index
    %c0_15 = arith.constant 0 : index
    %c0_16 = arith.constant 0 : index
    %15 = vector.load %arg9[%c0_13, %c0_14, %c0_15, %c0_16] : memref<1x18x18x8xf32, #tpu.memory_space<vmem>>, vector<1x1x18x8xf32>
    tpu.vector_store %arg9[%c0_13, %c0_14, %c0_15, %c0_16], %13 {strides = array<i32>} : memref<1x18x18x8xf32, #tpu.memory_space<vmem>>, vector<1x1x18x8xf32>,
    %c0_17 = arith.constant 0 : index
    %c17 = arith.constant 17 : index
    %c0_18 = arith.constant 0 : index
    %c0_19 = arith.constant 0 : index
    %16 = vector.load %arg9[%c0_17, %c17, %c0_18, %c0_19] : memref<1x18x18x8xf32, #tpu.memory_space<vmem>>, vector<1x1x18x8xf32>
    tpu.vector_store %arg9[%c0_17, %c17, %c0_18, %c0_19], %13 {strides = array<i32>} : memref<1x18x18x8xf32, #tpu.memory_space<vmem>>, vector<1x1x18x8xf32>,
    %c0_20 = arith.constant 0 : index
    %c0_21 = arith.constant 0 : index
    %c0_22 = arith.constant 0 : index
    %c0_23 = arith.constant 0 : index
    %17 = vector.load %arg9[%c0_20, %c0_21, %c0_22, %c0_23] : memref<1x18x18x8xf32, #tpu.memory_space<vmem>>, vector<1x18x1x8xf32>
    tpu.vector_store %arg9[%c0_20, %c0_21, %c0_22, %c0_23], %14 {strides = array<i32>} : memref<1x18x18x8xf32, #tpu.memory_space<vmem>>, vector<1x18x1x8xf32>,
    %c0_24 = arith.constant 0 : index
    %c0_25 = arith.constant 0 : index
    %c17_26 = arith.constant 17 : index
    %c0_27 = arith.constant 0 : index
    %18 = vector.load %arg9[%c0_24, %c0_25, %c17_26, %c0_27] : memref<1x18x18x8xf32, #tpu.memory_space<vmem>>, vector<1x18x1x8xf32>
    tpu.vector_store %arg9[%c0_24, %c0_25, %c17_26, %c0_27], %14 {strides = array<i32>} : memref<1x18x18x8xf32, #tpu.memory_space<vmem>>, vector<1x18x1x8xf32>,
    %cst_28 = arith.constant 0.000000e+00 : f32
    %19 = vector.broadcast %cst_28 : f32 to vector<256x8xf32>
    %c0_29 = arith.constant 0 : index
    %c0_30 = arith.constant 0 : index
    %c0_31 = arith.constant 0 : index
    %c0_32 = arith.constant 0 : index
    %20 = vector.load %arg4[%c0_29, %c0_30, %c0_31, %c0_32] : memref<3x3x8x8xf32, #tpu.memory_space<vmem>>, vector<1x3x8x8xf32>
    %21 = vector.shape_cast %20 : vector<1x3x8x8xf32> to vector<3x8x8xf32>
    %c0_33 = arith.constant 0 : index
    %c0_34 = arith.constant 0 : index
    %c0_35 = arith.constant 0 : index
    %c0_36 = arith.constant 0 : index
    %22 = vector.load %arg9[%c0_33, %c0_34, %c0_35, %c0_36] : memref<1x18x18x8xf32, #tpu.memory_space<vmem>>, vector<1x16x16x8xf32>
    %23 = vector.shape_cast %22 : vector<1x16x16x8xf32> to vector<256x8xf32>
    %24 = vector.extract_strided_slice %21 {offsets = [0, 0, 0], sizes = [1, 8, 8], strides = [1, 1, 1]} : vector<3x8x8xf32> to vector<1x8x8xf32>
    %25 = vector.shape_cast %24 : vector<1x8x8xf32> to vector<8x8xf32>
    %cst_37 = arith.constant dense<0.000000e+00> : vector<256x8xf32>
    %26 = tpu.matmul %23, %25, %cst_37 {dimension_numbers = #tpu.dot_dimension_numbers<[1], [0], [0], [1], [0, 0, 1, 1], [], []>} : vector<256x8xf32>, vector<8x8xf32>, vector<256x8xf32> -> vector<256x8xf32>
    %27 = arith.addf %19, %26 : vector<256x8xf32>
    %c0_38 = arith.constant 0 : index
    %c0_39 = arith.constant 0 : index
    %c1_40 = arith.constant 1 : index
    %c0_41 = arith.constant 0 : index
    %28 = vector.load %arg9[%c0_38, %c0_39, %c1_40, %c0_41] : memref<1x18x18x8xf32, #tpu.memory_space<vmem>>, vector<1x16x16x8xf32>
    %29 = vector.shape_cast %28 : vector<1x16x16x8xf32> to vector<256x8xf32>
    %30 = vector.extract_strided_slice %21 {offsets = [1, 0, 0], sizes = [1, 8, 8], strides = [1, 1, 1]} : vector<3x8x8xf32> to vector<1x8x8xf32>
    %31 = vector.shape_cast %30 : vector<1x8x8xf32> to vector<8x8xf32>
    %cst_42 = arith.constant dense<0.000000e+00> : vector<256x8xf32>
    %32 = tpu.matmul %29, %31, %cst_42 {dimension_numbers = #tpu.dot_dimension_numbers<[1], [0], [0], [1], [0, 0, 1, 1], [], []>} : vector<256x8xf32>, vector<8x8xf32>, vector<256x8xf32> -> vector<256x8xf32>
    %33 = arith.addf %27, %32 : vector<256x8xf32>
    %c0_43 = arith.constant 0 : index
    %c0_44 = arith.constant 0 : index
    %c2 = arith.constant 2 : index
    %c0_45 = arith.constant 0 : index
    %34 = vector.load %arg9[%c0_43, %c0_44, %c2, %c0_45] : memref<1x18x18x8xf32, #tpu.memory_space<vmem>>, vector<1x16x16x8xf32>
    %35 = vector.shape_cast %34 : vector<1x16x16x8xf32> to vector<256x8xf32>
    %36 = vector.extract_strided_slice %21 {offsets = [2, 0, 0], sizes = [1, 8, 8], strides = [1, 1, 1]} : vector<3x8x8xf32> to vector<1x8x8xf32>
    %37 = vector.shape_cast %36 : vector<1x8x8xf32> to vector<8x8xf32>
    %cst_46 = arith.constant dense<0.000000e+00> : vector<256x8xf32>
    %38 = tpu.matmul %35, %37, %cst_46 {dimension_numbers = #tpu.dot_dimension_numbers<[1], [0], [0], [1], [0, 0, 1, 1], [], []>} : vector<256x8xf32>, vector<8x8xf32>, vector<256x8xf32> -> vector<256x8xf32>
    %39 = arith.addf %33, %38 : vector<256x8xf32>
    %c1_47 = arith.constant 1 : index
    %c0_48 = arith.constant 0 : index
    %c0_49 = arith.constant 0 : index
    %c0_50 = arith.constant 0 : index
    %40 = vector.load %arg4[%c1_47, %c0_48, %c0_49, %c0_50] : memref<3x3x8x8xf32, #tpu.memory_space<vmem>>, vector<1x3x8x8xf32>
    %41 = vector.shape_cast %40 : vector<1x3x8x8xf32> to vector<3x8x8xf32>
    %c0_51 = arith.constant 0 : index
    %c1_52 = arith.constant 1 : index
    %c0_53 = arith.constant 0 : index
    %c0_54 = arith.constant 0 : index
    %42 = vector.load %arg9[%c0_51, %c1_52, %c0_53, %c0_54] : memref<1x18x18x8xf32, #tpu.memory_space<vmem>>, vector<1x16x16x8xf32>
    %43 = vector.shape_cast %42 : vector<1x16x16x8xf32> to vector<256x8xf32>
    %44 = vector.extract_strided_slice %41 {offsets = [0, 0, 0], sizes = [1, 8, 8], strides = [1, 1, 1]} : vector<3x8x8xf32> to vector<1x8x8xf32>
    %45 = vector.shape_cast %44 : vector<1x8x8xf32> to vector<8x8xf32>
    %cst_55 = arith.constant dense<0.000000e+00> : vector<256x8xf32>
    %46 = tpu.matmul %43, %45, %cst_55 {dimension_numbers = #tpu.dot_dimension_numbers<[1], [0], [0], [1], [0, 0, 1, 1], [], []>} : vector<256x8xf32>, vector<8x8xf32>, vector<256x8xf32> -> vector<256x8xf32>
    %47 = arith.addf %39, %46 : vector<256x8xf32>
    %c0_56 = arith.constant 0 : index
    %c1_57 = arith.constant 1 : index
    %c1_58 = arith.constant 1 : index
    %c0_59 = arith.constant 0 : index
    %48 = vector.load %arg9[%c0_56, %c1_57, %c1_58, %c0_59] : memref<1x18x18x8xf32, #tpu.memory_space<vmem>>, vector<1x16x16x8xf32>
    %49 = vector.shape_cast %48 : vector<1x16x16x8xf32> to vector<256x8xf32>
    %50 = vector.extract_strided_slice %41 {offsets = [1, 0, 0], sizes = [1, 8, 8], strides = [1, 1, 1]} : vector<3x8x8xf32> to vector<1x8x8xf32>
    %51 = vector.shape_cast %50 : vector<1x8x8xf32> to vector<8x8xf32>
    %cst_60 = arith.constant dense<0.000000e+00> : vector<256x8xf32>
    %52 = tpu.matmul %49, %51, %cst_60 {dimension_numbers = #tpu.dot_dimension_numbers<[1], [0], [0], [1], [0, 0, 1, 1], [], []>} : vector<256x8xf32>, vector<8x8xf32>, vector<256x8xf32> -> vector<256x8xf32>
    %53 = arith.addf %47, %52 : vector<256x8xf32>
    %c0_61 = arith.constant 0 : index
    %c1_62 = arith.constant 1 : index
    %c2_63 = arith.constant 2 : index
    %c0_64 = arith.constant 0 : index
    %54 = vector.load %arg9[%c0_61, %c1_62, %c2_63, %c0_64] : memref<1x18x18x8xf32, #tpu.memory_space<vmem>>, vector<1x16x16x8xf32>
    %55 = vector.shape_cast %54 : vector<1x16x16x8xf32> to vector<256x8xf32>
    %56 = vector.extract_strided_slice %41 {offsets = [2, 0, 0], sizes = [1, 8, 8], strides = [1, 1, 1]} : vector<3x8x8xf32> to vector<1x8x8xf32>
    %57 = vector.shape_cast %56 : vector<1x8x8xf32> to vector<8x8xf32>
    %cst_65 = arith.constant dense<0.000000e+00> : vector<256x8xf32>
    %58 = tpu.matmul %55, %57, %cst_65 {dimension_numbers = #tpu.dot_dimension_numbers<[1], [0], [0], [1], [0, 0, 1, 1], [], []>} : vector<256x8xf32>, vector<8x8xf32>, vector<256x8xf32> -> vector<256x8xf32>
    %59 = arith.addf %53, %58 : vector<256x8xf32>
    %c2_66 = arith.constant 2 : index
    %c0_67 = arith.constant 0 : index
    %c0_68 = arith.constant 0 : index
    %c0_69 = arith.constant 0 : index
    %60 = vector.load %arg4[%c2_66, %c0_67, %c0_68, %c0_69] : memref<3x3x8x8xf32, #tpu.memory_space<vmem>>, vector<1x3x8x8xf32>
    %61 = vector.shape_cast %60 : vector<1x3x8x8xf32> to vector<3x8x8xf32>
    %c0_70 = arith.constant 0 : index
    %c2_71 = arith.constant 2 : index
    %c0_72 = arith.constant 0 : index
    %c0_73 = arith.constant 0 : index
    %62 = vector.load %arg9[%c0_70, %c2_71, %c0_72, %c0_73] : memref<1x18x18x8xf32, #tpu.memory_space<vmem>>, vector<1x16x16x8xf32>
    %63 = vector.shape_cast %62 : vector<1x16x16x8xf32> to vector<256x8xf32>
    %64 = vector.extract_strided_slice %61 {offsets = [0, 0, 0], sizes = [1, 8, 8], strides = [1, 1, 1]} : vector<3x8x8xf32> to vector<1x8x8xf32>
    %65 = vector.shape_cast %64 : vector<1x8x8xf32> to vector<8x8xf32>
    %cst_74 = arith.constant dense<0.000000e+00> : vector<256x8xf32>
    %66 = tpu.matmul %63, %65, %cst_74 {dimension_numbers = #tpu.dot_dimension_numbers<[1], [0], [0], [1], [0, 0, 1, 1], [], []>} : vector<256x8xf32>, vector<8x8xf32>, vector<256x8xf32> -> vector<256x8xf32>
    %67 = arith.addf %59, %66 : vector<256x8xf32>
    %c0_75 = arith.constant 0 : index
    %c2_76 = arith.constant 2 : index
    %c1_77 = arith.constant 1 : index
    %c0_78 = arith.constant 0 : index
    %68 = vector.load %arg9[%c0_75, %c2_76, %c1_77, %c0_78] : memref<1x18x18x8xf32, #tpu.memory_space<vmem>>, vector<1x16x16x8xf32>
    %69 = vector.shape_cast %68 : vector<1x16x16x8xf32> to vector<256x8xf32>
    %70 = vector.extract_strided_slice %61 {offsets = [1, 0, 0], sizes = [1, 8, 8], strides = [1, 1, 1]} : vector<3x8x8xf32> to vector<1x8x8xf32>
    %71 = vector.shape_cast %70 : vector<1x8x8xf32> to vector<8x8xf32>
    %cst_79 = arith.constant dense<0.000000e+00> : vector<256x8xf32>
    %72 = tpu.matmul %69, %71, %cst_79 {dimension_numbers = #tpu.dot_dimension_numbers<[1], [0], [0], [1], [0, 0, 1, 1], [], []>} : vector<256x8xf32>, vector<8x8xf32>, vector<256x8xf32> -> vector<256x8xf32>
    %73 = arith.addf %67, %72 : vector<256x8xf32>
    %c0_80 = arith.constant 0 : index
    %c2_81 = arith.constant 2 : index
    %c2_82 = arith.constant 2 : index
    %c0_83 = arith.constant 0 : index
    %74 = vector.load %arg9[%c0_80, %c2_81, %c2_82, %c0_83] : memref<1x18x18x8xf32, #tpu.memory_space<vmem>>, vector<1x16x16x8xf32>
    %75 = vector.shape_cast %74 : vector<1x16x16x8xf32> to vector<256x8xf32>
    %76 = vector.extract_strided_slice %61 {offsets = [2, 0, 0], sizes = [1, 8, 8], strides = [1, 1, 1]} : vector<3x8x8xf32> to vector<1x8x8xf32>
    %77 = vector.shape_cast %76 : vector<1x8x8xf32> to vector<8x8xf32>
    %cst_84 = arith.constant dense<0.000000e+00> : vector<256x8xf32>
    %78 = tpu.matmul %75, %77, %cst_84 {dimension_numbers = #tpu.dot_dimension_numbers<[1], [0], [0], [1], [0, 0, 1, 1], [], []>} : vector<256x8xf32>, vector<8x8xf32>, vector<256x8xf32> -> vector<256x8xf32>
    %79 = arith.addf %73, %78 : vector<256x8xf32>
    %c0_85 = arith.constant 0 : index
    %c0_86 = arith.constant 0 : index
    %80 = vector.load %arg5[%c0_85, %c0_86] : memref<1x8xf32, #tpu.memory_space<vmem>>, vector<1x8xf32>
    %81 = vector.broadcast %80 : vector<1x8xf32> to vector<256x8xf32>
    %82 = arith.addf %79, %81 : vector<256x8xf32>
    %cst_87 = arith.constant 0.000000e+00 : f32
    %83 = vector.broadcast %cst_87 : f32 to vector<256x8xf32>
    %84 = arith.maximumf %82, %83 : vector<256x8xf32>
    %c0_88 = arith.constant 0 : index
    %c0_89 = arith.constant 0 : index
    %85 = vector.load %arg6[%c0_88, %c0_89] : memref<8x32xf32, #tpu.memory_space<vmem>>, vector<8x32xf32>
    %cst_90 = arith.constant dense<0.000000e+00> : vector<256x32xf32>
    %86 = tpu.matmul %84, %85, %cst_90 {dimension_numbers = #tpu.dot_dimension_numbers<[1], [0], [0], [1], [0, 0, 1, 1], [], []>} : vector<256x8xf32>, vector<8x32xf32>, vector<256x32xf32> -> vector<256x32xf32>
    %c0_91 = arith.constant 0 : index
    %c0_92 = arith.constant 0 : index
    %87 = vector.load %arg7[%c0_91, %c0_92] : memref<1x32xf32, #tpu.memory_space<vmem>>, vector<1x32xf32>
    %88 = vector.broadcast %87 : vector<1x32xf32> to vector<256x32xf32>
    %89 = arith.addf %86, %88 : vector<256x32xf32>
    %90 = arith.addf %89, %10 : vector<256x32xf32>
    %cst_93 = arith.constant 0.000000e+00 : f32
    %91 = vector.broadcast %cst_93 : f32 to vector<256x32xf32>
    %92 = arith.maximumf %90, %91 : vector<256x32xf32>
    %93 = vector.shape_cast %92 : vector<256x32xf32> to vector<1x16x16x32xf32>
    %c0_94 = arith.constant 0 : index
    %c0_95 = arith.constant 0 : index
    %c0_96 = arith.constant 0 : index
    %c0_97 = arith.constant 0 : index
    %94 = vector.load %arg8[%c0_94, %c0_95, %c0_96, %c0_97] : memref<1x16x16x32xf32, #tpu.memory_space<vmem>>, vector<1x16x16x32xf32>
    tpu.vector_store %arg8[%c0_94, %c0_95, %c0_96, %c0_97], %93 {strides = array<i32>} : memref<1x16x16x32xf32, #tpu.memory_space<vmem>>, vector<1x16x16x32xf32>,
    return
  }
  func.func @transform_0(%arg0: i32) -> (i32, i32, i32, i32) {
    %c0_i32 = arith.constant 0 : i32
    %c0_i32_0 = arith.constant 0 : i32
    %c0_i32_1 = arith.constant 0 : i32
    %c0_i32_2 = arith.constant 0 : i32
    return %arg0, %c0_i32, %c0_i32_0, %c0_i32_1 : i32, i32, i32, i32
  }
  func.func @transform_1(%arg0: i32) -> (i32, i32) {
    %c0_i32 = arith.constant 0 : i32
    %c0_i32_0 = arith.constant 0 : i32
    %c0_i32_1 = arith.constant 0 : i32
    return %c0_i32, %c0_i32_0 : i32, i32
  }
  func.func @transform_2(%arg0: i32) -> (i32, i32) {
    %c0_i32 = arith.constant 0 : i32
    %c0_i32_0 = arith.constant 0 : i32
    %c0_i32_1 = arith.constant 0 : i32
    return %c0_i32, %c0_i32_0 : i32, i32
  }
  func.func @transform_3(%arg0: i32) -> (i32, i32, i32, i32) {
    %c0_i32 = arith.constant 0 : i32
    %c0_i32_0 = arith.constant 0 : i32
    %c0_i32_1 = arith.constant 0 : i32
    %c0_i32_2 = arith.constant 0 : i32
    %c0_i32_3 = arith.constant 0 : i32
    return %c0_i32, %c0_i32_0, %c0_i32_1, %c0_i32_2 : i32, i32, i32, i32
  }
  func.func @transform_4(%arg0: i32) -> (i32, i32) {
    %c0_i32 = arith.constant 0 : i32
    %c0_i32_0 = arith.constant 0 : i32
    %c0_i32_1 = arith.constant 0 : i32
    return %c0_i32, %c0_i32_0 : i32, i32
  }
  func.func @transform_5(%arg0: i32) -> (i32, i32) {
    %c0_i32 = arith.constant 0 : i32
    %c0_i32_0 = arith.constant 0 : i32
    %c0_i32_1 = arith.constant 0 : i32
    return %c0_i32, %c0_i32_0 : i32, i32
  }
  func.func @transform_6(%arg0: i32) -> (i32, i32) {
    %c0_i32 = arith.constant 0 : i32
    %c0_i32_0 = arith.constant 0 : i32
    %c0_i32_1 = arith.constant 0 : i32
    return %c0_i32, %c0_i32_0 : i32, i32
  }
  func.func @transform_7(%arg0: i32) -> (i32, i32, i32, i32) {
    %c0_i32 = arith.constant 0 : i32
    %c0_i32_0 = arith.constant 0 : i32
    %c0_i32_1 = arith.constant 0 : i32
    %c0_i32_2 = arith.constant 0 : i32
    return %arg0, %c0_i32, %c0_i32_0, %c0_i32_1 : i32, i32, i32, i32
  }
}

</mosaic_0001>

<llo_original>
// kernel: tpu_custom_call.1
$region0: #{tpu_custom_call.1}
  #allocation0 [shape = 'u32[]', space=smem, size = 0x4, offset = 0x4, fixed_abs, tag = 'smem constant byte address 0x4 - core index']
  #allocation1 [shape = 'u32[144,128]{1,0:T(1,128)}', space=vmem, size = 0x12000, scoped, tag = 'internal scratch']
  #allocation2 [shape = 'f32[1,18,18,8]{3,2,1,0:T(8,128)}', space=vmem, size = 0x36000, scoped, tag = 'scratch operand']
  %s0 = inlined_call_operand.vmem [shape: f32[2,16,16,4], index: 0, kind: input, shape index: {}]
  %s1 = inlined_call_operand.vmem [shape: f32[4,40], index: 1, kind: input, shape index: {}]
  %s2 = inlined_call_operand.vmem [shape: f32[1,40], index: 2, kind: input, shape index: {}]
  %s3 = inlined_call_operand.vmem [shape: f32[3,3,8,8], index: 3, kind: input, shape index: {}]
  %s4 = inlined_call_operand.vmem [shape: f32[1,8], index: 4, kind: input, shape index: {}]
  %s5 = inlined_call_operand.vmem [shape: f32[8,32], index: 5, kind: input, shape index: {}]
  %s6 = inlined_call_operand.vmem [shape: f32[1,32], index: 6, kind: input, shape index: {}]
  %s7 = inlined_call_operand.hbm [shape: f32[2,16,16,32], index: 7, kind: output, shape index: {}]
  %s8 = sld [smem:[#allocation0]]
  $region61: #{tpu_custom_call.1} parent=0
    _
  %s10 = ssub.s32 1, %s8
  %s11 = scalar_select 0, %s10, %s8
  $region1: #{tpu_custom_call.1} parent=0
    #allocation3 [shape = 'u8[262144]{0}', space=vmem, size = 0x40000, scoped, tag = 'output window, operand 0']
    #allocation4 [shape = 's32[2]{0}', space=sflag, size = 0x8, scoped, tag = 'scoped memory for tpu_custom_call.1']
    %12 = vsyncpa [#allocation4], 0
    %s13 = scalar_lea.sflag [#allocation4], 1
    %14 = vsyncpa %s13, 0
    loop: start=0, step=1, limit=4
    $region2: #{tpu_custom_call.1} parent=1 // loop_pre_header
      _
    $region3: #{tpu_custom_call.1} parent=1 // loop_header
      %s16 = sphi 0, %s20
      %p17 = scmp.ge.s32.totalorder %s16, 4
      %s26 = sphi 0, %s28
      %s29 = sphi 0, %s26
      %s30 = sphi 0, %s29
      %s46 = sphi 0, %s30
      %s50 = sphi 0, %s50
      %s52 = sphi 0, %s50
      %s53 = sphi 0, %s52
      %s67 = sphi 0, %s53
      %s71 = sphi 0, %s71
      %s73 = sphi 0, %s71
      %s74 = sphi 0, %s73
      %s88 = sphi 0, %s74
      %s92 = sphi 0, %s92
      %s94 = sphi 0, %s92
      %s95 = sphi 0, %s94
      %s109 = sphi 0, %s95
      %s113 = sphi 0, %s113
      %s115 = sphi 0, %s113
      %s116 = sphi 0, %s115
      %s130 = sphi 0, %s116
      %s134 = sphi 0, %s134
      %s136 = sphi 0, %s134
      %s137 = sphi 0, %s136
      %s151 = sphi 0, %s137
      %s155 = sphi 0, %s155
      %s157 = sphi 0, %s155
      %s158 = sphi 0, %s157
      %s172 = sphi 0, %s158
      %s178 = sphi 0, %s180
      %s181 = sphi 0, %s178
      %s182 = sphi 0, %s181
      %s198 = sphi 0, %s182
    $region4: #{tpu_custom_call.1} parent=1 // loop_header_branch
      %19 = sbr.rel (%p17) target = $region8
    $region5: #{tpu_custom_call.1} parent=1 // loop_body
      %s21 = ssub.s32 %s16, 1
      %s22 = ssub.s32 %s16, 2
      %s23 = sadd.s32 %s16, 1
      %s24 = ssub.s32 %s16, %s23
      %p25 = scmp.eq.s32.totalorder %s24, 0
      %s27 = sadd.s32 %s26, 1
      %s28 = scalar_select %p25, %s26, %s27
      %p31 = pneg %p25
      %p32 = scmp.eq.s32.totalorder %s16, 1
      %p33 = por %p31, %p32
      %p34 = scmp.ne.s32.totalorder %s26, %s29
      %p35 = scmp.eq.s32.totalorder %s16, 0
      %p36 = por %p34, %p35
      %p37 = scmp.ne.s32.totalorder %s26, %s29
      %p38 = scmp.eq.s32.totalorder %s21, 1
      %p39 = por %p37, %p38
      %p40 = scmp.ne.s32.totalorder %s29, %s30
      %p41 = scmp.eq.s32.totalorder %s21, 0
      %p42 = por %p40, %p41
      %p43 = scmp.ne.s32.totalorder %s29, %s30
      %p44 = scmp.eq.s32.totalorder %s22, 1
      %p45 = por %p43, %p44
      %p47 = scmp.ne.s32.totalorder %s30, %s46
      %p48 = scmp.eq.s32.totalorder %s22, 0
      %p49 = por %p47, %p48
      %s51 = sadd.s32 %s50, 1
      %p54 = scmp.eq.s32.totalorder %s16, 1
      %p55 = scmp.ne.s32.totalorder %s50, %s52
      %p56 = scmp.eq.s32.totalorder %s16, 0
      %p57 = por %p55, %p56
      %p58 = scmp.ne.s32.totalorder %s50, %s52
      %p59 = scmp.eq.s32.totalorder %s21, 1
      %p60 = por %p58, %p59
      %p61 = scmp.ne.s32.totalorder %s52, %s53
      %p62 = scmp.eq.s32.totalorder %s21, 0
      %p63 = por %p61, %p62
      %p64 = scmp.ne.s32.totalorder %s52, %s53
      %p65 = scmp.eq.s32.totalorder %s22, 1
      %p66 = por %p64, %p65
      %p68 = scmp.ne.s32.totalorder %s53, %s67
      %p69 = scmp.eq.s32.totalorder %s22, 0
      %p70 = por %p68, %p69
      %s72 = sadd.s32 %s71, 1
      %p75 = scmp.eq.s32.totalorder %s16, 1
      %p76 = scmp.ne.s32.totalorder %s71, %s73
      %p77 = scmp.eq.s32.totalorder %s16, 0
      %p78 = por %p76, %p77
      %p79 = scmp.ne.s32.totalorder %s71, %s73
      %p80 = scmp.eq.s32.totalorder %s21, 1
      %p81 = por %p79, %p80
      %p82 = scmp.ne.s32.totalorder %s73, %s74
      %p83 = scmp.eq.s32.totalorder %s21, 0
      %p84 = por %p82, %p83
      %p85 = scmp.ne.s32.totalorder %s73, %s74
      %p86 = scmp.eq.s32.totalorder %s22, 1
      %p87 = por %p85, %p86
      %p89 = scmp.ne.s32.totalorder %s74, %s88
      %p90 = scmp.eq.s32.totalorder %s22, 0
      %p91 = por %p89, %p90
      %s93 = sadd.s32 %s92, 1
      %p96 = scmp.eq.s32.totalorder %s16, 1
      %p97 = scmp.ne.s32.totalorder %s92, %s94
      %p98 = scmp.eq.s32.totalorder %s16, 0
      %p99 = por %p97, %p98
      %p100 = scmp.ne.s32.totalorder %s92, %s94
      %p101 = scmp.eq.s32.totalorder %s21, 1
      %p102 = por %p100, %p101
      %p103 = scmp.ne.s32.totalorder %s94, %s95
      %p104 = scmp.eq.s32.totalorder %s21, 0
      %p105 = por %p103, %p104
      %p106 = scmp.ne.s32.totalorder %s94, %s95
      %p107 = scmp.eq.s32.totalorder %s22, 1
      %p108 = por %p106, %p107
      %p110 = scmp.ne.s32.totalorder %s95, %s109
      %p111 = scmp.eq.s32.totalorder %s22, 0
      %p112 = por %p110, %p111
      %s114 = sadd.s32 %s113, 1
      %p117 = scmp.eq.s32.totalorder %s16, 1
      %p118 = scmp.ne.s32.totalorder %s113, %s115
      %p119 = scmp.eq.s32.totalorder %s16, 0
      %p120 = por %p118, %p119
      %p121 = scmp.ne.s32.totalorder %s113, %s115
      %p122 = scmp.eq.s32.totalorder %s21, 1
      %p123 = por %p121, %p122
      %p124 = scmp.ne.s32.totalorder %s115, %s116
      %p125 = scmp.eq.s32.totalorder %s21, 0
      %p126 = por %p124, %p125
      %p127 = scmp.ne.s32.totalorder %s115, %s116
      %p128 = scmp.eq.s32.totalorder %s22, 1
      %p129 = por %p127, %p128
      %p131 = scmp.ne.s32.totalorder %s116, %s130
      %p132 = scmp.eq.s32.totalorder %s22, 0
      %p133 = por %p131, %p132
      %s135 = sadd.s32 %s134, 1
      %p138 = scmp.eq.s32.totalorder %s16, 1
      %p139 = scmp.ne.s32.totalorder %s134, %s136
      %p140 = scmp.eq.s32.totalorder %s16, 0
      %p141 = por %p139, %p140
      %p142 = scmp.ne.s32.totalorder %s134, %s136
      %p143 = scmp.eq.s32.totalorder %s21, 1
      %p144 = por %p142, %p143
      %p145 = scmp.ne.s32.totalorder %s136, %s137
      %p146 = scmp.eq.s32.totalorder %s21, 0
      %p147 = por %p145, %p146
      %p148 = scmp.ne.s32.totalorder %s136, %s137
      %p149 = scmp.eq.s32.totalorder %s22, 1
      %p150 = por %p148, %p149
      %p152 = scmp.ne.s32.totalorder %s137, %s151
      %p153 = scmp.eq.s32.totalorder %s22, 0
      %p154 = por %p152, %p153
      %s156 = sadd.s32 %s155, 1
      %p159 = scmp.eq.s32.totalorder %s16, 1
      %p160 = scmp.ne.s32.totalorder %s155, %s157
      %p161 = scmp.eq.s32.totalorder %s16, 0
      %p162 = por %p160, %p161
      %p163 = scmp.ne.s32.totalorder %s155, %s157
      %p164 = scmp.eq.s32.totalorder %s21, 1
      %p165 = por %p163, %p164
      %p166 = scmp.ne.s32.totalorder %s157, %s158
      %p167 = scmp.eq.s32.totalorder %s21, 0
      %p168 = por %p166, %p167
      %p169 = scmp.ne.s32.totalorder %s157, %s158
      %p170 = scmp.eq.s32.totalorder %s22, 1
      %p171 = por %p169, %p170
      %p173 = scmp.ne.s32.totalorder %s158, %s172
      %p174 = scmp.eq.s32.totalorder %s22, 0
      %p175 = por %p173, %p174
      %s176 = ssub.s32 %s16, %s23
      %p177 = scmp.eq.s32.totalorder %s176, 0
      %s179 = sadd.s32 %s178, 1
      %s180 = scalar_select %p177, %s178, %s179
      %p183 = pneg %p177
      %p184 = scmp.eq.s32.totalorder %s16, 1
      %p185 = por %p183, %p184
      %p186 = scmp.ne.s32.totalorder %s178, %s181
      %p187 = scmp.eq.s32.totalorder %s16, 0
      %p188 = por %p186, %p187
      %p189 = scmp.ne.s32.totalorder %s178, %s181
      %p190 = scmp.eq.s32.totalorder %s21, 1
      %p191 = por %p189, %p190
      %p192 = scmp.ne.s32.totalorder %s181, %s182
      %p193 = scmp.eq.s32.totalorder %s21, 0
      %p194 = por %p192, %p193
      %p195 = scmp.ne.s32.totalorder %s181, %s182
      %p196 = scmp.eq.s32.totalorder %s22, 1
      %p197 = por %p195, %p196
      %p199 = scmp.ne.s32.totalorder %s182, %s198
      %p200 = scmp.eq.s32.totalorder %s22, 0
      %p201 = por %p199, %p200
      %p202 = scmp.le.s32.totalorder 1, %s16
      %p203 = scmp.lt.s32.totalorder %s16, 3
      %p204 = pnand %p202, %p203
      %p205 = pneg %p204
      // Predicated region
      $region9: #{tpu_custom_call.1} parent=5 // pred_check
        _
      $region10: #{tpu_custom_call.1} parent=5 // pred_check_branch
        %207 = sbr.rel (%p204) target = $region12
      $region11: #{tpu_custom_call.1} parent=5 // pred_region
        %s208 = ssub.s32 %s16, 1
        // Predicated region
        $region13: #{tpu_custom_call.1} parent=11 // pred_check
          %p209 = pneg %p63
        $region14: #{tpu_custom_call.1} parent=11 // pred_check_branch
          %211 = sbr.rel (%p209) target = $region16
        $region15: #{tpu_custom_call.1} parent=11 // pred_region
          _
        $region16: #{tpu_custom_call.1} parent=11 // pred_fallthru
          _
        // Predicated region
        $region17: #{tpu_custom_call.1} parent=11 // pred_check
          %p212 = pneg %p84
        $region18: #{tpu_custom_call.1} parent=11 // pred_check_branch
          %214 = sbr.rel (%p212) target = $region20
        $region19: #{tpu_custom_call.1} parent=11 // pred_region
          _
        $region20: #{tpu_custom_call.1} parent=11 // pred_fallthru
          _
        // Predicated region
        $region21: #{tpu_custom_call.1} parent=11 // pred_check
          %p215 = pneg %p105
        $region22: #{tpu_custom_call.1} parent=11 // pred_check_branch
          %217 = sbr.rel (%p215) target = $region24
        $region23: #{tpu_custom_call.1} parent=11 // pred_region
          _
        $region24: #{tpu_custom_call.1} parent=11 // pred_fallthru
          _
        // Predicated region
        $region25: #{tpu_custom_call.1} parent=11 // pred_check
          %p218 = pneg %p126
        $region26: #{tpu_custom_call.1} parent=11 // pred_check_branch
          %220 = sbr.rel (%p218) target = $region28
        $region27: #{tpu_custom_call.1} parent=11 // pred_region
          _
        $region28: #{tpu_custom_call.1} parent=11 // pred_fallthru
          _
        // Predicated region
        $region29: #{tpu_custom_call.1} parent=11 // pred_check
          %p221 = pneg %p147
        $region30: #{tpu_custom_call.1} parent=11 // pred_check_branch
          %223 = sbr.rel (%p221) target = $region32
        $region31: #{tpu_custom_call.1} parent=11 // pred_region
          _
        $region32: #{tpu_custom_call.1} parent=11 // pred_fallthru
          _
        // Predicated region
        $region33: #{tpu_custom_call.1} parent=11 // pred_check
          %p224 = pneg %p168
        $region34: #{tpu_custom_call.1} parent=11 // pred_check_branch
          %226 = sbr.rel (%p224) target = $region36
        $region35: #{tpu_custom_call.1} parent=11 // pred_region
          _
        $region36: #{tpu_custom_call.1} parent=11 // pred_fallthru
          _
      $region12: #{tpu_custom_call.1} parent=5 // pred_fallthru
        _
      %p227 = scmp.lt.s32.totalorder %s16, 2
      // Predicated region
      $region37: #{tpu_custom_call.1} parent=5 // pred_check
        %p228 = pneg %p227
      $region38: #{tpu_custom_call.1} parent=5 // pred_check_branch
        %230 = sbr.rel (%p228) target = $region40
      $region39: #{tpu_custom_call.1} parent=5 // pred_region
        // Predicated region
        $region41: #{tpu_custom_call.1} parent=39 // pred_check
          %p231 = pneg %p36
        $region42: #{tpu_custom_call.1} parent=39 // pred_check_branch
          %233 = sbr.rel (%p231) target = $region44
        $region43: #{tpu_custom_call.1} parent=39 // pred_region
          %p234 = scmp.lt.s32.totalorder %s16, 1
          %s235 = scalar_select %p234, %s16, 1
          %s236 = smul.addr %s235, 32
          %s237 = smul.addr %s236, 8
          %s238 = scalar_lea.vmem %s0, %s237
        $region44: #{tpu_custom_call.1} parent=39 // pred_fallthru
          _
      $region40: #{tpu_custom_call.1} parent=5 // pred_fallthru
        _
      %p239 = scmp.le.s32.totalorder 1, %s16
      %p240 = scmp.lt.s32.totalorder %s16, 3
      %p241 = pnand %p239, %p240
      %p242 = pneg %p241
      // Predicated region
      $region45: #{tpu_custom_call.1} parent=5 // pred_check
        _
      $region46: #{tpu_custom_call.1} parent=5 // pred_check_branch
        %244 = sbr.rel (%p241) target = $region48
      $region47: #{tpu_custom_call.1} parent=5 // pred_region
        %s245 = ssub.s32 %s16, 1
        %p246 = scmp.lt.s32.totalorder %s21, 1
        %s247 = scalar_select %p246, %s21, 1
        %s248 = smul.addr %s247, 32
        %s249 = smul.addr %s248, 8
        %s250 = scalar_lea.vmem %s0, %s249
        %p251 = pneg %p42
        %p252 = pneg %p39
        %p253 = pneg %p63
        %p254 = pneg %p60
        %p255 = pneg %p84
        %p256 = pneg %p81
        %p257 = pneg %p105
        %p258 = pneg %p102
        %p259 = pneg %p126
        %p260 = pneg %p123
        %p261 = pneg %p147
        %p262 = pneg %p144
        %p263 = pneg %p168
        %p264 = pneg %p165
        %p265 = pneg %p194
        %p266 = pneg %p191
        %s267 = sand.u32 %s181, 1
        %s268 = scalar_lea.sflag [#allocation4], %s267
        %s269 = sand.u32 %s181, 1
        %s270 = smul.addr %s269, 256
        %s271 = scalar_lea.vmem [#allocation3], %s270
        %p272 = scmp.lt.s32.totalorder %s21, 1
        %s273 = scalar_select %p272, %s21, 1
        %s274 = smul.addr %s273, 32
        %s275 = smul.addr %s274, 8
        %s276 = scalar_lea.vmem %s0, %s275
        %v277 = vld [vmem:[%s276] sm:$0xff]
        %v278 = vld [vmem:[%s276 + $0x8] sm:$0xff]
        %v279 = vld [vmem:[%s276 + $0x10] sm:$0xff]
        %v280 = vld [vmem:[%s276 + $0x18] sm:$0xff]
        %v281 = vld [vmem:[%s276 + $0x20] sm:$0xff]
        %v282 = vld [vmem:[%s276 + $0x28] sm:$0xff]
        %v283 = vld [vmem:[%s276 + $0x30] sm:$0xff]
        %v284 = vld [vmem:[%s276 + $0x38] sm:$0xff]
        %v285 = vld [vmem:[%s276 + $0x40] sm:$0xff]
        %v286 = vld [vmem:[%s276 + $0x48] sm:$0xff]
        %v287 = vld [vmem:[%s276 + $0x50] sm:$0xff]
        %v288 = vld [vmem:[%s276 + $0x58] sm:$0xff]
        %v289 = vld [vmem:[%s276 + $0x60] sm:$0xff]
        %v290 = vld [vmem:[%s276 + $0x68] sm:$0xff]
        %v291 = vld [vmem:[%s276 + $0x70] sm:$0xff]
        %v292 = vld [vmem:[%s276 + $0x78] sm:$0xff]
        %v293 = vld [vmem:[%s276 + $0x80] sm:$0xff]
        %v294 = vld [vmem:[%s276 + $0x88] sm:$0xff]
        %v295 = vld [vmem:[%s276 + $0x90] sm:$0xff]
        %v296 = vld [vmem:[%s276 + $0x98] sm:$0xff]
        %v297 = vld [vmem:[%s276 + $0xa0] sm:$0xff]
        %v298 = vld [vmem:[%s276 + $0xa8] sm:$0xff]
        %v299 = vld [vmem:[%s276 + $0xb0] sm:$0xff]
        %v300 = vld [vmem:[%s276 + $0xb8] sm:$0xff]
        %v301 = vld [vmem:[%s276 + $0xc0] sm:$0xff]
        %v302 = vld [vmem:[%s276 + $0xc8] sm:$0xff]
        %v303 = vld [vmem:[%s276 + $0xd0] sm:$0xff]
        %v304 = vld [vmem:[%s276 + $0xd8] sm:$0xff]
        %v305 = vld [vmem:[%s276 + $0xe0] sm:$0xff]
        %v306 = vld [vmem:[%s276 + $0xe8] sm:$0xff]
        %v307 = vld [vmem:[%s276 + $0xf0] sm:$0xff]
        %v308 = vld [vmem:[%s276 + $0xf8] sm:$0xff]
        %v309 = vld [vmem:[%s1] sm:$0xf]
        %v310 = vld [vmem:[%s2] sm:$0x1]
        %v312 = vlaneseq
        %v313 = vshrl.u32 %v312, 7
        %v314 = vsub.s32 0, %v313
        %v315 = vrot.slane %v310, %v314
        %vm317 = vcmask 31744
        %v319 = vsel %vm317, %v277, 0
        %v322 = vsel %vm317, %v278, 0
        %v325 = vsel %vm317, %v279, 0
        %v328 = vsel %vm317, %v280, 0
        %v331 = vsel %vm317, %v281, 0
        %v334 = vsel %vm317, %v282, 0
        %v337 = vsel %vm317, %v283, 0
        %v340 = vsel %vm317, %v284, 0
        %v343 = vsel %vm317, %v285, 0
        %v346 = vsel %vm317, %v286, 0
        %v349 = vsel %vm317, %v287, 0
        %v352 = vsel %vm317, %v288, 0
        %v355 = vsel %vm317, %v289, 0
        %v358 = vsel %vm317, %v290, 0
        %v361 = vsel %vm317, %v291, 0
        %v364 = vsel %vm317, %v292, 0
        %v367 = vsel %vm317, %v293, 0
        %v370 = vsel %vm317, %v294, 0
        %v373 = vsel %vm317, %v295, 0
        %v376 = vsel %vm317, %v296, 0
        %v379 = vsel %vm317, %v297, 0
        %v382 = vsel %vm317, %v298, 0
        %v385 = vsel %vm317, %v299, 0
        %v388 = vsel %vm317, %v300, 0
        %v391 = vsel %vm317, %v301, 0
        %v394 = vsel %vm317, %v302, 0
        %v397 = vsel %vm317, %v303, 0
        %v400 = vsel %vm317, %v304, 0
        %v403 = vsel %vm317, %v305, 0
        %v406 = vsel %vm317, %v306, 0
        %v409 = vsel %vm317, %v307, 0
        %v412 = vsel %vm317, %v308, 0
        %vm414 = vcmask 1043456
        %v416 = vsel %vm414, %v309, 0
        %418 = vmatprep.subr.mxu0 0.0
        %419 = vmatpush1.msra.mxu0 %v416
        %420 = vmatprep.subr.mxu0 0.0
        %421 = vmatpush1.msra.mxu0 0.0
        %422 = vmatprep.subr.mxu0 0.0
        %423 = vmatpush1.msra.mxu0 0.0
        %424 = vmatprep.subr.mxu0 0.0
        %425 = vmatpush1.msra.mxu0 0.0
        %426 = vmatprep.subr.mxu0 0.0
        %427 = vmatpush1.msra.mxu0 0.0
        %428 = vmatprep.subr.mxu0 0.0
        %429 = vmatpush1.msra.mxu0 0.0
        %430 = vmatprep.subr.mxu0 0.0
        %431 = vmatpush1.msra.mxu0 0.0
        %432 = vmatprep.subr.mxu0 0.0
        %433 = vmatpush1.msra.mxu0 0.0
        %434 = vmatprep.subr.mxu0 0.0
        %435 = vmatpush1.msra.mxu0 0.0
        %436 = vmatprep.subr.mxu0 0.0
        %437 = vmatpush1.msra.mxu0 0.0
        %438 = vmatprep.subr.mxu0 0.0
        %439 = vmatpush1.msra.mxu0 0.0
        %440 = vmatprep.subr.mxu0 0.0
        %441 = vmatpush1.msra.mxu0 0.0
        %442 = vmatprep.subr.mxu0 0.0
        %443 = vmatpush1.msra.mxu0 0.0
        %444 = vmatprep.subr.mxu0 0.0
        %445 = vmatpush1.msra.mxu0 0.0
        %446 = vmatprep.subr.mxu0 0.0
        %447 = vmatpush1.msra.mxu0 0.0
        %448 = vmatprep.subr.mxu0 0.0
        %449 = vmatpush1.msra.mxu0 0.0
        %450 = vmatprep.subr.mxu0 0.0
        %451 = vmatpush1.msra.mxu0 0.0
        %452 = vmatprep.subr.mxu0 0.0
        %453 = vmatpush1.msra.mxu0 0.0
        %454 = vmatprep.subr.mxu0 0.0
        %455 = vmatpush1.msra.mxu0 0.0
        %456 = vmatprep.subr.mxu0 0.0
        %457 = vmatpush1.msra.mxu0 0.0
        %458 = vmatprep.subr.mxu0 0.0
        %459 = vmatpush1.msra.mxu0 0.0
        %460 = vmatprep.subr.mxu0 0.0
        %461 = vmatpush1.msra.mxu0 0.0
        %462 = vmatprep.subr.mxu0 0.0
        %463 = vmatpush1.msra.mxu0 0.0
        %464 = vmatprep.subr.mxu0 0.0
        %465 = vmatpush1.msra.mxu0 0.0
        %466 = vmatprep.subr.mxu0 0.0
        %467 = vmatpush1.msra.mxu0 0.0
        %468 = vmatprep.subr.mxu0 0.0
        %469 = vmatpush1.msra.mxu0 0.0
        %470 = vmatprep.subr.mxu0 0.0
        %471 = vmatpush1.msra.mxu0 0.0
        %472 = vmatprep.subr.mxu0 0.0
        %473 = vmatpush1.msra.mxu0 0.0
        %474 = vmatprep.subr.mxu0 0.0
        %475 = vmatpush1.msra.mxu0 0.0
        %476 = vmatprep.subr.mxu0 0.0
        %477 = vmatpush1.msra.mxu0 0.0
        %478 = vmatprep.subr.mxu0 0.0
        %479 = vmatpush1.msra.mxu0 0.0
        %480 = vmatprep.subr.mxu0 0.0
        %481 = vmatpush1.msra.mxu0 0.0
        %482 = vmatprep.mubr.f32.mxu0 0.0
        %483 = vmatmul.mubr.f32.gmra.mrb[0].mxu0 %v319
        %v484 = vpop.f32.mrb[0].mxu0
        %v485 = vadd.f32 %v315, %v484
        %v486 = vpop.f32.mrb[0].mxu0
        %487 = vmatprep.mubr.f32.mxu0 0.0
        %488 = vmatmul.mubr.f32.gmra.mrb[0].mxu0 %v322
        %v489 = vpop.f32.mrb[0].mxu0
        %v490 = vadd.f32 %v315, %v489
        %v491 = vpop.f32.mrb[0].mxu0
        %492 = vmatprep.mubr.f32.mxu0 0.0
        %493 = vmatmul.mubr.f32.gmra.mrb[0].mxu0 %v325
        %v494 = vpop.f32.mrb[0].mxu0
        %v495 = vadd.f32 %v315, %v494
        %v496 = vpop.f32.mrb[0].mxu0
        %497 = vmatprep.mubr.f32.mxu0 0.0
        %498 = vmatmul.mubr.f32.gmra.mrb[0].mxu0 %v328
        %v499 = vpop.f32.mrb[0].mxu0
        %v500 = vadd.f32 %v315, %v499
        %v501 = vpop.f32.mrb[0].mxu0
        %502 = vmatprep.mubr.f32.mxu0 0.0
        %503 = vmatmul.mubr.f32.gmra.mrb[0].mxu0 %v331
        %v504 = vpop.f32.mrb[0].mxu0
        %v505 = vadd.f32 %v315, %v504
        %v506 = vpop.f32.mrb[0].mxu0
        %507 = vmatprep.mubr.f32.mxu0 0.0
        %508 = vmatmul.mubr.f32.gmra.mrb[0].mxu0 %v334
        %v509 = vpop.f32.mrb[0].mxu0
        %v510 = vadd.f32 %v315, %v509
        %v511 = vpop.f32.mrb[0].mxu0
        %512 = vmatprep.mubr.f32.mxu0 0.0
        %513 = vmatmul.mubr.f32.gmra.mrb[0].mxu0 %v337
        %v514 = vpop.f32.mrb[0].mxu0
        %v515 = vadd.f32 %v315, %v514
        %v516 = vpop.f32.mrb[0].mxu0
        %517 = vmatprep.mubr.f32.mxu0 0.0
        %518 = vmatmul.mubr.f32.gmra.mrb[0].mxu0 %v340
        %v519 = vpop.f32.mrb[0].mxu0
        %v520 = vadd.f32 %v315, %v519
        %v521 = vpop.f32.mrb[0].mxu0
        %522 = vmatprep.mubr.f32.mxu0 0.0
        %523 = vmatmul.mubr.f32.gmra.mrb[0].mxu0 %v343
        %v524 = vpop.f32.mrb[0].mxu0
        %v525 = vadd.f32 %v315, %v524
        %v526 = vpop.f32.mrb[0].mxu0
        %527 = vmatprep.mubr.f32.mxu0 0.0
        %528 = vmatmul.mubr.f32.gmra.mrb[0].mxu0 %v346
        %v529 = vpop.f32.mrb[0].mxu0
        %v530 = vadd.f32 %v315, %v529
        %v531 = vpop.f32.mrb[0].mxu0
        %532 = vmatprep.mubr.f32.mxu0 0.0
        %533 = vmatmul.mubr.f32.gmra.mrb[0].mxu0 %v349
        %v534 = vpop.f32.mrb[0].mxu0
        %v535 = vadd.f32 %v315, %v534
        %v536 = vpop.f32.mrb[0].mxu0
        %537 = vmatprep.mubr.f32.mxu0 0.0
        %538 = vmatmul.mubr.f32.gmra.mrb[0].mxu0 %v352
        %v539 = vpop.f32.mrb[0].mxu0
        %v540 = vadd.f32 %v315, %v539
        %v541 = vpop.f32.mrb[0].mxu0
        %542 = vmatprep.mubr.f32.mxu0 0.0
        %543 = vmatmul.mubr.f32.gmra.mrb[0].mxu0 %v355
        %v544 = vpop.f32.mrb[0].mxu0
        %v545 = vadd.f32 %v315, %v544
        %v546 = vpop.f32.mrb[0].mxu0
        %547 = vmatprep.mubr.f32.mxu0 0.0
        %548 = vmatmul.mubr.f32.gmra.mrb[0].mxu0 %v358
        %v549 = vpop.f32.mrb[0].mxu0
        %v550 = vadd.f32 %v315, %v549
        %v551 = vpop.f32.mrb[0].mxu0
        %552 = vmatprep.mubr.f32.mxu0 0.0
        %553 = vmatmul.mubr.f32.gmra.mrb[0].mxu0 %v361
        %v554 = vpop.f32.mrb[0].mxu0
        %v555 = vadd.f32 %v315, %v554
        %v556 = vpop.f32.mrb[0].mxu0
        %557 = vmatprep.mubr.f32.mxu0 0.0
        %558 = vmatmul.mubr.f32.gmra.mrb[0].mxu0 %v364
        %v559 = vpop.f32.mrb[0].mxu0
        %v560 = vadd.f32 %v315, %v559
        %v561 = vpop.f32.mrb[0].mxu0
        %562 = vmatprep.mubr.f32.mxu0 0.0
        %563 = vmatmul.mubr.f32.gmra.mrb[0].mxu0 %v367
        %v564 = vpop.f32.mrb[0].mxu0
        %v565 = vadd.f32 %v315, %v564
        %v566 = vpop.f32.mrb[0].mxu0
        %567 = vmatprep.mubr.f32.mxu0 0.0
        %568 = vmatmul.mubr.f32.gmra.mrb[0].mxu0 %v370
        %v569 = vpop.f32.mrb[0].mxu0
        %v570 = vadd.f32 %v315, %v569
        %v571 = vpop.f32.mrb[0].mxu0
        %572 = vmatprep.mubr.f32.mxu0 0.0
        %573 = vmatmul.mubr.f32.gmra.mrb[0].mxu0 %v373
        %v574 = vpop.f32.mrb[0].mxu0
        %v575 = vadd.f32 %v315, %v574
        %v576 = vpop.f32.mrb[0].mxu0
        %577 = vmatprep.mubr.f32.mxu0 0.0
        %578 = vmatmul.mubr.f32.gmra.mrb[0].mxu0 %v376
        %v579 = vpop.f32.mrb[0].mxu0
        %v580 = vadd.f32 %v315, %v579
        %v581 = vpop.f32.mrb[0].mxu0
        %582 = vmatprep.mubr.f32.mxu0 0.0
        %583 = vmatmul.mubr.f32.gmra.mrb[0].mxu0 %v379
        %v584 = vpop.f32.mrb[0].mxu0
        %v585 = vadd.f32 %v315, %v584
        %v586 = vpop.f32.mrb[0].mxu0
        %587 = vmatprep.mubr.f32.mxu0 0.0
        %588 = vmatmul.mubr.f32.gmra.mrb[0].mxu0 %v382
        %v589 = vpop.f32.mrb[0].mxu0
        %v590 = vadd.f32 %v315, %v589
        %v591 = vpop.f32.mrb[0].mxu0
        %592 = vmatprep.mubr.f32.mxu0 0.0
        %593 = vmatmul.mubr.f32.gmra.mrb[0].mxu0 %v385
        %v594 = vpop.f32.mrb[0].mxu0
        %v595 = vadd.f32 %v315, %v594
        %v596 = vpop.f32.mrb[0].mxu0
        %597 = vmatprep.mubr.f32.mxu0 0.0
        %598 = vmatmul.mubr.f32.gmra.mrb[0].mxu0 %v388
        %v599 = vpop.f32.mrb[0].mxu0
        %v600 = vadd.f32 %v315, %v599
        %v601 = vpop.f32.mrb[0].mxu0
        %602 = vmatprep.mubr.f32.mxu0 0.0
        %603 = vmatmul.mubr.f32.gmra.mrb[0].mxu0 %v391
        %v604 = vpop.f32.mrb[0].mxu0
        %v605 = vadd.f32 %v315, %v604
        %v606 = vpop.f32.mrb[0].mxu0
        %607 = vmatprep.mubr.f32.mxu0 0.0
        %608 = vmatmul.mubr.f32.gmra.mrb[0].mxu0 %v394
        %v609 = vpop.f32.mrb[0].mxu0
        %v610 = vadd.f32 %v315, %v609
        %v611 = vpop.f32.mrb[0].mxu0
        %612 = vmatprep.mubr.f32.mxu0 0.0
        %613 = vmatmul.mubr.f32.gmra.mrb[0].mxu0 %v397
        %v614 = vpop.f32.mrb[0].mxu0
        %v615 = vadd.f32 %v315, %v614
        %v616 = vpop.f32.mrb[0].mxu0
        %617 = vmatprep.mubr.f32.mxu0 0.0
        %618 = vmatmul.mubr.f32.gmra.mrb[0].mxu0 %v400
        %v619 = vpop.f32.mrb[0].mxu0
        %v620 = vadd.f32 %v315, %v619
        %v621 = vpop.f32.mrb[0].mxu0
        %622 = vmatprep.mubr.f32.mxu0 0.0
        %623 = vmatmul.mubr.f32.gmra.mrb[0].mxu0 %v403
        %v624 = vpop.f32.mrb[0].mxu0
        %v625 = vadd.f32 %v315, %v624
        %v626 = vpop.f32.mrb[0].mxu0
        %627 = vmatprep.mubr.f32.mxu0 0.0
        %628 = vmatmul.mubr.f32.gmra.mrb[0].mxu0 %v406
        %v629 = vpop.f32.mrb[0].mxu0
        %v630 = vadd.f32 %v315, %v629
        %v631 = vpop.f32.mrb[0].mxu0
        %632 = vmatprep.mubr.f32.mxu0 0.0
        %633 = vmatmul.mubr.f32.gmra.mrb[0].mxu0 %v409
        %v634 = vpop.f32.mrb[0].mxu0
        %v635 = vadd.f32 %v315, %v634
        %v636 = vpop.f32.mrb[0].mxu0
        %637 = vmatprep.mubr.f32.mxu0 0.0
        %638 = vmatmul.mubr.f32.gmra.mrb[0].mxu0 %v412
        %v639 = vpop.f32.mrb[0].mxu0
        %v640 = vadd.f32 %v315, %v639
        %v641 = vpop.f32.mrb[0].mxu0
        %642 = vdwg.mxu0
        %v643 = vmax.f32 %v485, 0.0
        %v644 = vmax.f32 %v490, 0.0
        %v645 = vmax.f32 %v495, 0.0
        %v646 = vmax.f32 %v500, 0.0
        %v647 = vmax.f32 %v505, 0.0
        %v648 = vmax.f32 %v510, 0.0
        %v649 = vmax.f32 %v515, 0.0
        %v650 = vmax.f32 %v520, 0.0
        %v651 = vmax.f32 %v525, 0.0
        %v652 = vmax.f32 %v530, 0.0
        %v653 = vmax.f32 %v535, 0.0
        %v654 = vmax.f32 %v540, 0.0
        %v655 = vmax.f32 %v545, 0.0
        %v656 = vmax.f32 %v550, 0.0
        %v657 = vmax.f32 %v555, 0.0
        %v658 = vmax.f32 %v560, 0.0
        %v659 = vmax.f32 %v565, 0.0
        %v660 = vmax.f32 %v570, 0.0
        %v661 = vmax.f32 %v575, 0.0
        %v662 = vmax.f32 %v580, 0.0
        %v663 = vmax.f32 %v585, 0.0
        %v664 = vmax.f32 %v590, 0.0
        %v665 = vmax.f32 %v595, 0.0
        %v666 = vmax.f32 %v600, 0.0
        %v667 = vmax.f32 %v605, 0.0
        %v668 = vmax.f32 %v610, 0.0
        %v669 = vmax.f32 %v615, 0.0
        %v670 = vmax.f32 %v620, 0.0
        %v671 = vmax.f32 %v625, 0.0
        %v672 = vmax.f32 %v630, 0.0
        %v673 = vmax.f32 %v635, 0.0
        %v674 = vmax.f32 %v640, 0.0
        %s675 = scalar_lea.vmem [#allocation2], 24
        %vm676 = vcmask 64512
        %677 = vst.msk [vmem:[%s675 + $0x1] sm:$0xff] %vm676, %v643
        %678 = vst.msk [vmem:[%s675 + $0x9] sm:$0xff] %vm676, %v644
        %679 = vst.msk [vmem:[%s675 + $0x19] sm:$0xff] %vm676, %v645
        %680 = vst.msk [vmem:[%s675 + $0x21] sm:$0xff] %vm676, %v646
        %681 = vst.msk [vmem:[%s675 + $0x31] sm:$0xff] %vm676, %v647
        %682 = vst.msk [vmem:[%s675 + $0x39] sm:$0xff] %vm676, %v648
        %683 = vst.msk [vmem:[%s675 + $0x49] sm:$0xff] %vm676, %v649
        %684 = vst.msk [vmem:[%s675 + $0x51] sm:$0xff] %vm676, %v650
        %685 = vst.msk [vmem:[%s675 + $0x61] sm:$0xff] %vm676, %v651
        %686 = vst.msk [vmem:[%s675 + $0x69] sm:$0xff] %vm676, %v652
        %687 = vst.msk [vmem:[%s675 + $0x79] sm:$0xff] %vm676, %v653
        %688 = vst.msk [vmem:[%s675 + $0x81] sm:$0xff] %vm676, %v654
        %689 = vst.msk [vmem:[%s675 + $0x91] sm:$0xff] %vm676, %v655
        %690 = vst.msk [vmem:[%s675 + $0x99] sm:$0xff] %vm676, %v656
        %691 = vst.msk [vmem:[%s675 + $0xa9] sm:$0xff] %vm676, %v657
        %692 = vst.msk [vmem:[%s675 + $0xb1] sm:$0xff] %vm676, %v658
        %693 = vst.msk [vmem:[%s675 + $0xc1] sm:$0xff] %vm676, %v659
        %694 = vst.msk [vmem:[%s675 + $0xc9] sm:$0xff] %vm676, %v660
        %695 = vst.msk [vmem:[%s675 + $0xd9] sm:$0xff] %vm676, %v661
        %696 = vst.msk [vmem:[%s675 + $0xe1] sm:$0xff] %vm676, %v662
        %697 = vst.msk [vmem:[%s675 + $0xf1] sm:$0xff] %vm676, %v663
        %698 = vst.msk [vmem:[%s675 + $0xf9] sm:$0xff] %vm676, %v664
        %699 = vst.msk [vmem:[%s675 + $0x109] sm:$0xff] %vm676, %v665
        %700 = vst.msk [vmem:[%s675 + $0x111] sm:$0xff] %vm676, %v666
        %701 = vst.msk [vmem:[%s675 + $0x121] sm:$0xff] %vm676, %v667
        %702 = vst.msk [vmem:[%s675 + $0x129] sm:$0xff] %vm676, %v668
        %703 = vst.msk [vmem:[%s675 + $0x139] sm:$0xff] %vm676, %v669
        %704 = vst.msk [vmem:[%s675 + $0x141] sm:$0xff] %vm676, %v670
        %705 = vst.msk [vmem:[%s675 + $0x151] sm:$0xff] %vm676, %v671
        %706 = vst.msk [vmem:[%s675 + $0x159] sm:$0xff] %vm676, %v672
        %707 = vst.msk [vmem:[%s675 + $0x169] sm:$0xff] %vm676, %v673
        %708 = vst.msk [vmem:[%s675 + $0x171] sm:$0xff] %vm676, %v674
        %709 = vst.msk [vmem:[#allocation2] sm:$0xff] %vm676, 0.0
        %710 = vst.msk [vmem:[#allocation2 + $0x8] sm:$0xff] %vm676, 0.0
        %vm711 = vcmask 58368
        %712 = vst.msk [vmem:[#allocation2 + $0x10] sm:$0x3] %vm711, 0.0
        %s713 = scalar_lea.vmem [#allocation2], 408
        %714 = vst.msk [vmem:[%s713] sm:$0xff] %vm676, 0.0
        %715 = vst.msk [vmem:[%s713 + $0x8] sm:$0xff] %vm676, 0.0
        %716 = vst.msk [vmem:[%s713 + $0x10] sm:$0x3] %vm711, 0.0
        %vm717 = vcmask 57344
        %718 = vst.msk [vmem:[#allocation2] sm:$0x1] %vm717, 0.0
        %719 = vst.msk [vmem:[#allocation2 + $0x18] sm:$0x1] %vm717, 0.0
        %720 = vst.msk [vmem:[#allocation2 + $0x30] sm:$0x1] %vm717, 0.0
        %721 = vst.msk [vmem:[#allocation2 + $0x48] sm:$0x1] %vm717, 0.0
        %722 = vst.msk [vmem:[#allocation2 + $0x60] sm:$0x1] %vm717, 0.0
        %723 = vst.msk [vmem:[#allocation2 + $0x78] sm:$0x1] %vm717, 0.0
        %724 = vst.msk [vmem:[#allocation2 + $0x90] sm:$0x1] %vm717, 0.0
        %725 = vst.msk [vmem:[#allocation2 + $0xa8] sm:$0x1] %vm717, 0.0
        %726 = vst.msk [vmem:[#allocation2 + $0xc0] sm:$0x1] %vm717, 0.0
        %727 = vst.msk [vmem:[#allocation2 + $0xd8] sm:$0x1] %vm717, 0.0
        %728 = vst.msk [vmem:[#allocation2 + $0xf0] sm:$0x1] %vm717, 0.0
        %729 = vst.msk [vmem:[#allocation2 + $0x108] sm:$0x1] %vm717, 0.0
        %730 = vst.msk [vmem:[#allocation2 + $0x120] sm:$0x1] %vm717, 0.0
        %731 = vst.msk [vmem:[#allocation2 + $0x138] sm:$0x1] %vm717, 0.0
        %732 = vst.msk [vmem:[#allocation2 + $0x150] sm:$0x1] %vm717, 0.0
        %733 = vst.msk [vmem:[#allocation2 + $0x168] sm:$0x1] %vm717, 0.0
        %734 = vst.msk [vmem:[#allocation2 + $0x180] sm:$0x1] %vm717, 0.0
        %735 = vst.msk [vmem:[#allocation2 + $0x198] sm:$0x1] %vm717, 0.0
        %736 = vst.msk [vmem:[#allocation2 + $0x11] sm:$0x1] %vm717, 0.0
        %737 = vst.msk [vmem:[#allocation2 + $0x29] sm:$0x1] %vm717, 0.0
        %738 = vst.msk [vmem:[#allocation2 + $0x41] sm:$0x1] %vm717, 0.0
        %739 = vst.msk [vmem:[#allocation2 + $0x59] sm:$0x1] %vm717, 0.0
        %740 = vst.msk [vmem:[#allocation2 + $0x71] sm:$0x1] %vm717, 0.0
        %741 = vst.msk [vmem:[#allocation2 + $0x89] sm:$0x1] %vm717, 0.0
        %742 = vst.msk [vmem:[#allocation2 + $0xa1] sm:$0x1] %vm717, 0.0
        %743 = vst.msk [vmem:[#allocation2 + $0xb9] sm:$0x1] %vm717, 0.0
        %744 = vst.msk [vmem:[#allocation2 + $0xd1] sm:$0x1] %vm717, 0.0
        %745 = vst.msk [vmem:[#allocation2 + $0xe9] sm:$0x1] %vm717, 0.0
        %746 = vst.msk [vmem:[#allocation2 + $0x101] sm:$0x1] %vm717, 0.0
        %747 = vst.msk [vmem:[#allocation2 + $0x119] sm:$0x1] %vm717, 0.0
        %748 = vst.msk [vmem:[#allocation2 + $0x131] sm:$0x1] %vm717, 0.0
        %749 = vst.msk [vmem:[#allocation2 + $0x149] sm:$0x1] %vm717, 0.0
        %750 = vst.msk [vmem:[#allocation2 + $0x161] sm:$0x1] %vm717, 0.0
        %751 = vst.msk [vmem:[#allocation2 + $0x179] sm:$0x1] %vm717, 0.0
        %752 = vst.msk [vmem:[#allocation2 + $0x191] sm:$0x1] %vm717, 0.0
        %753 = vst.msk [vmem:[#allocation2 + $0x1a9] sm:$0x1] %vm717, 0.0
        %v754 = vld [vmem:[%s3] sm:$0xff]
        %v755 = vld [vmem:[%s3 + $0x8] sm:$0xff]
        %v756 = vld [vmem:[%s3 + $0x10] sm:$0xff]
        %v757 = vld [vmem:[#allocation2] sm:$0xff]
        %v758 = vld [vmem:[#allocation2 + $0x8] sm:$0xff]
        %v759 = vld [vmem:[#allocation2 + $0x18] sm:$0xff]
        %v760 = vld [vmem:[#allocation2 + $0x20] sm:$0xff]
        %v761 = vld [vmem:[#allocation2 + $0x30] sm:$0xff]
        %v762 = vld [vmem:[#allocation2 + $0x38] sm:$0xff]
        %v763 = vld [vmem:[#allocation2 + $0x48] sm:$0xff]
        %v764 = vld [vmem:[#allocation2 + $0x50] sm:$0xff]
        %v765 = vld [vmem:[#allocation2 + $0x60] sm:$0xff]
        %v766 = vld [vmem:[#allocation2 + $0x68] sm:$0xff]
        %v767 = vld [vmem:[#allocation2 + $0x78] sm:$0xff]
        %v768 = vld [vmem:[#allocation2 + $0x80] sm:$0xff]
        %v769 = vld [vmem:[#allocation2 + $0x90] sm:$0xff]
        %v770 = vld [vmem:[#allocation2 + $0x98] sm:$0xff]
        %v771 = vld [vmem:[#allocation2 + $0xa8] sm:$0xff]
        %v772 = vld [vmem:[#allocation2 + $0xb0] sm:$0xff]
        %v773 = vld [vmem:[#allocation2 + $0xc0] sm:$0xff]
        %v774 = vld [vmem:[#allocation2 + $0xc8] sm:$0xff]
        %v775 = vld [vmem:[#allocation2 + $0xd8] sm:$0xff]
        %v776 = vld [vmem:[#allocation2 + $0xe0] sm:$0xff]
        %v777 = vld [vmem:[#allocation2 + $0xf0] sm:$0xff]
        %v778 = vld [vmem:[#allocation2 + $0xf8] sm:$0xff]
        %v779 = vld [vmem:[#allocation2 + $0x108] sm:$0xff]
        %v780 = vld [vmem:[#allocation2 + $0x110] sm:$0xff]
        %v781 = vld [vmem:[#allocation2 + $0x120] sm:$0xff]
        %v782 = vld [vmem:[#allocation2 + $0x128] sm:$0xff]
        %v783 = vld [vmem:[#allocation2 + $0x138] sm:$0xff]
        %v784 = vld [vmem:[#allocation2 + $0x140] sm:$0xff]
        %v785 = vld [vmem:[#allocation2 + $0x150] sm:$0xff]
        %v786 = vld [vmem:[#allocation2 + $0x158] sm:$0xff]
        %v787 = vld [vmem:[#allocation2 + $0x168] sm:$0xff]
        %v788 = vld [vmem:[#allocation2 + $0x170] sm:$0xff]
        %v789 = vld [vmem:[#allocation2 + $0x1] sm:$0xff]
        %v790 = vld [vmem:[#allocation2 + $0x9] sm:$0xff]
        %v791 = vld [vmem:[#allocation2 + $0x19] sm:$0xff]
        %v792 = vld [vmem:[#allocation2 + $0x21] sm:$0xff]
        %v793 = vld [vmem:[#allocation2 + $0x31] sm:$0xff]
        %v794 = vld [vmem:[#allocation2 + $0x39] sm:$0xff]
        %v795 = vld [vmem:[#allocation2 + $0x49] sm:$0xff]
        %v796 = vld [vmem:[#allocation2 + $0x51] sm:$0xff]
        %v797 = vld [vmem:[#allocation2 + $0x61] sm:$0xff]
        %v798 = vld [vmem:[#allocation2 + $0x69] sm:$0xff]
        %v799 = vld [vmem:[#allocation2 + $0x79] sm:$0xff]
        %v800 = vld [vmem:[#allocation2 + $0x81] sm:$0xff]
        %v801 = vld [vmem:[#allocation2 + $0x91] sm:$0xff]
        %v802 = vld [vmem:[#allocation2 + $0x99] sm:$0xff]
        %v803 = vld [vmem:[#allocation2 + $0xa9] sm:$0xff]
        %v804 = vld [vmem:[#allocation2 + $0xb1] sm:$0xff]
        %v805 = vld [vmem:[#allocation2 + $0xc1] sm:$0xff]
        %v806 = vld [vmem:[#allocation2 + $0xc9] sm:$0xff]
        %v807 = vld [vmem:[#allocation2 + $0xd9] sm:$0xff]
        %v808 = vld [vmem:[#allocation2 + $0xe1] sm:$0xff]
        %v809 = vld [vmem:[#allocation2 + $0xf1] sm:$0xff]
        %v810 = vld [vmem:[#allocation2 + $0xf9] sm:$0xff]
        %v811 = vld [vmem:[#allocation2 + $0x109] sm:$0xff]
        %v812 = vld [vmem:[#allocation2 + $0x111] sm:$0xff]
        %v813 = vld [vmem:[#allocation2 + $0x121] sm:$0xff]
        %v814 = vld [vmem:[#allocation2 + $0x129] sm:$0xff]
        %v815 = vld [vmem:[#allocation2 + $0x139] sm:$0xff]
        %v816 = vld [vmem:[#allocation2 + $0x141] sm:$0xff]
        %v817 = vld [vmem:[#allocation2 + $0x151] sm:$0xff]
        %v818 = vld [vmem:[#allocation2 + $0x159] sm:$0xff]
        %v819 = vld [vmem:[#allocation2 + $0x169] sm:$0xff]
        %v820 = vld [vmem:[#allocation2 + $0x171] sm:$0xff]
        %v822 = vsel %vm676, %v789, 0
        %v825 = vsel %vm676, %v790, 0
        %v828 = vsel %vm676, %v791, 0
        %v831 = vsel %vm676, %v792, 0
        %v834 = vsel %vm676, %v793, 0
        %v837 = vsel %vm676, %v794, 0
        %v840 = vsel %vm676, %v795, 0
        %v843 = vsel %vm676, %v796, 0
        %v846 = vsel %vm676, %v797, 0
        %v849 = vsel %vm676, %v798, 0
        %v852 = vsel %vm676, %v799, 0
        %v855 = vsel %vm676, %v800, 0
        %v858 = vsel %vm676, %v801, 0
        %v861 = vsel %vm676, %v802, 0
        %v864 = vsel %vm676, %v803, 0
        %v867 = vsel %vm676, %v804, 0
        %v870 = vsel %vm676, %v805, 0
        %v873 = vsel %vm676, %v806, 0
        %v876 = vsel %vm676, %v807, 0
        %v879 = vsel %vm676, %v808, 0
        %v882 = vsel %vm676, %v809, 0
        %v885 = vsel %vm676, %v810, 0
        %v888 = vsel %vm676, %v811, 0
        %v891 = vsel %vm676, %v812, 0
        %v894 = vsel %vm676, %v813, 0
        %v897 = vsel %vm676, %v814, 0
        %v900 = vsel %vm676, %v815, 0
        %v903 = vsel %vm676, %v816, 0
        %v906 = vsel %vm676, %v817, 0
        %v909 = vsel %vm676, %v818, 0
        %v912 = vsel %vm676, %v819, 0
        %v915 = vsel %vm676, %v820, 0
        %917 = vmatprep.subr.mxu0 0.0
        %918 = vmatpush1.msra.mxu0 %v755
        %919 = vmatprep.subr.mxu0 0.0
        %920 = vmatpush1.msra.mxu0 0.0
        %921 = vmatprep.subr.mxu0 0.0
        %922 = vmatpush1.msra.mxu0 0.0
        %923 = vmatprep.subr.mxu0 0.0
        %924 = vmatpush1.msra.mxu0 0.0
        %925 = vmatprep.subr.mxu0 0.0
        %926 = vmatpush1.msra.mxu0 0.0
        %927 = vmatprep.subr.mxu0 0.0
        %928 = vmatpush1.msra.mxu0 0.0
        %929 = vmatprep.subr.mxu0 0.0
        %930 = vmatpush1.msra.mxu0 0.0
        %931 = vmatprep.subr.mxu0 0.0
        %932 = vmatpush1.msra.mxu0 0.0
        %933 = vmatprep.subr.mxu0 0.0
        %934 = vmatpush1.msra.mxu0 0.0
        %935 = vmatprep.subr.mxu0 0.0
        %936 = vmatpush1.msra.mxu0 0.0
        %937 = vmatprep.subr.mxu0 0.0
        %938 = vmatpush1.msra.mxu0 0.0
        %939 = vmatprep.subr.mxu0 0.0
        %940 = vmatpush1.msra.mxu0 0.0
        %941 = vmatprep.subr.mxu0 0.0
        %942 = vmatpush1.msra.mxu0 0.0
        %943 = vmatprep.subr.mxu0 0.0
        %944 = vmatpush1.msra.mxu0 0.0
        %945 = vmatprep.subr.mxu0 0.0
        %946 = vmatpush1.msra.mxu0 0.0
        %947 = vmatprep.subr.mxu0 0.0
        %948 = vmatpush1.msra.mxu0 0.0
        %949 = vmatprep.subr.mxu0 0.0
        %950 = vmatpush1.msra.mxu0 0.0
        %951 = vmatprep.subr.mxu0 0.0
        %952 = vmatpush1.msra.mxu0 0.0
        %953 = vmatprep.subr.mxu0 0.0
        %954 = vmatpush1.msra.mxu0 0.0
        %955 = vmatprep.subr.mxu0 0.0
        %956 = vmatpush1.msra.mxu0 0.0
        %957 = vmatprep.subr.mxu0 0.0
        %958 = vmatpush1.msra.mxu0 0.0
        %959 = vmatprep.subr.mxu0 0.0
        %960 = vmatpush1.msra.mxu0 0.0
        %961 = vmatprep.subr.mxu0 0.0
        %962 = vmatpush1.msra.mxu0 0.0
        %963 = vmatprep.subr.mxu0 0.0
        %964 = vmatpush1.msra.mxu0 0.0
        %965 = vmatprep.subr.mxu0 0.0
        %966 = vmatpush1.msra.mxu0 0.0
        %967 = vmatprep.subr.mxu0 0.0
        %968 = vmatpush1.msra.mxu0 0.0
        %969 = vmatprep.subr.mxu0 0.0
        %970 = vmatpush1.msra.mxu0 0.0
        %971 = vmatprep.subr.mxu0 0.0
        %972 = vmatpush1.msra.mxu0 0.0
        %973 = vmatprep.subr.mxu0 0.0
        %974 = vmatpush1.msra.mxu0 0.0
        %975 = vmatprep.subr.mxu0 0.0
        %976 = vmatpush1.msra.mxu0 0.0
        %977 = vmatprep.subr.mxu0 0.0
        %978 = vmatpush1.msra.mxu0 0.0
        %979 = vmatprep.subr.mxu0 0.0
        %980 = vmatpush1.msra.mxu0 0.0
        %981 = vmatprep.mubr.f32.mxu0 0.0
        %982 = vmatmul.mubr.f32.gmra.mrb[0].mxu0 %v822
        %v983 = vpop.f32.mrb[0].mxu0
        %v984 = vadd.f32 0.0, %v983
        %v985 = vpop.f32.mrb[0].mxu0
        %986 = vmatprep.mubr.f32.mxu0 0.0
        %987 = vmatmul.mubr.f32.gmra.mrb[0].mxu0 %v825
        %v988 = vpop.f32.mrb[0].mxu0
        %v989 = vadd.f32 0.0, %v988
        %v990 = vpop.f32.mrb[0].mxu0
        %991 = vmatprep.mubr.f32.mxu0 0.0
        %992 = vmatmul.mubr.f32.gmra.mrb[0].mxu0 %v828
        %v993 = vpop.f32.mrb[0].mxu0
        %v994 = vadd.f32 0.0, %v993
        %v995 = vpop.f32.mrb[0].mxu0
        %996 = vmatprep.mubr.f32.mxu0 0.0
        %997 = vmatmul.mubr.f32.gmra.mrb[0].mxu0 %v831
        %v998 = vpop.f32.mrb[0].mxu0
        %v999 = vadd.f32 0.0, %v998
        %v1000 = vpop.f32.mrb[0].mxu0
        %1001 = vmatprep.mubr.f32.mxu0 0.0
        %1002 = vmatmul.mubr.f32.gmra.mrb[0].mxu0 %v834
        %v1003 = vpop.f32.mrb[0].mxu0
        %v1004 = vadd.f32 0.0, %v1003
        %v1005 = vpop.f32.mrb[0].mxu0
        %1006 = vmatprep.mubr.f32.mxu0 0.0
        %1007 = vmatmul.mubr.f32.gmra.mrb[0].mxu0 %v837
        %v1008 = vpop.f32.mrb[0].mxu0
        %v1009 = vadd.f32 0.0, %v1008
        %v1010 = vpop.f32.mrb[0].mxu0
        %1011 = vmatprep.mubr.f32.mxu0 0.0
        %1012 = vmatmul.mubr.f32.gmra.mrb[0].mxu0 %v840
        %v1013 = vpop.f32.mrb[0].mxu0
        %v1014 = vadd.f32 0.0, %v1013
        %v1015 = vpop.f32.mrb[0].mxu0
        %1016 = vmatprep.mubr.f32.mxu0 0.0
        %1017 = vmatmul.mubr.f32.gmra.mrb[0].mxu0 %v843
        %v1018 = vpop.f32.mrb[0].mxu0
        %v1019 = vadd.f32 0.0, %v1018
        %v1020 = vpop.f32.mrb[0].mxu0
        %1021 = vmatprep.mubr.f32.mxu0 0.0
        %1022 = vmatmul.mubr.f32.gmra.mrb[0].mxu0 %v846
        %v1023 = vpop.f32.mrb[0].mxu0
        %v1024 = vadd.f32 0.0, %v1023
        %v1025 = vpop.f32.mrb[0].mxu0
        %1026 = vmatprep.mubr.f32.mxu0 0.0
        %1027 = vmatmul.mubr.f32.gmra.mrb[0].mxu0 %v849
        %v1028 = vpop.f32.mrb[0].mxu0
        %v1029 = vadd.f32 0.0, %v1028
        %v1030 = vpop.f32.mrb[0].mxu0
        %1031 = vmatprep.mubr.f32.mxu0 0.0
        %1032 = vmatmul.mubr.f32.gmra.mrb[0].mxu0 %v852
        %v1033 = vpop.f32.mrb[0].mxu0
        %v1034 = vadd.f32 0.0, %v1033
        %v1035 = vpop.f32.mrb[0].mxu0
        %1036 = vmatprep.mubr.f32.mxu0 0.0
        %1037 = vmatmul.mubr.f32.gmra.mrb[0].mxu0 %v855
        %v1038 = vpop.f32.mrb[0].mxu0
        %v1039 = vadd.f32 0.0, %v1038
        %v1040 = vpop.f32.mrb[0].mxu0
        %1041 = vmatprep.mubr.f32.mxu0 0.0
        %1042 = vmatmul.mubr.f32.gmra.mrb[0].mxu0 %v858
        %v1043 = vpop.f32.mrb[0].mxu0
        %v1044 = vadd.f32 0.0, %v1043
        %v1045 = vpop.f32.mrb[0].mxu0
        %1046 = vmatprep.mubr.f32.mxu0 0.0
        %1047 = vmatmul.mubr.f32.gmra.mrb[0].mxu0 %v861
        %v1048 = vpop.f32.mrb[0].mxu0
        %v1049 = vadd.f32 0.0, %v1048
        %v1050 = vpop.f32.mrb[0].mxu0
        %1051 = vmatprep.mubr.f32.mxu0 0.0
        %1052 = vmatmul.mubr.f32.gmra.mrb[0].mxu0 %v864
        %v1053 = vpop.f32.mrb[0].mxu0
        %v1054 = vadd.f32 0.0, %v1053
        %v1055 = vpop.f32.mrb[0].mxu0
        %1056 = vmatprep.mubr.f32.mxu0 0.0
        %1057 = vmatmul.mubr.f32.gmra.mrb[0].mxu0 %v867
        %v1058 = vpop.f32.mrb[0].mxu0
        %v1059 = vadd.f32 0.0, %v1058
        %v1060 = vpop.f32.mrb[0].mxu0
        %1061 = vmatprep.mubr.f32.mxu0 0.0
        %1062 = vmatmul.mubr.f32.gmra.mrb[0].mxu0 %v870
        %v1063 = vpop.f32.mrb[0].mxu0
        %v1064 = vadd.f32 0.0, %v1063
        %v1065 = vpop.f32.mrb[0].mxu0
        %1066 = vmatprep.mubr.f32.mxu0 0.0
        %1067 = vmatmul.mubr.f32.gmra.mrb[0].mxu0 %v873
        %v1068 = vpop.f32.mrb[0].mxu0
        %v1069 = vadd.f32 0.0, %v1068
        %v1070 = vpop.f32.mrb[0].mxu0
        %1071 = vmatprep.mubr.f32.mxu0 0.0
        %1072 = vmatmul.mubr.f32.gmra.mrb[0].mxu0 %v876
        %v1073 = vpop.f32.mrb[0].mxu0
        %v1074 = vadd.f32 0.0, %v1073
        %v1075 = vpop.f32.mrb[0].mxu0
        %1076 = vmatprep.mubr.f32.mxu0 0.0
        %1077 = vmatmul.mubr.f32.gmra.mrb[0].mxu0 %v879
        %v1078 = vpop.f32.mrb[0].mxu0
        %v1079 = vadd.f32 0.0, %v1078
        %v1080 = vpop.f32.mrb[0].mxu0
        %1081 = vmatprep.mubr.f32.mxu0 0.0
        %1082 = vmatmul.mubr.f32.gmra.mrb[0].mxu0 %v882
        %v1083 = vpop.f32.mrb[0].mxu0
        %v1084 = vadd.f32 0.0, %v1083
        %v1085 = vpop.f32.mrb[0].mxu0
        %1086 = vmatprep.mubr.f32.mxu0 0.0
        %1087 = vmatmul.mubr.f32.gmra.mrb[0].mxu0 %v885
        %v1088 = vpop.f32.mrb[0].mxu0
        %v1089 = vadd.f32 0.0, %v1088
        %v1090 = vpop.f32.mrb[0].mxu0
        %1091 = vmatprep.mubr.f32.mxu0 0.0
        %1092 = vmatmul.mubr.f32.gmra.mrb[0].mxu0 %v888
        %v1093 = vpop.f32.mrb[0].mxu0
        %v1094 = vadd.f32 0.0, %v1093
        %v1095 = vpop.f32.mrb[0].mxu0
        %1096 = vmatprep.mubr.f32.mxu0 0.0
        %1097 = vmatmul.mubr.f32.gmra.mrb[0].mxu0 %v891
        %v1098 = vpop.f32.mrb[0].mxu0
        %v1099 = vadd.f32 0.0, %v1098
        %v1100 = vpop.f32.mrb[0].mxu0
        %1101 = vmatprep.mubr.f32.mxu0 0.0
        %1102 = vmatmul.mubr.f32.gmra.mrb[0].mxu0 %v894
        %v1103 = vpop.f32.mrb[0].mxu0
        %v1104 = vadd.f32 0.0, %v1103
        %v1105 = vpop.f32.mrb[0].mxu0
        %1106 = vmatprep.mubr.f32.mxu0 0.0
        %1107 = vmatmul.mubr.f32.gmra.mrb[0].mxu0 %v897
        %v1108 = vpop.f32.mrb[0].mxu0
        %v1109 = vadd.f32 0.0, %v1108
        %v1110 = vpop.f32.mrb[0].mxu0
        %1111 = vmatprep.mubr.f32.mxu0 0.0
        %1112 = vmatmul.mubr.f32.gmra.mrb[0].mxu0 %v900
        %v1113 = vpop.f32.mrb[0].mxu0
        %v1114 = vadd.f32 0.0, %v1113
        %v1115 = vpop.f32.mrb[0].mxu0
        %1116 = vmatprep.mubr.f32.mxu0 0.0
        %1117 = vmatmul.mubr.f32.gmra.mrb[0].mxu0 %v903
        %v1118 = vpop.f32.mrb[0].mxu0
        %v1119 = vadd.f32 0.0, %v1118
        %v1120 = vpop.f32.mrb[0].mxu0
        %1121 = vmatprep.mubr.f32.mxu0 0.0
        %1122 = vmatmul.mubr.f32.gmra.mrb[0].mxu0 %v906
        %v1123 = vpop.f32.mrb[0].mxu0
        %v1124 = vadd.f32 0.0, %v1123
        %v1125 = vpop.f32.mrb[0].mxu0
        %1126 = vmatprep.mubr.f32.mxu0 0.0
        %1127 = vmatmul.mubr.f32.gmra.mrb[0].mxu0 %v909
        %v1128 = vpop.f32.mrb[0].mxu0
        %v1129 = vadd.f32 0.0, %v1128
        %v1130 = vpop.f32.mrb[0].mxu0
        %1131 = vmatprep.mubr.f32.mxu0 0.0
        %1132 = vmatmul.mubr.f32.gmra.mrb[0].mxu0 %v912
        %v1133 = vpop.f32.mrb[0].mxu0
        %v1134 = vadd.f32 0.0, %v1133
        %v1135 = vpop.f32.mrb[0].mxu0
        %1136 = vmatprep.mubr.f32.mxu0 0.0
        %1137 = vmatmul.mubr.f32.gmra.mrb[0].mxu0 %v915
        %v1138 = vpop.f32.mrb[0].mxu0
        %v1139 = vadd.f32 0.0, %v1138
        %v1140 = vpop.f32.mrb[0].mxu0
        %1141 = vdwg.mxu0
        %v1143 = vsel %vm676, %v757, 0
        %v1146 = vsel %vm676, %v758, 0
        %v1149 = vsel %vm676, %v759, 0
        %v1152 = vsel %vm676, %v760, 0
        %v1155 = vsel %vm676, %v761, 0
        %v1158 = vsel %vm676, %v762, 0
        %v1161 = vsel %vm676, %v763, 0
        %v1164 = vsel %vm676, %v764, 0
        %v1167 = vsel %vm676, %v765, 0
        %v1170 = vsel %vm676, %v766, 0
        %v1173 = vsel %vm676, %v767, 0
        %v1176 = vsel %vm676, %v768, 0
        %v1179 = vsel %vm676, %v769, 0
        %v1182 = vsel %vm676, %v770, 0
        %v1185 = vsel %vm676, %v771, 0
        %v1188 = vsel %vm676, %v772, 0
        %v1191 = vsel %vm676, %v773, 0
        %v1194 = vsel %vm676, %v774, 0
        %v1197 = vsel %vm676, %v775, 0
        %v1200 = vsel %vm676, %v776, 0
        %v1203 = vsel %vm676, %v777, 0
        %v1206 = vsel %vm676, %v778, 0
        %v1209 = vsel %vm676, %v779, 0
        %v1212 = vsel %vm676, %v780, 0
        %v1215 = vsel %vm676, %v781, 0
        %v1218 = vsel %vm676, %v782, 0
        %v1221 = vsel %vm676, %v783, 0
        %v1224 = vsel %vm676, %v784, 0
        %v1227 = vsel %vm676, %v785, 0
        %v1230 = vsel %vm676, %v786, 0
        %v1233 = vsel %vm676, %v787, 0
        %v1236 = vsel %vm676, %v788, 0
        %1238 = vmatprep.subr.mxu0 0.0
        %1239 = vmatpush1.msra.mxu0 %v754
        %1240 = vmatprep.subr.mxu0 0.0
        %1241 = vmatpush1.msra.mxu0 0.0
        %1242 = vmatprep.subr.mxu0 0.0
        %1243 = vmatpush1.msra.mxu0 0.0
        %1244 = vmatprep.subr.mxu0 0.0
        %1245 = vmatpush1.msra.mxu0 0.0
        %1246 = vmatprep.subr.mxu0 0.0
        %1247 = vmatpush1.msra.mxu0 0.0
        %1248 = vmatprep.subr.mxu0 0.0
        %1249 = vmatpush1.msra.mxu0 0.0
        %1250 = vmatprep.subr.mxu0 0.0
        %1251 = vmatpush1.msra.mxu0 0.0
        %1252 = vmatprep.subr.mxu0 0.0
        %1253 = vmatpush1.msra.mxu0 0.0
        %1254 = vmatprep.subr.mxu0 0.0
        %1255 = vmatpush1.msra.mxu0 0.0
        %1256 = vmatprep.subr.mxu0 0.0
        %1257 = vmatpush1.msra.mxu0 0.0
        %1258 = vmatprep.subr.mxu0 0.0
        %1259 = vmatpush1.msra.mxu0 0.0
        %1260 = vmatprep.subr.mxu0 0.0
        %1261 = vmatpush1.msra.mxu0 0.0
        %1262 = vmatprep.subr.mxu0 0.0
        %1263 = vmatpush1.msra.mxu0 0.0
        %1264 = vmatprep.subr.mxu0 0.0
        %1265 = vmatpush1.msra.mxu0 0.0
        %1266 = vmatprep.subr.mxu0 0.0
        %1267 = vmatpush1.msra.mxu0 0.0
        %1268 = vmatprep.subr.mxu0 0.0
        %1269 = vmatpush1.msra.mxu0 0.0
        %1270 = vmatprep.subr.mxu0 0.0
        %1271 = vmatpush1.msra.mxu0 0.0
        %1272 = vmatprep.subr.mxu0 0.0
        %1273 = vmatpush1.msra.mxu0 0.0
        %1274 = vmatprep.subr.mxu0 0.0
        %1275 = vmatpush1.msra.mxu0 0.0
        %1276 = vmatprep.subr.mxu0 0.0
        %1277 = vmatpush1.msra.mxu0 0.0
        %1278 = vmatprep.subr.mxu0 0.0
        %1279 = vmatpush1.msra.mxu0 0.0
        %1280 = vmatprep.subr.mxu0 0.0
        %1281 = vmatpush1.msra.mxu0 0.0
        %1282 = vmatprep.subr.mxu0 0.0
        %1283 = vmatpush1.msra.mxu0 0.0
        %1284 = vmatprep.subr.mxu0 0.0
        %1285 = vmatpush1.msra.mxu0 0.0
        %1286 = vmatprep.subr.mxu0 0.0
        %1287 = vmatpush1.msra.mxu0 0.0
        %1288 = vmatprep.subr.mxu0 0.0
        %1289 = vmatpush1.msra.mxu0 0.0
        %1290 = vmatprep.subr.mxu0 0.0
        %1291 = vmatpush1.msra.mxu0 0.0
        %1292 = vmatprep.subr.mxu0 0.0
        %1293 = vmatpush1.msra.mxu0 0.0
        %1294 = vmatprep.subr.mxu0 0.0
        %1295 = vmatpush1.msra.mxu0 0.0
        %1296 = vmatprep.subr.mxu0 0.0
        %1297 = vmatpush1.msra.mxu0 0.0
        %1298 = vmatprep.subr.mxu0 0.0
        %1299 = vmatpush1.msra.mxu0 0.0
        %1300 = vmatprep.subr.mxu0 0.0
        %1301 = vmatpush1.msra.mxu0 0.0
        %1302 = vmatprep.mubr.f32.mxu0 0.0
        %1303 = vmatmul.mubr.f32.gmra.mrb[0].mxu0 %v1143
        %v1304 = vpop.f32.mrb[0].mxu0
        %v1305 = vadd.f32 %v984, %v1304
        %v1306 = vpop.f32.mrb[0].mxu0
        %1307 = vmatprep.mubr.f32.mxu0 0.0
        %1308 = vmatmul.mubr.f32.gmra.mrb[0].mxu0 %v1146
        %v1309 = vpop.f32.mrb[0].mxu0
        %v1310 = vadd.f32 %v989, %v1309
        %v1311 = vpop.f32.mrb[0].mxu0
        %1312 = vmatprep.mubr.f32.mxu0 0.0
        %1313 = vmatmul.mubr.f32.gmra.mrb[0].mxu0 %v1149
        %v1314 = vpop.f32.mrb[0].mxu0
        %v1315 = vadd.f32 %v994, %v1314
        %v1316 = vpop.f32.mrb[0].mxu0
        %1317 = vmatprep.mubr.f32.mxu0 0.0
        %1318 = vmatmul.mubr.f32.gmra.mrb[0].mxu0 %v1152
        %v1319 = vpop.f32.mrb[0].mxu0
        %v1320 = vadd.f32 %v999, %v1319
        %v1321 = vpop.f32.mrb[0].mxu0
        %1322 = vmatprep.mubr.f32.mxu0 0.0
        %1323 = vmatmul.mubr.f32.gmra.mrb[0].mxu0 %v1155
        %v1324 = vpop.f32.mrb[0].mxu0
        %v1325 = vadd.f32 %v1004, %v1324
        %v1326 = vpop.f32.mrb[0].mxu0
        %1327 = vmatprep.mubr.f32.mxu0 0.0
        %1328 = vmatmul.mubr.f32.gmra.mrb[0].mxu0 %v1158
        %v1329 = vpop.f32.mrb[0].mxu0
        %v1330 = vadd.f32 %v1009, %v1329
        %v1331 = vpop.f32.mrb[0].mxu0
        %1332 = vmatprep.mubr.f32.mxu0 0.0
        %1333 = vmatmul.mubr.f32.gmra.mrb[0].mxu0 %v1161
        %v1334 = vpop.f32.mrb[0].mxu0
        %v1335 = vadd.f32 %v1014, %v1334
        %v1336 = vpop.f32.mrb[0].mxu0
        %1337 = vmatprep.mubr.f32.mxu0 0.0
        %1338 = vmatmul.mubr.f32.gmra.mrb[0].mxu0 %v1164
        %v1339 = vpop.f32.mrb[0].mxu0
        %v1340 = vadd.f32 %v1019, %v1339
        %v1341 = vpop.f32.mrb[0].mxu0
        %1342 = vmatprep.mubr.f32.mxu0 0.0
        %1343 = vmatmul.mubr.f32.gmra.mrb[0].mxu0 %v1167
        %v1344 = vpop.f32.mrb[0].mxu0
        %v1345 = vadd.f32 %v1024, %v1344
        %v1346 = vpop.f32.mrb[0].mxu0
        %1347 = vmatprep.mubr.f32.mxu0 0.0
        %1348 = vmatmul.mubr.f32.gmra.mrb[0].mxu0 %v1170
        %v1349 = vpop.f32.mrb[0].mxu0
        %v1350 = vadd.f32 %v1029, %v1349
        %v1351 = vpop.f32.mrb[0].mxu0
        %1352 = vmatprep.mubr.f32.mxu0 0.0
        %1353 = vmatmul.mubr.f32.gmra.mrb[0].mxu0 %v1173
        %v1354 = vpop.f32.mrb[0].mxu0
        %v1355 = vadd.f32 %v1034, %v1354
        %v1356 = vpop.f32.mrb[0].mxu0
        %1357 = vmatprep.mubr.f32.mxu0 0.0
        %1358 = vmatmul.mubr.f32.gmra.mrb[0].mxu0 %v1176
        %v1359 = vpop.f32.mrb[0].mxu0
        %v1360 = vadd.f32 %v1039, %v1359
        %v1361 = vpop.f32.mrb[0].mxu0
        %1362 = vmatprep.mubr.f32.mxu0 0.0
        %1363 = vmatmul.mubr.f32.gmra.mrb[0].mxu0 %v1179
        %v1364 = vpop.f32.mrb[0].mxu0
        %v1365 = vadd.f32 %v1044, %v1364
        %v1366 = vpop.f32.mrb[0].mxu0
        %1367 = vmatprep.mubr.f32.mxu0 0.0
        %1368 = vmatmul.mubr.f32.gmra.mrb[0].mxu0 %v1182
        %v1369 = vpop.f32.mrb[0].mxu0
        %v1370 = vadd.f32 %v1049, %v1369
        %v1371 = vpop.f32.mrb[0].mxu0
        %1372 = vmatprep.mubr.f32.mxu0 0.0
        %1373 = vmatmul.mubr.f32.gmra.mrb[0].mxu0 %v1185
        %v1374 = vpop.f32.mrb[0].mxu0
        %v1375 = vadd.f32 %v1054, %v1374
        %v1376 = vpop.f32.mrb[0].mxu0
        %1377 = vmatprep.mubr.f32.mxu0 0.0
        %1378 = vmatmul.mubr.f32.gmra.mrb[0].mxu0 %v1188
        %v1379 = vpop.f32.mrb[0].mxu0
        %v1380 = vadd.f32 %v1059, %v1379
        %v1381 = vpop.f32.mrb[0].mxu0
        %1382 = vmatprep.mubr.f32.mxu0 0.0
        %1383 = vmatmul.mubr.f32.gmra.mrb[0].mxu0 %v1191
        %v1384 = vpop.f32.mrb[0].mxu0
        %v1385 = vadd.f32 %v1064, %v1384
        %v1386 = vpop.f32.mrb[0].mxu0
        %1387 = vmatprep.mubr.f32.mxu0 0.0
        %1388 = vmatmul.mubr.f32.gmra.mrb[0].mxu0 %v1194
        %v1389 = vpop.f32.mrb[0].mxu0
        %v1390 = vadd.f32 %v1069, %v1389
        %v1391 = vpop.f32.mrb[0].mxu0
        %1392 = vmatprep.mubr.f32.mxu0 0.0
        %1393 = vmatmul.mubr.f32.gmra.mrb[0].mxu0 %v1197
        %v1394 = vpop.f32.mrb[0].mxu0
        %v1395 = vadd.f32 %v1074, %v1394
        %v1396 = vpop.f32.mrb[0].mxu0
        %1397 = vmatprep.mubr.f32.mxu0 0.0
        %1398 = vmatmul.mubr.f32.gmra.mrb[0].mxu0 %v1200
        %v1399 = vpop.f32.mrb[0].mxu0
        %v1400 = vadd.f32 %v1079, %v1399
        %v1401 = vpop.f32.mrb[0].mxu0
        %1402 = vmatprep.mubr.f32.mxu0 0.0
        %1403 = vmatmul.mubr.f32.gmra.mrb[0].mxu0 %v1203
        %v1404 = vpop.f32.mrb[0].mxu0
        %v1405 = vadd.f32 %v1084, %v1404
        %v1406 = vpop.f32.mrb[0].mxu0
        %1407 = vmatprep.mubr.f32.mxu0 0.0
        %1408 = vmatmul.mubr.f32.gmra.mrb[0].mxu0 %v1206
        %v1409 = vpop.f32.mrb[0].mxu0
        %v1410 = vadd.f32 %v1089, %v1409
        %v1411 = vpop.f32.mrb[0].mxu0
        %1412 = vmatprep.mubr.f32.mxu0 0.0
        %1413 = vmatmul.mubr.f32.gmra.mrb[0].mxu0 %v1209
        %v1414 = vpop.f32.mrb[0].mxu0
        %v1415 = vadd.f32 %v1094, %v1414
        %v1416 = vpop.f32.mrb[0].mxu0
        %1417 = vmatprep.mubr.f32.mxu0 0.0
        %1418 = vmatmul.mubr.f32.gmra.mrb[0].mxu0 %v1212
        %v1419 = vpop.f32.mrb[0].mxu0
        %v1420 = vadd.f32 %v1099, %v1419
        %v1421 = vpop.f32.mrb[0].mxu0
        %1422 = vmatprep.mubr.f32.mxu0 0.0
        %1423 = vmatmul.mubr.f32.gmra.mrb[0].mxu0 %v1215
        %v1424 = vpop.f32.mrb[0].mxu0
        %v1425 = vadd.f32 %v1104, %v1424
        %v1426 = vpop.f32.mrb[0].mxu0
        %1427 = vmatprep.mubr.f32.mxu0 0.0
        %1428 = vmatmul.mubr.f32.gmra.mrb[0].mxu0 %v1218
        %v1429 = vpop.f32.mrb[0].mxu0
        %v1430 = vadd.f32 %v1109, %v1429
        %v1431 = vpop.f32.mrb[0].mxu0
        %1432 = vmatprep.mubr.f32.mxu0 0.0
        %1433 = vmatmul.mubr.f32.gmra.mrb[0].mxu0 %v1221
        %v1434 = vpop.f32.mrb[0].mxu0
        %v1435 = vadd.f32 %v1114, %v1434
        %v1436 = vpop.f32.mrb[0].mxu0
        %1437 = vmatprep.mubr.f32.mxu0 0.0
        %1438 = vmatmul.mubr.f32.gmra.mrb[0].mxu0 %v1224
        %v1439 = vpop.f32.mrb[0].mxu0
        %v1440 = vadd.f32 %v1119, %v1439
        %v1441 = vpop.f32.mrb[0].mxu0
        %1442 = vmatprep.mubr.f32.mxu0 0.0
        %1443 = vmatmul.mubr.f32.gmra.mrb[0].mxu0 %v1227
        %v1444 = vpop.f32.mrb[0].mxu0
        %v1445 = vadd.f32 %v1124, %v1444
        %v1446 = vpop.f32.mrb[0].mxu0
        %1447 = vmatprep.mubr.f32.mxu0 0.0
        %1448 = vmatmul.mubr.f32.gmra.mrb[0].mxu0 %v1230
        %v1449 = vpop.f32.mrb[0].mxu0
        %v1450 = vadd.f32 %v1129, %v1449
        %v1451 = vpop.f32.mrb[0].mxu0
        %1452 = vmatprep.mubr.f32.mxu0 0.0
        %1453 = vmatmul.mubr.f32.gmra.mrb[0].mxu0 %v1233
        %v1454 = vpop.f32.mrb[0].mxu0
        %v1455 = vadd.f32 %v1134, %v1454
        %v1456 = vpop.f32.mrb[0].mxu0
        %1457 = vmatprep.mubr.f32.mxu0 0.0
        %1458 = vmatmul.mubr.f32.gmra.mrb[0].mxu0 %v1236
        %v1459 = vpop.f32.mrb[0].mxu0
        %v1460 = vadd.f32 %v1139, %v1459
        %v1461 = vpop.f32.mrb[0].mxu0
        %1462 = vdwg.mxu0
        %v1463 = vld [vmem:[#allocation2 + $0x2] sm:$0xff]
        %v1464 = vld [vmem:[#allocation2 + $0xa] sm:$0xff]
        %v1465 = vld [vmem:[#allocation2 + $0x1a] sm:$0xff]
        %v1466 = vld [vmem:[#allocation2 + $0x22] sm:$0xff]
        %v1467 = vld [vmem:[#allocation2 + $0x32] sm:$0xff]
        %v1468 = vld [vmem:[#allocation2 + $0x3a] sm:$0xff]
        %v1469 = vld [vmem:[#allocation2 + $0x4a] sm:$0xff]
        %v1470 = vld [vmem:[#allocation2 + $0x52] sm:$0xff]
        %v1471 = vld [vmem:[#allocation2 + $0x62] sm:$0xff]
        %v1472 = vld [vmem:[#allocation2 + $0x6a] sm:$0xff]
        %v1473 = vld [vmem:[#allocation2 + $0x7a] sm:$0xff]
        %v1474 = vld [vmem:[#allocation2 + $0x82] sm:$0xff]
        %v1475 = vld [vmem:[#allocation2 + $0x92] sm:$0xff]
        %v1476 = vld [vmem:[#allocation2 + $0x9a] sm:$0xff]
        %v1477 = vld [vmem:[#allocation2 + $0xaa] sm:$0xff]
        %v1478 = vld [vmem:[#allocation2 + $0xb2] sm:$0xff]
        %v1479 = vld [vmem:[#allocation2 + $0xc2] sm:$0xff]
        %v1480 = vld [vmem:[#allocation2 + $0xca] sm:$0xff]
        %v1481 = vld [vmem:[#allocation2 + $0xda] sm:$0xff]
        %v1482 = vld [vmem:[#allocation2 + $0xe2] sm:$0xff]
        %v1483 = vld [vmem:[#allocation2 + $0xf2] sm:$0xff]
        %v1484 = vld [vmem:[#allocation2 + $0xfa] sm:$0xff]
        %v1485 = vld [vmem:[#allocation2 + $0x10a] sm:$0xff]
        %v1486 = vld [vmem:[#allocation2 + $0x112] sm:$0xff]
        %v1487 = vld [vmem:[#allocation2 + $0x122] sm:$0xff]
        %v1488 = vld [vmem:[#allocation2 + $0x12a] sm:$0xff]
        %v1489 = vld [vmem:[#allocation2 + $0x13a] sm:$0xff]
        %v1490 = vld [vmem:[#allocation2 + $0x142] sm:$0xff]
        %v1491 = vld [vmem:[#allocation2 + $0x152] sm:$0xff]
        %v1492 = vld [vmem:[#allocation2 + $0x15a] sm:$0xff]
        %v1493 = vld [vmem:[#allocation2 + $0x16a] sm:$0xff]
        %v1494 = vld [vmem:[#allocation2 + $0x172] sm:$0xff]
        %v1496 = vsel %vm676, %v1463, 0
        %v1499 = vsel %vm676, %v1464, 0
        %v1502 = vsel %vm676, %v1465, 0
        %v1505 = vsel %vm676, %v1466, 0
        %v1508 = vsel %vm676, %v1467, 0
        %v1511 = vsel %vm676, %v1468, 0
        %v1514 = vsel %vm676, %v1469, 0
        %v1517 = vsel %vm676, %v1470, 0
        %v1520 = vsel %vm676, %v1471, 0
        %v1523 = vsel %vm676, %v1472, 0
        %v1526 = vsel %vm676, %v1473, 0
        %v1529 = vsel %vm676, %v1474, 0
        %v1532 = vsel %vm676, %v1475, 0
        %v1535 = vsel %vm676, %v1476, 0
        %v1538 = vsel %vm676, %v1477, 0
        %v1541 = vsel %vm676, %v1478, 0
        %v1544 = vsel %vm676, %v1479, 0
        %v1547 = vsel %vm676, %v1480, 0
        %v1550 = vsel %vm676, %v1481, 0
        %v1553 = vsel %vm676, %v1482, 0
        %v1556 = vsel %vm676, %v1483, 0
        %v1559 = vsel %vm676, %v1484, 0
        %v1562 = vsel %vm676, %v1485, 0
        %v1565 = vsel %vm676, %v1486, 0
        %v1568 = vsel %vm676, %v1487, 0
        %v1571 = vsel %vm676, %v1488, 0
        %v1574 = vsel %vm676, %v1489, 0
        %v1577 = vsel %vm676, %v1490, 0
        %v1580 = vsel %vm676, %v1491, 0
        %v1583 = vsel %vm676, %v1492, 0
        %v1586 = vsel %vm676, %v1493, 0
        %v1589 = vsel %vm676, %v1494, 0
        %1591 = vmatprep.subr.mxu0 0.0
        %1592 = vmatpush1.msra.mxu0 %v756
        %1593 = vmatprep.subr.mxu0 0.0
        %1594 = vmatpush1.msra.mxu0 0.0
        %1595 = vmatprep.subr.mxu0 0.0
        %1596 = vmatpush1.msra.mxu0 0.0
        %1597 = vmatprep.subr.mxu0 0.0
        %1598 = vmatpush1.msra.mxu0 0.0
        %1599 = vmatprep.subr.mxu0 0.0
        %1600 = vmatpush1.msra.mxu0 0.0
        %1601 = vmatprep.subr.mxu0 0.0
        %1602 = vmatpush1.msra.mxu0 0.0
        %1603 = vmatprep.subr.mxu0 0.0
        %1604 = vmatpush1.msra.mxu0 0.0
        %1605 = vmatprep.subr.mxu0 0.0
        %1606 = vmatpush1.msra.mxu0 0.0
        %1607 = vmatprep.subr.mxu0 0.0
        %1608 = vmatpush1.msra.mxu0 0.0
        %1609 = vmatprep.subr.mxu0 0.0
        %1610 = vmatpush1.msra.mxu0 0.0
        %1611 = vmatprep.subr.mxu0 0.0
        %1612 = vmatpush1.msra.mxu0 0.0
        %1613 = vmatprep.subr.mxu0 0.0
        %1614 = vmatpush1.msra.mxu0 0.0
        %1615 = vmatprep.subr.mxu0 0.0
        %1616 = vmatpush1.msra.mxu0 0.0
        %1617 = vmatprep.subr.mxu0 0.0
        %1618 = vmatpush1.msra.mxu0 0.0
        %1619 = vmatprep.subr.mxu0 0.0
        %1620 = vmatpush1.msra.mxu0 0.0
        %1621 = vmatprep.subr.mxu0 0.0
        %1622 = vmatpush1.msra.mxu0 0.0
        %1623 = vmatprep.subr.mxu0 0.0
        %1624 = vmatpush1.msra.mxu0 0.0
        %1625 = vmatprep.subr.mxu0 0.0
        %1626 = vmatpush1.msra.mxu0 0.0
        %1627 = vmatprep.subr.mxu0 0.0
        %1628 = vmatpush1.msra.mxu0 0.0
        %1629 = vmatprep.subr.mxu0 0.0
        %1630 = vmatpush1.msra.mxu0 0.0
        %1631 = vmatprep.subr.mxu0 0.0
        %1632 = vmatpush1.msra.mxu0 0.0
        %1633 = vmatprep.subr.mxu0 0.0
        %1634 = vmatpush1.msra.mxu0 0.0
        %1635 = vmatprep.subr.mxu0 0.0
        %1636 = vmatpush1.msra.mxu0 0.0
        %1637 = vmatprep.subr.mxu0 0.0
        %1638 = vmatpush1.msra.mxu0 0.0
        %1639 = vmatprep.subr.mxu0 0.0
        %1640 = vmatpush1.msra.mxu0 0.0
        %1641 = vmatprep.subr.mxu0 0.0
        %1642 = vmatpush1.msra.mxu0 0.0
        %1643 = vmatprep.subr.mxu0 0.0
        %1644 = vmatpush1.msra.mxu0 0.0
        %1645 = vmatprep.subr.mxu0 0.0
        %1646 = vmatpush1.msra.mxu0 0.0
        %1647 = vmatprep.subr.mxu0 0.0
        %1648 = vmatpush1.msra.mxu0 0.0
        %1649 = vmatprep.subr.mxu0 0.0
        %1650 = vmatpush1.msra.mxu0 0.0
        %1651 = vmatprep.subr.mxu0 0.0
        %1652 = vmatpush1.msra.mxu0 0.0
        %1653 = vmatprep.subr.mxu0 0.0
        %1654 = vmatpush1.msra.mxu0 0.0
        %1655 = vmatprep.mubr.f32.mxu0 0.0
        %1656 = vmatmul.mubr.f32.gmra.mrb[0].mxu0 %v1496
        %v1657 = vpop.f32.mrb[0].mxu0
        %v1658 = vadd.f32 0.0, %v1657
        %v1659 = vpop.f32.mrb[0].mxu0
        %1660 = vmatprep.mubr.f32.mxu0 0.0
        %1661 = vmatmul.mubr.f32.gmra.mrb[0].mxu0 %v1499
        %v1662 = vpop.f32.mrb[0].mxu0
        %v1663 = vadd.f32 0.0, %v1662
        %v1664 = vpop.f32.mrb[0].mxu0
        %1665 = vmatprep.mubr.f32.mxu0 0.0
        %1666 = vmatmul.mubr.f32.gmra.mrb[0].mxu0 %v1502
        %v1667 = vpop.f32.mrb[0].mxu0
        %v1668 = vadd.f32 0.0, %v1667
        %v1669 = vpop.f32.mrb[0].mxu0
        %1670 = vmatprep.mubr.f32.mxu0 0.0
        %1671 = vmatmul.mubr.f32.gmra.mrb[0].mxu0 %v1505
        %v1672 = vpop.f32.mrb[0].mxu0
        %v1673 = vadd.f32 0.0, %v1672
        %v1674 = vpop.f32.mrb[0].mxu0
        %1675 = vmatprep.mubr.f32.mxu0 0.0
        %1676 = vmatmul.mubr.f32.gmra.mrb[0].mxu0 %v1508
        %v1677 = vpop.f32.mrb[0].mxu0
        %v1678 = vadd.f32 0.0, %v1677
        %v1679 = vpop.f32.mrb[0].mxu0
        %1680 = vmatprep.mubr.f32.mxu0 0.0
        %1681 = vmatmul.mubr.f32.gmra.mrb[0].mxu0 %v1511
        %v1682 = vpop.f32.mrb[0].mxu0
        %v1683 = vadd.f32 0.0, %v1682
        %v1684 = vpop.f32.mrb[0].mxu0
        %1685 = vmatprep.mubr.f32.mxu0 0.0
        %1686 = vmatmul.mubr.f32.gmra.mrb[0].mxu0 %v1514
        %v1687 = vpop.f32.mrb[0].mxu0
        %v1688 = vadd.f32 0.0, %v1687
        %v1689 = vpop.f32.mrb[0].mxu0
        %1690 = vmatprep.mubr.f32.mxu0 0.0
        %1691 = vmatmul.mubr.f32.gmra.mrb[0].mxu0 %v1517
        %v1692 = vpop.f32.mrb[0].mxu0
        %v1693 = vadd.f32 0.0, %v1692
        %v1694 = vpop.f32.mrb[0].mxu0
        %1695 = vmatprep.mubr.f32.mxu0 0.0
        %1696 = vmatmul.mubr.f32.gmra.mrb[0].mxu0 %v1520
        %v1697 = vpop.f32.mrb[0].mxu0
        %v1698 = vadd.f32 0.0, %v1697
        %v1699 = vpop.f32.mrb[0].mxu0
        %1700 = vmatprep.mubr.f32.mxu0 0.0
        %1701 = vmatmul.mubr.f32.gmra.mrb[0].mxu0 %v1523
        %v1702 = vpop.f32.mrb[0].mxu0
        %v1703 = vadd.f32 0.0, %v1702
        %v1704 = vpop.f32.mrb[0].mxu0
        %1705 = vmatprep.mubr.f32.mxu0 0.0
        %1706 = vmatmul.mubr.f32.gmra.mrb[0].mxu0 %v1526
        %v1707 = vpop.f32.mrb[0].mxu0
        %v1708 = vadd.f32 0.0, %v1707
        %v1709 = vpop.f32.mrb[0].mxu0
        %1710 = vmatprep.mubr.f32.mxu0 0.0
        %1711 = vmatmul.mubr.f32.gmra.mrb[0].mxu0 %v1529
        %v1712 = vpop.f32.mrb[0].mxu0
        %v1713 = vadd.f32 0.0, %v1712
        %v1714 = vpop.f32.mrb[0].mxu0
        %1715 = vmatprep.mubr.f32.mxu0 0.0
        %1716 = vmatmul.mubr.f32.gmra.mrb[0].mxu0 %v1532
        %v1717 = vpop.f32.mrb[0].mxu0
        %v1718 = vadd.f32 0.0, %v1717
        %v1719 = vpop.f32.mrb[0].mxu0
        %1720 = vmatprep.mubr.f32.mxu0 0.0
        %1721 = vmatmul.mubr.f32.gmra.mrb[0].mxu0 %v1535
        %v1722 = vpop.f32.mrb[0].mxu0
        %v1723 = vadd.f32 0.0, %v1722
        %v1724 = vpop.f32.mrb[0].mxu0
        %1725 = vmatprep.mubr.f32.mxu0 0.0
        %1726 = vmatmul.mubr.f32.gmra.mrb[0].mxu0 %v1538
        %v1727 = vpop.f32.mrb[0].mxu0
        %v1728 = vadd.f32 0.0, %v1727
        %v1729 = vpop.f32.mrb[0].mxu0
        %1730 = vmatprep.mubr.f32.mxu0 0.0
        %1731 = vmatmul.mubr.f32.gmra.mrb[0].mxu0 %v1541
        %v1732 = vpop.f32.mrb[0].mxu0
        %v1733 = vadd.f32 0.0, %v1732
        %v1734 = vpop.f32.mrb[0].mxu0
        %1735 = vmatprep.mubr.f32.mxu0 0.0
        %1736 = vmatmul.mubr.f32.gmra.mrb[0].mxu0 %v1544
        %v1737 = vpop.f32.mrb[0].mxu0
        %v1738 = vadd.f32 0.0, %v1737
        %v1739 = vpop.f32.mrb[0].mxu0
        %1740 = vmatprep.mubr.f32.mxu0 0.0
        %1741 = vmatmul.mubr.f32.gmra.mrb[0].mxu0 %v1547
        %v1742 = vpop.f32.mrb[0].mxu0
        %v1743 = vadd.f32 0.0, %v1742
        %v1744 = vpop.f32.mrb[0].mxu0
        %1745 = vmatprep.mubr.f32.mxu0 0.0
        %1746 = vmatmul.mubr.f32.gmra.mrb[0].mxu0 %v1550
        %v1747 = vpop.f32.mrb[0].mxu0
        %v1748 = vadd.f32 0.0, %v1747
        %v1749 = vpop.f32.mrb[0].mxu0
        %1750 = vmatprep.mubr.f32.mxu0 0.0
        %1751 = vmatmul.mubr.f32.gmra.mrb[0].mxu0 %v1553
        %v1752 = vpop.f32.mrb[0].mxu0
        %v1753 = vadd.f32 0.0, %v1752
        %v1754 = vpop.f32.mrb[0].mxu0
        %1755 = vmatprep.mubr.f32.mxu0 0.0
        %1756 = vmatmul.mubr.f32.gmra.mrb[0].mxu0 %v1556
        %v1757 = vpop.f32.mrb[0].mxu0
        %v1758 = vadd.f32 0.0, %v1757
        %v1759 = vpop.f32.mrb[0].mxu0
        %1760 = vmatprep.mubr.f32.mxu0 0.0
        %1761 = vmatmul.mubr.f32.gmra.mrb[0].mxu0 %v1559
        %v1762 = vpop.f32.mrb[0].mxu0
        %v1763 = vadd.f32 0.0, %v1762
        %v1764 = vpop.f32.mrb[0].mxu0
        %1765 = vmatprep.mubr.f32.mxu0 0.0
        %1766 = vmatmul.mubr.f32.gmra.mrb[0].mxu0 %v1562
        %v1767 = vpop.f32.mrb[0].mxu0
        %v1768 = vadd.f32 0.0, %v1767
        %v1769 = vpop.f32.mrb[0].mxu0
        %1770 = vmatprep.mubr.f32.mxu0 0.0
        %1771 = vmatmul.mubr.f32.gmra.mrb[0].mxu0 %v1565
        %v1772 = vpop.f32.mrb[0].mxu0
        %v1773 = vadd.f32 0.0, %v1772
        %v1774 = vpop.f32.mrb[0].mxu0
        %1775 = vmatprep.mubr.f32.mxu0 0.0
        %1776 = vmatmul.mubr.f32.gmra.mrb[0].mxu0 %v1568
        %v1777 = vpop.f32.mrb[0].mxu0
        %v1778 = vadd.f32 0.0, %v1777
        %v1779 = vpop.f32.mrb[0].mxu0
        %1780 = vmatprep.mubr.f32.mxu0 0.0
        %1781 = vmatmul.mubr.f32.gmra.mrb[0].mxu0 %v1571
        %v1782 = vpop.f32.mrb[0].mxu0
        %v1783 = vadd.f32 0.0, %v1782
        %v1784 = vpop.f32.mrb[0].mxu0
        %1785 = vmatprep.mubr.f32.mxu0 0.0
        %1786 = vmatmul.mubr.f32.gmra.mrb[0].mxu0 %v1574
        %v1787 = vpop.f32.mrb[0].mxu0
        %v1788 = vadd.f32 0.0, %v1787
        %v1789 = vpop.f32.mrb[0].mxu0
        %1790 = vmatprep.mubr.f32.mxu0 0.0
        %1791 = vmatmul.mubr.f32.gmra.mrb[0].mxu0 %v1577
        %v1792 = vpop.f32.mrb[0].mxu0
        %v1793 = vadd.f32 0.0, %v1792
        %v1794 = vpop.f32.mrb[0].mxu0
        %1795 = vmatprep.mubr.f32.mxu0 0.0
        %1796 = vmatmul.mubr.f32.gmra.mrb[0].mxu0 %v1580
        %v1797 = vpop.f32.mrb[0].mxu0
        %v1798 = vadd.f32 0.0, %v1797
        %v1799 = vpop.f32.mrb[0].mxu0
        %1800 = vmatprep.mubr.f32.mxu0 0.0
        %1801 = vmatmul.mubr.f32.gmra.mrb[0].mxu0 %v1583
        %v1802 = vpop.f32.mrb[0].mxu0
        %v1803 = vadd.f32 0.0, %v1802
        %v1804 = vpop.f32.mrb[0].mxu0
        %1805 = vmatprep.mubr.f32.mxu0 0.0
        %1806 = vmatmul.mubr.f32.gmra.mrb[0].mxu0 %v1586
        %v1807 = vpop.f32.mrb[0].mxu0
        %v1808 = vadd.f32 0.0, %v1807
        %v1809 = vpop.f32.mrb[0].mxu0
        %1810 = vmatprep.mubr.f32.mxu0 0.0
        %1811 = vmatmul.mubr.f32.gmra.mrb[0].mxu0 %v1589
        %v1812 = vpop.f32.mrb[0].mxu0
        %v1813 = vadd.f32 0.0, %v1812
        %v1814 = vpop.f32.mrb[0].mxu0
        %1815 = vdwg.mxu0
        %v1816 = vadd.f32 %v1305, %v1658
        %v1817 = vadd.f32 %v1310, %v1663
        %v1818 = vadd.f32 %v1315, %v1668
        %v1819 = vadd.f32 %v1320, %v1673
        %v1820 = vadd.f32 %v1325, %v1678
        %v1821 = vadd.f32 %v1330, %v1683
        %v1822 = vadd.f32 %v1335, %v1688
        %v1823 = vadd.f32 %v1340, %v1693
        %v1824 = vadd.f32 %v1345, %v1698
        %v1825 = vadd.f32 %v1350, %v1703
        %v1826 = vadd.f32 %v1355, %v1708
        %v1827 = vadd.f32 %v1360, %v1713
        %v1828 = vadd.f32 %v1365, %v1718
        %v1829 = vadd.f32 %v1370, %v1723
        %v1830 = vadd.f32 %v1375, %v1728
        %v1831 = vadd.f32 %v1380, %v1733
        %v1832 = vadd.f32 %v1385, %v1738
        %v1833 = vadd.f32 %v1390, %v1743
        %v1834 = vadd.f32 %v1395, %v1748
        %v1835 = vadd.f32 %v1400, %v1753
        %v1836 = vadd.f32 %v1405, %v1758
        %v1837 = vadd.f32 %v1410, %v1763
        %v1838 = vadd.f32 %v1415, %v1768
        %v1839 = vadd.f32 %v1420, %v1773
        %v1840 = vadd.f32 %v1425, %v1778
        %v1841 = vadd.f32 %v1430, %v1783
        %v1842 = vadd.f32 %v1435, %v1788
        %v1843 = vadd.f32 %v1440, %v1793
        %v1844 = vadd.f32 %v1445, %v1798
        %v1845 = vadd.f32 %v1450, %v1803
        %v1846 = vadd.f32 %v1455, %v1808
        %v1847 = vadd.f32 %v1460, %v1813
        %s1848 = scalar_lea.vmem %s3, 24
        %v1849 = vld [vmem:[%s1848] sm:$0xff]
        %v1850 = vld [vmem:[%s1848 + $0x8] sm:$0xff]
        %v1851 = vld [vmem:[%s1848 + $0x10] sm:$0xff]
        %v1852 = vld [vmem:[%s675] sm:$0xff]
        %v1853 = vld [vmem:[%s675 + $0x8] sm:$0xff]
        %v1854 = vld [vmem:[%s675 + $0x18] sm:$0xff]
        %v1855 = vld [vmem:[%s675 + $0x20] sm:$0xff]
        %v1856 = vld [vmem:[%s675 + $0x30] sm:$0xff]
        %v1857 = vld [vmem:[%s675 + $0x38] sm:$0xff]
        %v1858 = vld [vmem:[%s675 + $0x48] sm:$0xff]
        %v1859 = vld [vmem:[%s675 + $0x50] sm:$0xff]
        %v1860 = vld [vmem:[%s675 + $0x60] sm:$0xff]
        %v1861 = vld [vmem:[%s675 + $0x68] sm:$0xff]
        %v1862 = vld [vmem:[%s675 + $0x78] sm:$0xff]
        %v1863 = vld [vmem:[%s675 + $0x80] sm:$0xff]
        %v1864 = vld [vmem:[%s675 + $0x90] sm:$0xff]
        %v1865 = vld [vmem:[%s675 + $0x98] sm:$0xff]
        %v1866 = vld [vmem:[%s675 + $0xa8] sm:$0xff]
        %v1867 = vld [vmem:[%s675 + $0xb0] sm:$0xff]
        %v1868 = vld [vmem:[%s675 + $0xc0] sm:$0xff]
        %v1869 = vld [vmem:[%s675 + $0xc8] sm:$0xff]
        %v1870 = vld [vmem:[%s675 + $0xd8] sm:$0xff]
        %v1871 = vld [vmem:[%s675 + $0xe0] sm:$0xff]
        %v1872 = vld [vmem:[%s675 + $0xf0] sm:$0xff]
        %v1873 = vld [vmem:[%s675 + $0xf8] sm:$0xff]
        %v1874 = vld [vmem:[%s675 + $0x108] sm:$0xff]
        %v1875 = vld [vmem:[%s675 + $0x110] sm:$0xff]
        %v1876 = vld [vmem:[%s675 + $0x120] sm:$0xff]
        %v1877 = vld [vmem:[%s675 + $0x128] sm:$0xff]
        %v1878 = vld [vmem:[%s675 + $0x138] sm:$0xff]
        %v1879 = vld [vmem:[%s675 + $0x140] sm:$0xff]
        %v1880 = vld [vmem:[%s675 + $0x150] sm:$0xff]
        %v1881 = vld [vmem:[%s675 + $0x158] sm:$0xff]
        %v1882 = vld [vmem:[%s675 + $0x168] sm:$0xff]
        %v1883 = vld [vmem:[%s675 + $0x170] sm:$0xff]
        %v1885 = vsel %vm676, %v1852, 0
        %v1888 = vsel %vm676, %v1853, 0
        %v1891 = vsel %vm676, %v1854, 0
        %v1894 = vsel %vm676, %v1855, 0
        %v1897 = vsel %vm676, %v1856, 0
        %v1900 = vsel %vm676, %v1857, 0
        %v1903 = vsel %vm676, %v1858, 0
        %v1906 = vsel %vm676, %v1859, 0
        %v1909 = vsel %vm676, %v1860, 0
        %v1912 = vsel %vm676, %v1861, 0
        %v1915 = vsel %vm676, %v1862, 0
        %v1918 = vsel %vm676, %v1863, 0
        %v1921 = vsel %vm676, %v1864, 0
        %v1924 = vsel %vm676, %v1865, 0
        %v1927 = vsel %vm676, %v1866, 0
        %v1930 = vsel %vm676, %v1867, 0
        %v1933 = vsel %vm676, %v1868, 0
        %v1936 = vsel %vm676, %v1869, 0
        %v1939 = vsel %vm676, %v1870, 0
        %v1942 = vsel %vm676, %v1871, 0
        %v1945 = vsel %vm676, %v1872, 0
        %v1948 = vsel %vm676, %v1873, 0
        %v1951 = vsel %vm676, %v1874, 0
        %v1954 = vsel %vm676, %v1875, 0
        %v1957 = vsel %vm676, %v1876, 0
        %v1960 = vsel %vm676, %v1877, 0
        %v1963 = vsel %vm676, %v1878, 0
        %v1966 = vsel %vm676, %v1879, 0
        %v1969 = vsel %vm676, %v1880, 0
        %v1972 = vsel %vm676, %v1881, 0
        %v1975 = vsel %vm676, %v1882, 0
        %v1978 = vsel %vm676, %v1883, 0
        %1980 = vmatprep.subr.mxu0 0.0
        %1981 = vmatpush1.msra.mxu0 %v1849
        %1982 = vmatprep.subr.mxu0 0.0
        %1983 = vmatpush1.msra.mxu0 0.0
        %1984 = vmatprep.subr.mxu0 0.0
        %1985 = vmatpush1.msra.mxu0 0.0
        %1986 = vmatprep.subr.mxu0 0.0
        %1987 = vmatpush1.msra.mxu0 0.0
        %1988 = vmatprep.subr.mxu0 0.0
        %1989 = vmatpush1.msra.mxu0 0.0
        %1990 = vmatprep.subr.mxu0 0.0
        %1991 = vmatpush1.msra.mxu0 0.0
        %1992 = vmatprep.subr.mxu0 0.0
        %1993 = vmatpush1.msra.mxu0 0.0
        %1994 = vmatprep.subr.mxu0 0.0
        %1995 = vmatpush1.msra.mxu0 0.0
        %1996 = vmatprep.subr.mxu0 0.0
        %1997 = vmatpush1.msra.mxu0 0.0
        %1998 = vmatprep.subr.mxu0 0.0
        %1999 = vmatpush1.msra.mxu0 0.0
        %2000 = vmatprep.subr.mxu0 0.0
        %2001 = vmatpush1.msra.mxu0 0.0
        %2002 = vmatprep.subr.mxu0 0.0
        %2003 = vmatpush1.msra.mxu0 0.0
        %2004 = vmatprep.subr.mxu0 0.0
        %2005 = vmatpush1.msra.mxu0 0.0
        %2006 = vmatprep.subr.mxu0 0.0
        %2007 = vmatpush1.msra.mxu0 0.0
        %2008 = vmatprep.subr.mxu0 0.0
        %2009 = vmatpush1.msra.mxu0 0.0
        %2010 = vmatprep.subr.mxu0 0.0
        %2011 = vmatpush1.msra.mxu0 0.0
        %2012 = vmatprep.subr.mxu0 0.0
        %2013 = vmatpush1.msra.mxu0 0.0
        %2014 = vmatprep.subr.mxu0 0.0
        %2015 = vmatpush1.msra.mxu0 0.0
        %2016 = vmatprep.subr.mxu0 0.0
        %2017 = vmatpush1.msra.mxu0 0.0
        %2018 = vmatprep.subr.mxu0 0.0
        %2019 = vmatpush1.msra.mxu0 0.0
        %2020 = vmatprep.subr.mxu0 0.0
        %2021 = vmatpush1.msra.mxu0 0.0
        %2022 = vmatprep.subr.mxu0 0.0
        %2023 = vmatpush1.msra.mxu0 0.0
        %2024 = vmatprep.subr.mxu0 0.0
        %2025 = vmatpush1.msra.mxu0 0.0
        %2026 = vmatprep.subr.mxu0 0.0
        %2027 = vmatpush1.msra.mxu0 0.0
        %2028 = vmatprep.subr.mxu0 0.0
        %2029 = vmatpush1.msra.mxu0 0.0
        %2030 = vmatprep.subr.mxu0 0.0
        %2031 = vmatpush1.msra.mxu0 0.0
        %2032 = vmatprep.subr.mxu0 0.0
        %2033 = vmatpush1.msra.mxu0 0.0
        %2034 = vmatprep.subr.mxu0 0.0
        %2035 = vmatpush1.msra.mxu0 0.0
        %2036 = vmatprep.subr.mxu0 0.0
        %2037 = vmatpush1.msra.mxu0 0.0
        %2038 = vmatprep.subr.mxu0 0.0
        %2039 = vmatpush1.msra.mxu0 0.0
        %2040 = vmatprep.subr.mxu0 0.0
        %2041 = vmatpush1.msra.mxu0 0.0
        %2042 = vmatprep.subr.mxu0 0.0
        %2043 = vmatpush1.msra.mxu0 0.0
        %2044 = vmatprep.mubr.f32.mxu0 0.0
        %2045 = vmatmul.mubr.f32.gmra.mrb[0].mxu0 %v1885
        %v2046 = vpop.f32.mrb[0].mxu0
        %v2047 = vadd.f32 0.0, %v2046
        %v2048 = vpop.f32.mrb[0].mxu0
        %2049 = vmatprep.mubr.f32.mxu0 0.0
        %2050 = vmatmul.mubr.f32.gmra.mrb[0].mxu0 %v1888
        %v2051 = vpop.f32.mrb[0].mxu0
        %v2052 = vadd.f32 0.0, %v2051
        %v2053 = vpop.f32.mrb[0].mxu0
        %2054 = vmatprep.mubr.f32.mxu0 0.0
        %2055 = vmatmul.mubr.f32.gmra.mrb[0].mxu0 %v1891
        %v2056 = vpop.f32.mrb[0].mxu0
        %v2057 = vadd.f32 0.0, %v2056
        %v2058 = vpop.f32.mrb[0].mxu0
        %2059 = vmatprep.mubr.f32.mxu0 0.0
        %2060 = vmatmul.mubr.f32.gmra.mrb[0].mxu0 %v1894
        %v2061 = vpop.f32.mrb[0].mxu0
        %v2062 = vadd.f32 0.0, %v2061
        %v2063 = vpop.f32.mrb[0].mxu0
        %2064 = vmatprep.mubr.f32.mxu0 0.0
        %2065 = vmatmul.mubr.f32.gmra.mrb[0].mxu0 %v1897
        %v2066 = vpop.f32.mrb[0].mxu0
        %v2067 = vadd.f32 0.0, %v2066
        %v2068 = vpop.f32.mrb[0].mxu0
        %2069 = vmatprep.mubr.f32.mxu0 0.0
        %2070 = vmatmul.mubr.f32.gmra.mrb[0].mxu0 %v1900
        %v2071 = vpop.f32.mrb[0].mxu0
        %v2072 = vadd.f32 0.0, %v2071
        %v2073 = vpop.f32.mrb[0].mxu0
        %2074 = vmatprep.mubr.f32.mxu0 0.0
        %2075 = vmatmul.mubr.f32.gmra.mrb[0].mxu0 %v1903
        %v2076 = vpop.f32.mrb[0].mxu0
        %v2077 = vadd.f32 0.0, %v2076
        %v2078 = vpop.f32.mrb[0].mxu0
        %2079 = vmatprep.mubr.f32.mxu0 0.0
        %2080 = vmatmul.mubr.f32.gmra.mrb[0].mxu0 %v1906
        %v2081 = vpop.f32.mrb[0].mxu0
        %v2082 = vadd.f32 0.0, %v2081
        %v2083 = vpop.f32.mrb[0].mxu0
        %2084 = vmatprep.mubr.f32.mxu0 0.0
        %2085 = vmatmul.mubr.f32.gmra.mrb[0].mxu0 %v1909
        %v2086 = vpop.f32.mrb[0].mxu0
        %v2087 = vadd.f32 0.0, %v2086
        %v2088 = vpop.f32.mrb[0].mxu0
        %2089 = vmatprep.mubr.f32.mxu0 0.0
        %2090 = vmatmul.mubr.f32.gmra.mrb[0].mxu0 %v1912
        %v2091 = vpop.f32.mrb[0].mxu0
        %v2092 = vadd.f32 0.0, %v2091
        %v2093 = vpop.f32.mrb[0].mxu0
        %2094 = vmatprep.mubr.f32.mxu0 0.0
        %2095 = vmatmul.mubr.f32.gmra.mrb[0].mxu0 %v1915
        %v2096 = vpop.f32.mrb[0].mxu0
        %v2097 = vadd.f32 0.0, %v2096
        %v2098 = vpop.f32.mrb[0].mxu0
        %2099 = vmatprep.mubr.f32.mxu0 0.0
        %2100 = vmatmul.mubr.f32.gmra.mrb[0].mxu0 %v1918
        %v2101 = vpop.f32.mrb[0].mxu0
        %v2102 = vadd.f32 0.0, %v2101
        %v2103 = vpop.f32.mrb[0].mxu0
        %2104 = vmatprep.mubr.f32.mxu0 0.0
        %2105 = vmatmul.mubr.f32.gmra.mrb[0].mxu0 %v1921
        %v2106 = vpop.f32.mrb[0].mxu0
        %v2107 = vadd.f32 0.0, %v2106
        %v2108 = vpop.f32.mrb[0].mxu0
        %2109 = vmatprep.mubr.f32.mxu0 0.0
        %2110 = vmatmul.mubr.f32.gmra.mrb[0].mxu0 %v1924
        %v2111 = vpop.f32.mrb[0].mxu0
        %v2112 = vadd.f32 0.0, %v2111
        %v2113 = vpop.f32.mrb[0].mxu0
        %2114 = vmatprep.mubr.f32.mxu0 0.0
        %2115 = vmatmul.mubr.f32.gmra.mrb[0].mxu0 %v1927
        %v2116 = vpop.f32.mrb[0].mxu0
        %v2117 = vadd.f32 0.0, %v2116
        %v2118 = vpop.f32.mrb[0].mxu0
        %2119 = vmatprep.mubr.f32.mxu0 0.0
        %2120 = vmatmul.mubr.f32.gmra.mrb[0].mxu0 %v1930
        %v2121 = vpop.f32.mrb[0].mxu0
        %v2122 = vadd.f32 0.0, %v2121
        %v2123 = vpop.f32.mrb[0].mxu0
        %2124 = vmatprep.mubr.f32.mxu0 0.0
        %2125 = vmatmul.mubr.f32.gmra.mrb[0].mxu0 %v1933
        %v2126 = vpop.f32.mrb[0].mxu0
        %v2127 = vadd.f32 0.0, %v2126
        %v2128 = vpop.f32.mrb[0].mxu0
        %2129 = vmatprep.mubr.f32.mxu0 0.0
        %2130 = vmatmul.mubr.f32.gmra.mrb[0].mxu0 %v1936
        %v2131 = vpop.f32.mrb[0].mxu0
        %v2132 = vadd.f32 0.0, %v2131
        %v2133 = vpop.f32.mrb[0].mxu0
        %2134 = vmatprep.mubr.f32.mxu0 0.0
        %2135 = vmatmul.mubr.f32.gmra.mrb[0].mxu0 %v1939
        %v2136 = vpop.f32.mrb[0].mxu0
        %v2137 = vadd.f32 0.0, %v2136
        %v2138 = vpop.f32.mrb[0].mxu0
        %2139 = vmatprep.mubr.f32.mxu0 0.0
        %2140 = vmatmul.mubr.f32.gmra.mrb[0].mxu0 %v1942
        %v2141 = vpop.f32.mrb[0].mxu0
        %v2142 = vadd.f32 0.0, %v2141
        %v2143 = vpop.f32.mrb[0].mxu0
        %2144 = vmatprep.mubr.f32.mxu0 0.0
        %2145 = vmatmul.mubr.f32.gmra.mrb[0].mxu0 %v1945
        %v2146 = vpop.f32.mrb[0].mxu0
        %v2147 = vadd.f32 0.0, %v2146
        %v2148 = vpop.f32.mrb[0].mxu0
        %2149 = vmatprep.mubr.f32.mxu0 0.0
        %2150 = vmatmul.mubr.f32.gmra.mrb[0].mxu0 %v1948
        %v2151 = vpop.f32.mrb[0].mxu0
        %v2152 = vadd.f32 0.0, %v2151
        %v2153 = vpop.f32.mrb[0].mxu0
        %2154 = vmatprep.mubr.f32.mxu0 0.0
        %2155 = vmatmul.mubr.f32.gmra.mrb[0].mxu0 %v1951
        %v2156 = vpop.f32.mrb[0].mxu0
        %v2157 = vadd.f32 0.0, %v2156
        %v2158 = vpop.f32.mrb[0].mxu0
        %2159 = vmatprep.mubr.f32.mxu0 0.0
        %2160 = vmatmul.mubr.f32.gmra.mrb[0].mxu0 %v1954
        %v2161 = vpop.f32.mrb[0].mxu0
        %v2162 = vadd.f32 0.0, %v2161
        %v2163 = vpop.f32.mrb[0].mxu0
        %2164 = vmatprep.mubr.f32.mxu0 0.0
        %2165 = vmatmul.mubr.f32.gmra.mrb[0].mxu0 %v1957
        %v2166 = vpop.f32.mrb[0].mxu0
        %v2167 = vadd.f32 0.0, %v2166
        %v2168 = vpop.f32.mrb[0].mxu0
        %2169 = vmatprep.mubr.f32.mxu0 0.0
        %2170 = vmatmul.mubr.f32.gmra.mrb[0].mxu0 %v1960
        %v2171 = vpop.f32.mrb[0].mxu0
        %v2172 = vadd.f32 0.0, %v2171
        %v2173 = vpop.f32.mrb[0].mxu0
        %2174 = vmatprep.mubr.f32.mxu0 0.0
        %2175 = vmatmul.mubr.f32.gmra.mrb[0].mxu0 %v1963
        %v2176 = vpop.f32.mrb[0].mxu0
        %v2177 = vadd.f32 0.0, %v2176
        %v2178 = vpop.f32.mrb[0].mxu0
        %2179 = vmatprep.mubr.f32.mxu0 0.0
        %2180 = vmatmul.mubr.f32.gmra.mrb[0].mxu0 %v1966
        %v2181 = vpop.f32.mrb[0].mxu0
        %v2182 = vadd.f32 0.0, %v2181
        %v2183 = vpop.f32.mrb[0].mxu0
        %2184 = vmatprep.mubr.f32.mxu0 0.0
        %2185 = vmatmul.mubr.f32.gmra.mrb[0].mxu0 %v1969
        %v2186 = vpop.f32.mrb[0].mxu0
        %v2187 = vadd.f32 0.0, %v2186
        %v2188 = vpop.f32.mrb[0].mxu0
        %2189 = vmatprep.mubr.f32.mxu0 0.0
        %2190 = vmatmul.mubr.f32.gmra.mrb[0].mxu0 %v1972
        %v2191 = vpop.f32.mrb[0].mxu0
        %v2192 = vadd.f32 0.0, %v2191
        %v2193 = vpop.f32.mrb[0].mxu0
        %2194 = vmatprep.mubr.f32.mxu0 0.0
        %2195 = vmatmul.mubr.f32.gmra.mrb[0].mxu0 %v1975
        %v2196 = vpop.f32.mrb[0].mxu0
        %v2197 = vadd.f32 0.0, %v2196
        %v2198 = vpop.f32.mrb[0].mxu0
        %2199 = vmatprep.mubr.f32.mxu0 0.0
        %2200 = vmatmul.mubr.f32.gmra.mrb[0].mxu0 %v1978
        %v2201 = vpop.f32.mrb[0].mxu0
        %v2202 = vadd.f32 0.0, %v2201
        %v2203 = vpop.f32.mrb[0].mxu0
        %2204 = vdwg.mxu0
        %v2205 = vadd.f32 %v1816, %v2047
        %v2206 = vadd.f32 %v1817, %v2052
        %v2207 = vadd.f32 %v1818, %v2057
        %v2208 = vadd.f32 %v1819, %v2062
        %v2209 = vadd.f32 %v1820, %v2067
        %v2210 = vadd.f32 %v1821, %v2072
        %v2211 = vadd.f32 %v1822, %v2077
        %v2212 = vadd.f32 %v1823, %v2082
        %v2213 = vadd.f32 %v1824, %v2087
        %v2214 = vadd.f32 %v1825, %v2092
        %v2215 = vadd.f32 %v1826, %v2097
        %v2216 = vadd.f32 %v1827, %v2102
        %v2217 = vadd.f32 %v1828, %v2107
        %v2218 = vadd.f32 %v1829, %v2112
        %v2219 = vadd.f32 %v1830, %v2117
        %v2220 = vadd.f32 %v1831, %v2122
        %v2221 = vadd.f32 %v1832, %v2127
        %v2222 = vadd.f32 %v1833, %v2132
        %v2223 = vadd.f32 %v1834, %v2137
        %v2224 = vadd.f32 %v1835, %v2142
        %v2225 = vadd.f32 %v1836, %v2147
        %v2226 = vadd.f32 %v1837, %v2152
        %v2227 = vadd.f32 %v1838, %v2157
        %v2228 = vadd.f32 %v1839, %v2162
        %v2229 = vadd.f32 %v1840, %v2167
        %v2230 = vadd.f32 %v1841, %v2172
        %v2231 = vadd.f32 %v1842, %v2177
        %v2232 = vadd.f32 %v1843, %v2182
        %v2233 = vadd.f32 %v1844, %v2187
        %v2234 = vadd.f32 %v1845, %v2192
        %v2235 = vadd.f32 %v1846, %v2197
        %v2236 = vadd.f32 %v1847, %v2202
        %v2237 = vld [vmem:[%s675 + $0x1] sm:$0xff]
        %v2238 = vld [vmem:[%s675 + $0x9] sm:$0xff]
        %v2239 = vld [vmem:[%s675 + $0x19] sm:$0xff]
        %v2240 = vld [vmem:[%s675 + $0x21] sm:$0xff]
        %v2241 = vld [vmem:[%s675 + $0x31] sm:$0xff]
        %v2242 = vld [vmem:[%s675 + $0x39] sm:$0xff]
        %v2243 = vld [vmem:[%s675 + $0x49] sm:$0xff]
        %v2244 = vld [vmem:[%s675 + $0x51] sm:$0xff]
        %v2245 = vld [vmem:[%s675 + $0x61] sm:$0xff]
        %v2246 = vld [vmem:[%s675 + $0x69] sm:$0xff]
        %v2247 = vld [vmem:[%s675 + $0x79] sm:$0xff]
        %v2248 = vld [vmem:[%s675 + $0x81] sm:$0xff]
        %v2249 = vld [vmem:[%s675 + $0x91] sm:$0xff]
        %v2250 = vld [vmem:[%s675 + $0x99] sm:$0xff]
        %v2251 = vld [vmem:[%s675 + $0xa9] sm:$0xff]
        %v2252 = vld [vmem:[%s675 + $0xb1] sm:$0xff]
        %v2253 = vld [vmem:[%s675 + $0xc1] sm:$0xff]
        %v2254 = vld [vmem:[%s675 + $0xc9] sm:$0xff]
        %v2255 = vld [vmem:[%s675 + $0xd9] sm:$0xff]
        %v2256 = vld [vmem:[%s675 + $0xe1] sm:$0xff]
        %v2257 = vld [vmem:[%s675 + $0xf1] sm:$0xff]
        %v2258 = vld [vmem:[%s675 + $0xf9] sm:$0xff]
        %v2259 = vld [vmem:[%s675 + $0x109] sm:$0xff]
        %v2260 = vld [vmem:[%s675 + $0x111] sm:$0xff]
        %v2261 = vld [vmem:[%s675 + $0x121] sm:$0xff]
        %v2262 = vld [vmem:[%s675 + $0x129] sm:$0xff]
        %v2263 = vld [vmem:[%s675 + $0x139] sm:$0xff]
        %v2264 = vld [vmem:[%s675 + $0x141] sm:$0xff]
        %v2265 = vld [vmem:[%s675 + $0x151] sm:$0xff]
        %v2266 = vld [vmem:[%s675 + $0x159] sm:$0xff]
        %v2267 = vld [vmem:[%s675 + $0x169] sm:$0xff]
        %v2268 = vld [vmem:[%s675 + $0x171] sm:$0xff]
        %v2270 = vsel %vm676, %v2237, 0
        %v2273 = vsel %vm676, %v2238, 0
        %v2276 = vsel %vm676, %v2239, 0
        %v2279 = vsel %vm676, %v2240, 0
        %v2282 = vsel %vm676, %v2241, 0
        %v2285 = vsel %vm676, %v2242, 0
        %v2288 = vsel %vm676, %v2243, 0
        %v2291 = vsel %vm676, %v2244, 0
        %v2294 = vsel %vm676, %v2245, 0
        %v2297 = vsel %vm676, %v2246, 0
        %v2300 = vsel %vm676, %v2247, 0
        %v2303 = vsel %vm676, %v2248, 0
        %v2306 = vsel %vm676, %v2249, 0
        %v2309 = vsel %vm676, %v2250, 0
        %v2312 = vsel %vm676, %v2251, 0
        %v2315 = vsel %vm676, %v2252, 0
        %v2318 = vsel %vm676, %v2253, 0
        %v2321 = vsel %vm676, %v2254, 0
        %v2324 = vsel %vm676, %v2255, 0
        %v2327 = vsel %vm676, %v2256, 0
        %v2330 = vsel %vm676, %v2257, 0
        %v2333 = vsel %vm676, %v2258, 0
        %v2336 = vsel %vm676, %v2259, 0
        %v2339 = vsel %vm676, %v2260, 0
        %v2342 = vsel %vm676, %v2261, 0
        %v2345 = vsel %vm676, %v2262, 0
        %v2348 = vsel %vm676, %v2263, 0
        %v2351 = vsel %vm676, %v2264, 0
        %v2354 = vsel %vm676, %v2265, 0
        %v2357 = vsel %vm676, %v2266, 0
        %v2360 = vsel %vm676, %v2267, 0
        %v2363 = vsel %vm676, %v2268, 0
        %2365 = vmatprep.subr.mxu0 0.0
        %2366 = vmatpush1.msra.mxu0 %v1850
        %2367 = vmatprep.subr.mxu0 0.0
        %2368 = vmatpush1.msra.mxu0 0.0
        %2369 = vmatprep.subr.mxu0 0.0
        %2370 = vmatpush1.msra.mxu0 0.0
        %2371 = vmatprep.subr.mxu0 0.0
        %2372 = vmatpush1.msra.mxu0 0.0
        %2373 = vmatprep.subr.mxu0 0.0
        %2374 = vmatpush1.msra.mxu0 0.0
        %2375 = vmatprep.subr.mxu0 0.0
        %2376 = vmatpush1.msra.mxu0 0.0
        %2377 = vmatprep.subr.mxu0 0.0
        %2378 = vmatpush1.msra.mxu0 0.0
        %2379 = vmatprep.subr.mxu0 0.0
        %2380 = vmatpush1.msra.mxu0 0.0
        %2381 = vmatprep.subr.mxu0 0.0
        %2382 = vmatpush1.msra.mxu0 0.0
        %2383 = vmatprep.subr.mxu0 0.0
        %2384 = vmatpush1.msra.mxu0 0.0
        %2385 = vmatprep.subr.mxu0 0.0
        %2386 = vmatpush1.msra.mxu0 0.0
        %2387 = vmatprep.subr.mxu0 0.0
        %2388 = vmatpush1.msra.mxu0 0.0
        %2389 = vmatprep.subr.mxu0 0.0
        %2390 = vmatpush1.msra.mxu0 0.0
        %2391 = vmatprep.subr.mxu0 0.0
        %2392 = vmatpush1.msra.mxu0 0.0
        %2393 = vmatprep.subr.mxu0 0.0
        %2394 = vmatpush1.msra.mxu0 0.0
        %2395 = vmatprep.subr.mxu0 0.0
        %2396 = vmatpush1.msra.mxu0 0.0
        %2397 = vmatprep.subr.mxu0 0.0
        %2398 = vmatpush1.msra.mxu0 0.0
        %2399 = vmatprep.subr.mxu0 0.0
        %2400 = vmatpush1.msra.mxu0 0.0
        %2401 = vmatprep.subr.mxu0 0.0
        %2402 = vmatpush1.msra.mxu0 0.0
        %2403 = vmatprep.subr.mxu0 0.0
        %2404 = vmatpush1.msra.mxu0 0.0
        %2405 = vmatprep.subr.mxu0 0.0
        %2406 = vmatpush1.msra.mxu0 0.0
        %2407 = vmatprep.subr.mxu0 0.0
        %2408 = vmatpush1.msra.mxu0 0.0
        %2409 = vmatprep.subr.mxu0 0.0
        %2410 = vmatpush1.msra.mxu0 0.0
        %2411 = vmatprep.subr.mxu0 0.0
        %2412 = vmatpush1.msra.mxu0 0.0
        %2413 = vmatprep.subr.mxu0 0.0
        %2414 = vmatpush1.msra.mxu0 0.0
        %2415 = vmatprep.subr.mxu0 0.0
        %2416 = vmatpush1.msra.mxu0 0.0
        %2417 = vmatprep.subr.mxu0 0.0
        %2418 = vmatpush1.msra.mxu0 0.0
        %2419 = vmatprep.subr.mxu0 0.0
        %2420 = vmatpush1.msra.mxu0 0.0
        %2421 = vmatprep.subr.mxu0 0.0
        %2422 = vmatpush1.msra.mxu0 0.0
        %2423 = vmatprep.subr.mxu0 0.0
        %2424 = vmatpush1.msra.mxu0 0.0
        %2425 = vmatprep.subr.mxu0 0.0
        %2426 = vmatpush1.msra.mxu0 0.0
        %2427 = vmatprep.subr.mxu0 0.0
        %2428 = vmatpush1.msra.mxu0 0.0
        %2429 = vmatprep.mubr.f32.mxu0 0.0
        %2430 = vmatmul.mubr.f32.gmra.mrb[0].mxu0 %v2270
        %v2431 = vpop.f32.mrb[0].mxu0
        %v2432 = vadd.f32 0.0, %v2431
        %v2433 = vpop.f32.mrb[0].mxu0
        %2434 = vmatprep.mubr.f32.mxu0 0.0
        %2435 = vmatmul.mubr.f32.gmra.mrb[0].mxu0 %v2273
        %v2436 = vpop.f32.mrb[0].mxu0
        %v2437 = vadd.f32 0.0, %v2436
        %v2438 = vpop.f32.mrb[0].mxu0
        %2439 = vmatprep.mubr.f32.mxu0 0.0
        %2440 = vmatmul.mubr.f32.gmra.mrb[0].mxu0 %v2276
        %v2441 = vpop.f32.mrb[0].mxu0
        %v2442 = vadd.f32 0.0, %v2441
        %v2443 = vpop.f32.mrb[0].mxu0
        %2444 = vmatprep.mubr.f32.mxu0 0.0
        %2445 = vmatmul.mubr.f32.gmra.mrb[0].mxu0 %v2279
        %v2446 = vpop.f32.mrb[0].mxu0
        %v2447 = vadd.f32 0.0, %v2446
        %v2448 = vpop.f32.mrb[0].mxu0
        %2449 = vmatprep.mubr.f32.mxu0 0.0
        %2450 = vmatmul.mubr.f32.gmra.mrb[0].mxu0 %v2282
        %v2451 = vpop.f32.mrb[0].mxu0
        %v2452 = vadd.f32 0.0, %v2451
        %v2453 = vpop.f32.mrb[0].mxu0
        %2454 = vmatprep.mubr.f32.mxu0 0.0
        %2455 = vmatmul.mubr.f32.gmra.mrb[0].mxu0 %v2285
        %v2456 = vpop.f32.mrb[0].mxu0
        %v2457 = vadd.f32 0.0, %v2456
        %v2458 = vpop.f32.mrb[0].mxu0
        %2459 = vmatprep.mubr.f32.mxu0 0.0
        %2460 = vmatmul.mubr.f32.gmra.mrb[0].mxu0 %v2288
        %v2461 = vpop.f32.mrb[0].mxu0
        %v2462 = vadd.f32 0.0, %v2461
        %v2463 = vpop.f32.mrb[0].mxu0
        %2464 = vmatprep.mubr.f32.mxu0 0.0
        %2465 = vmatmul.mubr.f32.gmra.mrb[0].mxu0 %v2291
        %v2466 = vpop.f32.mrb[0].mxu0
        %v2467 = vadd.f32 0.0, %v2466
        %v2468 = vpop.f32.mrb[0].mxu0
        %2469 = vmatprep.mubr.f32.mxu0 0.0
        %2470 = vmatmul.mubr.f32.gmra.mrb[0].mxu0 %v2294
        %v2471 = vpop.f32.mrb[0].mxu0
        %v2472 = vadd.f32 0.0, %v2471
        %v2473 = vpop.f32.mrb[0].mxu0
        %2474 = vmatprep.mubr.f32.mxu0 0.0
        %2475 = vmatmul.mubr.f32.gmra.mrb[0].mxu0 %v2297
        %v2476 = vpop.f32.mrb[0].mxu0
        %v2477 = vadd.f32 0.0, %v2476
        %v2478 = vpop.f32.mrb[0].mxu0
        %2479 = vmatprep.mubr.f32.mxu0 0.0
        %2480 = vmatmul.mubr.f32.gmra.mrb[0].mxu0 %v2300
        %v2481 = vpop.f32.mrb[0].mxu0
        %v2482 = vadd.f32 0.0, %v2481
        %v2483 = vpop.f32.mrb[0].mxu0
        %2484 = vmatprep.mubr.f32.mxu0 0.0
        %2485 = vmatmul.mubr.f32.gmra.mrb[0].mxu0 %v2303
        %v2486 = vpop.f32.mrb[0].mxu0
        %v2487 = vadd.f32 0.0, %v2486
        %v2488 = vpop.f32.mrb[0].mxu0
        %2489 = vmatprep.mubr.f32.mxu0 0.0
        %2490 = vmatmul.mubr.f32.gmra.mrb[0].mxu0 %v2306
        %v2491 = vpop.f32.mrb[0].mxu0
        %v2492 = vadd.f32 0.0, %v2491
        %v2493 = vpop.f32.mrb[0].mxu0
        %2494 = vmatprep.mubr.f32.mxu0 0.0
        %2495 = vmatmul.mubr.f32.gmra.mrb[0].mxu0 %v2309
        %v2496 = vpop.f32.mrb[0].mxu0
        %v2497 = vadd.f32 0.0, %v2496
        %v2498 = vpop.f32.mrb[0].mxu0
        %2499 = vmatprep.mubr.f32.mxu0 0.0
        %2500 = vmatmul.mubr.f32.gmra.mrb[0].mxu0 %v2312
        %v2501 = vpop.f32.mrb[0].mxu0
        %v2502 = vadd.f32 0.0, %v2501
        %v2503 = vpop.f32.mrb[0].mxu0
        %2504 = vmatprep.mubr.f32.mxu0 0.0
        %2505 = vmatmul.mubr.f32.gmra.mrb[0].mxu0 %v2315
        %v2506 = vpop.f32.mrb[0].mxu0
        %v2507 = vadd.f32 0.0, %v2506
        %v2508 = vpop.f32.mrb[0].mxu0
        %2509 = vmatprep.mubr.f32.mxu0 0.0
        %2510 = vmatmul.mubr.f32.gmra.mrb[0].mxu0 %v2318
        %v2511 = vpop.f32.mrb[0].mxu0
        %v2512 = vadd.f32 0.0, %v2511
        %v2513 = vpop.f32.mrb[0].mxu0
        %2514 = vmatprep.mubr.f32.mxu0 0.0
        %2515 = vmatmul.mubr.f32.gmra.mrb[0].mxu0 %v2321
        %v2516 = vpop.f32.mrb[0].mxu0
        %v2517 = vadd.f32 0.0, %v2516
        %v2518 = vpop.f32.mrb[0].mxu0
        %2519 = vmatprep.mubr.f32.mxu0 0.0
        %2520 = vmatmul.mubr.f32.gmra.mrb[0].mxu0 %v2324
        %v2521 = vpop.f32.mrb[0].mxu0
        %v2522 = vadd.f32 0.0, %v2521
        %v2523 = vpop.f32.mrb[0].mxu0
        %2524 = vmatprep.mubr.f32.mxu0 0.0
        %2525 = vmatmul.mubr.f32.gmra.mrb[0].mxu0 %v2327
        %v2526 = vpop.f32.mrb[0].mxu0
        %v2527 = vadd.f32 0.0, %v2526
        %v2528 = vpop.f32.mrb[0].mxu0
        %2529 = vmatprep.mubr.f32.mxu0 0.0
        %2530 = vmatmul.mubr.f32.gmra.mrb[0].mxu0 %v2330
        %v2531 = vpop.f32.mrb[0].mxu0
        %v2532 = vadd.f32 0.0, %v2531
        %v2533 = vpop.f32.mrb[0].mxu0
        %2534 = vmatprep.mubr.f32.mxu0 0.0
        %2535 = vmatmul.mubr.f32.gmra.mrb[0].mxu0 %v2333
        %v2536 = vpop.f32.mrb[0].mxu0
        %v2537 = vadd.f32 0.0, %v2536
        %v2538 = vpop.f32.mrb[0].mxu0
        %2539 = vmatprep.mubr.f32.mxu0 0.0
        %2540 = vmatmul.mubr.f32.gmra.mrb[0].mxu0 %v2336
        %v2541 = vpop.f32.mrb[0].mxu0
        %v2542 = vadd.f32 0.0, %v2541
        %v2543 = vpop.f32.mrb[0].mxu0
        %2544 = vmatprep.mubr.f32.mxu0 0.0
        %2545 = vmatmul.mubr.f32.gmra.mrb[0].mxu0 %v2339
        %v2546 = vpop.f32.mrb[0].mxu0
        %v2547 = vadd.f32 0.0, %v2546
        %v2548 = vpop.f32.mrb[0].mxu0
        %2549 = vmatprep.mubr.f32.mxu0 0.0
        %2550 = vmatmul.mubr.f32.gmra.mrb[0].mxu0 %v2342
        %v2551 = vpop.f32.mrb[0].mxu0
        %v2552 = vadd.f32 0.0, %v2551
        %v2553 = vpop.f32.mrb[0].mxu0
        %2554 = vmatprep.mubr.f32.mxu0 0.0
        %2555 = vmatmul.mubr.f32.gmra.mrb[0].mxu0 %v2345
        %v2556 = vpop.f32.mrb[0].mxu0
        %v2557 = vadd.f32 0.0, %v2556
        %v2558 = vpop.f32.mrb[0].mxu0
        %2559 = vmatprep.mubr.f32.mxu0 0.0
        %2560 = vmatmul.mubr.f32.gmra.mrb[0].mxu0 %v2348
        %v2561 = vpop.f32.mrb[0].mxu0
        %v2562 = vadd.f32 0.0, %v2561
        %v2563 = vpop.f32.mrb[0].mxu0
        %2564 = vmatprep.mubr.f32.mxu0 0.0
        %2565 = vmatmul.mubr.f32.gmra.mrb[0].mxu0 %v2351
        %v2566 = vpop.f32.mrb[0].mxu0
        %v2567 = vadd.f32 0.0, %v2566
        %v2568 = vpop.f32.mrb[0].mxu0
        %2569 = vmatprep.mubr.f32.mxu0 0.0
        %2570 = vmatmul.mubr.f32.gmra.mrb[0].mxu0 %v2354
        %v2571 = vpop.f32.mrb[0].mxu0
        %v2572 = vadd.f32 0.0, %v2571
        %v2573 = vpop.f32.mrb[0].mxu0
        %2574 = vmatprep.mubr.f32.mxu0 0.0
        %2575 = vmatmul.mubr.f32.gmra.mrb[0].mxu0 %v2357
        %v2576 = vpop.f32.mrb[0].mxu0
        %v2577 = vadd.f32 0.0, %v2576
        %v2578 = vpop.f32.mrb[0].mxu0
        %2579 = vmatprep.mubr.f32.mxu0 0.0
        %2580 = vmatmul.mubr.f32.gmra.mrb[0].mxu0 %v2360
        %v2581 = vpop.f32.mrb[0].mxu0
        %v2582 = vadd.f32 0.0, %v2581
        %v2583 = vpop.f32.mrb[0].mxu0
        %2584 = vmatprep.mubr.f32.mxu0 0.0
        %2585 = vmatmul.mubr.f32.gmra.mrb[0].mxu0 %v2363
        %v2586 = vpop.f32.mrb[0].mxu0
        %v2587 = vadd.f32 0.0, %v2586
        %v2588 = vpop.f32.mrb[0].mxu0
        %2589 = vdwg.mxu0
        %v2590 = vadd.f32 %v2205, %v2432
        %v2591 = vadd.f32 %v2206, %v2437
        %v2592 = vadd.f32 %v2207, %v2442
        %v2593 = vadd.f32 %v2208, %v2447
        %v2594 = vadd.f32 %v2209, %v2452
        %v2595 = vadd.f32 %v2210, %v2457
        %v2596 = vadd.f32 %v2211, %v2462
        %v2597 = vadd.f32 %v2212, %v2467
        %v2598 = vadd.f32 %v2213, %v2472
        %v2599 = vadd.f32 %v2214, %v2477
        %v2600 = vadd.f32 %v2215, %v2482
        %v2601 = vadd.f32 %v2216, %v2487
        %v2602 = vadd.f32 %v2217, %v2492
        %v2603 = vadd.f32 %v2218, %v2497
        %v2604 = vadd.f32 %v2219, %v2502
        %v2605 = vadd.f32 %v2220, %v2507
        %v2606 = vadd.f32 %v2221, %v2512
        %v2607 = vadd.f32 %v2222, %v2517
        %v2608 = vadd.f32 %v2223, %v2522
        %v2609 = vadd.f32 %v2224, %v2527
        %v2610 = vadd.f32 %v2225, %v2532
        %v2611 = vadd.f32 %v2226, %v2537
        %v2612 = vadd.f32 %v2227, %v2542
        %v2613 = vadd.f32 %v2228, %v2547
        %v2614 = vadd.f32 %v2229, %v2552
        %v2615 = vadd.f32 %v2230, %v2557
        %v2616 = vadd.f32 %v2231, %v2562
        %v2617 = vadd.f32 %v2232, %v2567
        %v2618 = vadd.f32 %v2233, %v2572
        %v2619 = vadd.f32 %v2234, %v2577
        %v2620 = vadd.f32 %v2235, %v2582
        %v2621 = vadd.f32 %v2236, %v2587
        %v2622 = vld [vmem:[%s675 + $0x2] sm:$0xff]
        %v2623 = vld [vmem:[%s675 + $0xa] sm:$0xff]
        %v2624 = vld [vmem:[%s675 + $0x1a] sm:$0xff]
        %v2625 = vld [vmem:[%s675 + $0x22] sm:$0xff]
        %v2626 = vld [vmem:[%s675 + $0x32] sm:$0xff]
        %v2627 = vld [vmem:[%s675 + $0x3a] sm:$0xff]
        %v2628 = vld [vmem:[%s675 + $0x4a] sm:$0xff]
        %v2629 = vld [vmem:[%s675 + $0x52] sm:$0xff]
        %v2630 = vld [vmem:[%s675 + $0x62] sm:$0xff]
        %v2631 = vld [vmem:[%s675 + $0x6a] sm:$0xff]
        %v2632 = vld [vmem:[%s675 + $0x7a] sm:$0xff]
        %v2633 = vld [vmem:[%s675 + $0x82] sm:$0xff]
        %v2634 = vld [vmem:[%s675 + $0x92] sm:$0xff]
        %v2635 = vld [vmem:[%s675 + $0x9a] sm:$0xff]
        %v2636 = vld [vmem:[%s675 + $0xaa] sm:$0xff]
        %v2637 = vld [vmem:[%s675 + $0xb2] sm:$0xff]
        %v2638 = vld [vmem:[%s675 + $0xc2] sm:$0xff]
        %v2639 = vld [vmem:[%s675 + $0xca] sm:$0xff]
        %v2640 = vld [vmem:[%s675 + $0xda] sm:$0xff]
        %v2641 = vld [vmem:[%s675 + $0xe2] sm:$0xff]
        %v2642 = vld [vmem:[%s675 + $0xf2] sm:$0xff]
        %v2643 = vld [vmem:[%s675 + $0xfa] sm:$0xff]
        %v2644 = vld [vmem:[%s675 + $0x10a] sm:$0xff]
        %v2645 = vld [vmem:[%s675 + $0x112] sm:$0xff]
        %v2646 = vld [vmem:[%s675 + $0x122] sm:$0xff]
        %v2647 = vld [vmem:[%s675 + $0x12a] sm:$0xff]
        %v2648 = vld [vmem:[%s675 + $0x13a] sm:$0xff]
        %v2649 = vld [vmem:[%s675 + $0x142] sm:$0xff]
        %v2650 = vld [vmem:[%s675 + $0x152] sm:$0xff]
        %v2651 = vld [vmem:[%s675 + $0x15a] sm:$0xff]
        %v2652 = vld [vmem:[%s675 + $0x16a] sm:$0xff]
        %v2653 = vld [vmem:[%s675 + $0x172] sm:$0xff]
        %v2655 = vsel %vm676, %v2622, 0
        %v2658 = vsel %vm676, %v2623, 0
        %v2661 = vsel %vm676, %v2624, 0
        %v2664 = vsel %vm676, %v2625, 0
        %v2667 = vsel %vm676, %v2626, 0
        %v2670 = vsel %vm676, %v2627, 0
        %v2673 = vsel %vm676, %v2628, 0
        %v2676 = vsel %vm676, %v2629, 0
        %v2679 = vsel %vm676, %v2630, 0
        %v2682 = vsel %vm676, %v2631, 0
        %v2685 = vsel %vm676, %v2632, 0
        %v2688 = vsel %vm676, %v2633, 0
        %v2691 = vsel %vm676, %v2634, 0
        %v2694 = vsel %vm676, %v2635, 0
        %v2697 = vsel %vm676, %v2636, 0
        %v2700 = vsel %vm676, %v2637, 0
        %v2703 = vsel %vm676, %v2638, 0
        %v2706 = vsel %vm676, %v2639, 0
        %v2709 = vsel %vm676, %v2640, 0
        %v2712 = vsel %vm676, %v2641, 0
        %v2715 = vsel %vm676, %v2642, 0
        %v2718 = vsel %vm676, %v2643, 0
        %v2721 = vsel %vm676, %v2644, 0
        %v2724 = vsel %vm676, %v2645, 0
        %v2727 = vsel %vm676, %v2646, 0
        %v2730 = vsel %vm676, %v2647, 0
        %v2733 = vsel %vm676, %v2648, 0
        %v2736 = vsel %vm676, %v2649, 0
        %v2739 = vsel %vm676, %v2650, 0
        %v2742 = vsel %vm676, %v2651, 0
        %v2745 = vsel %vm676, %v2652, 0
        %v2748 = vsel %vm676, %v2653, 0
        %2750 = vmatprep.subr.mxu0 0.0
        %2751 = vmatpush1.msra.mxu0 %v1851
        %2752 = vmatprep.subr.mxu0 0.0
        %2753 = vmatpush1.msra.mxu0 0.0
        %2754 = vmatprep.subr.mxu0 0.0
        %2755 = vmatpush1.msra.mxu0 0.0
        %2756 = vmatprep.subr.mxu0 0.0
        %2757 = vmatpush1.msra.mxu0 0.0
        %2758 = vmatprep.subr.mxu0 0.0
        %2759 = vmatpush1.msra.mxu0 0.0
        %2760 = vmatprep.subr.mxu0 0.0
        %2761 = vmatpush1.msra.mxu0 0.0
        %2762 = vmatprep.subr.mxu0 0.0
        %2763 = vmatpush1.msra.mxu0 0.0
        %2764 = vmatprep.subr.mxu0 0.0
        %2765 = vmatpush1.msra.mxu0 0.0
        %2766 = vmatprep.subr.mxu0 0.0
        %2767 = vmatpush1.msra.mxu0 0.0
        %2768 = vmatprep.subr.mxu0 0.0
        %2769 = vmatpush1.msra.mxu0 0.0
        %2770 = vmatprep.subr.mxu0 0.0
        %2771 = vmatpush1.msra.mxu0 0.0
        %2772 = vmatprep.subr.mxu0 0.0
        %2773 = vmatpush1.msra.mxu0 0.0
        %2774 = vmatprep.subr.mxu0 0.0
        %2775 = vmatpush1.msra.mxu0 0.0
        %2776 = vmatprep.subr.mxu0 0.0
        %2777 = vmatpush1.msra.mxu0 0.0
        %2778 = vmatprep.subr.mxu0 0.0
        %2779 = vmatpush1.msra.mxu0 0.0
        %2780 = vmatprep.subr.mxu0 0.0
        %2781 = vmatpush1.msra.mxu0 0.0
        %2782 = vmatprep.subr.mxu0 0.0
        %2783 = vmatpush1.msra.mxu0 0.0
        %2784 = vmatprep.subr.mxu0 0.0
        %2785 = vmatpush1.msra.mxu0 0.0
        %2786 = vmatprep.subr.mxu0 0.0
        %2787 = vmatpush1.msra.mxu0 0.0
        %2788 = vmatprep.subr.mxu0 0.0
        %2789 = vmatpush1.msra.mxu0 0.0
        %2790 = vmatprep.subr.mxu0 0.0
        %2791 = vmatpush1.msra.mxu0 0.0
        %2792 = vmatprep.subr.mxu0 0.0
        %2793 = vmatpush1.msra.mxu0 0.0
        %2794 = vmatprep.subr.mxu0 0.0
        %2795 = vmatpush1.msra.mxu0 0.0
        %2796 = vmatprep.subr.mxu0 0.0
        %2797 = vmatpush1.msra.mxu0 0.0
        %2798 = vmatprep.subr.mxu0 0.0
        %2799 = vmatpush1.msra.mxu0 0.0
        %2800 = vmatprep.subr.mxu0 0.0
        %2801 = vmatpush1.msra.mxu0 0.0
        %2802 = vmatprep.subr.mxu0 0.0
        %2803 = vmatpush1.msra.mxu0 0.0
        %2804 = vmatprep.subr.mxu0 0.0
        %2805 = vmatpush1.msra.mxu0 0.0
        %2806 = vmatprep.subr.mxu0 0.0
        %2807 = vmatpush1.msra.mxu0 0.0
        %2808 = vmatprep.subr.mxu0 0.0
        %2809 = vmatpush1.msra.mxu0 0.0
        %2810 = vmatprep.subr.mxu0 0.0
        %2811 = vmatpush1.msra.mxu0 0.0
        %2812 = vmatprep.subr.mxu0 0.0
        %2813 = vmatpush1.msra.mxu0 0.0
        %2814 = vmatprep.mubr.f32.mxu0 0.0
        %2815 = vmatmul.mubr.f32.gmra.mrb[0].mxu0 %v2655
        %v2816 = vpop.f32.mrb[0].mxu0
        %v2817 = vadd.f32 0.0, %v2816
        %v2818 = vpop.f32.mrb[0].mxu0
        %2819 = vmatprep.mubr.f32.mxu0 0.0
        %2820 = vmatmul.mubr.f32.gmra.mrb[0].mxu0 %v2658
        %v2821 = vpop.f32.mrb[0].mxu0
        %v2822 = vadd.f32 0.0, %v2821
        %v2823 = vpop.f32.mrb[0].mxu0
        %2824 = vmatprep.mubr.f32.mxu0 0.0
        %2825 = vmatmul.mubr.f32.gmra.mrb[0].mxu0 %v2661
        %v2826 = vpop.f32.mrb[0].mxu0
        %v2827 = vadd.f32 0.0, %v2826
        %v2828 = vpop.f32.mrb[0].mxu0
        %2829 = vmatprep.mubr.f32.mxu0 0.0
        %2830 = vmatmul.mubr.f32.gmra.mrb[0].mxu0 %v2664
        %v2831 = vpop.f32.mrb[0].mxu0
        %v2832 = vadd.f32 0.0, %v2831
        %v2833 = vpop.f32.mrb[0].mxu0
        %2834 = vmatprep.mubr.f32.mxu0 0.0
        %2835 = vmatmul.mubr.f32.gmra.mrb[0].mxu0 %v2667
        %v2836 = vpop.f32.mrb[0].mxu0
        %v2837 = vadd.f32 0.0, %v2836
        %v2838 = vpop.f32.mrb[0].mxu0
        %2839 = vmatprep.mubr.f32.mxu0 0.0
        %2840 = vmatmul.mubr.f32.gmra.mrb[0].mxu0 %v2670
        %v2841 = vpop.f32.mrb[0].mxu0
        %v2842 = vadd.f32 0.0, %v2841
        %v2843 = vpop.f32.mrb[0].mxu0
        %2844 = vmatprep.mubr.f32.mxu0 0.0
        %2845 = vmatmul.mubr.f32.gmra.mrb[0].mxu0 %v2673
        %v2846 = vpop.f32.mrb[0].mxu0
        %v2847 = vadd.f32 0.0, %v2846
        %v2848 = vpop.f32.mrb[0].mxu0
        %2849 = vmatprep.mubr.f32.mxu0 0.0
        %2850 = vmatmul.mubr.f32.gmra.mrb[0].mxu0 %v2676
        %v2851 = vpop.f32.mrb[0].mxu0
        %v2852 = vadd.f32 0.0, %v2851
        %v2853 = vpop.f32.mrb[0].mxu0
        %2854 = vmatprep.mubr.f32.mxu0 0.0
        %2855 = vmatmul.mubr.f32.gmra.mrb[0].mxu0 %v2679
        %v2856 = vpop.f32.mrb[0].mxu0
        %v2857 = vadd.f32 0.0, %v2856
        %v2858 = vpop.f32.mrb[0].mxu0
        %2859 = vmatprep.mubr.f32.mxu0 0.0
        %2860 = vmatmul.mubr.f32.gmra.mrb[0].mxu0 %v2682
        %v2861 = vpop.f32.mrb[0].mxu0
        %v2862 = vadd.f32 0.0, %v2861
        %v2863 = vpop.f32.mrb[0].mxu0
        %2864 = vmatprep.mubr.f32.mxu0 0.0
        %2865 = vmatmul.mubr.f32.gmra.mrb[0].mxu0 %v2685
        %v2866 = vpop.f32.mrb[0].mxu0
        %v2867 = vadd.f32 0.0, %v2866
        %v2868 = vpop.f32.mrb[0].mxu0
        %2869 = vmatprep.mubr.f32.mxu0 0.0
        %2870 = vmatmul.mubr.f32.gmra.mrb[0].mxu0 %v2688
        %v2871 = vpop.f32.mrb[0].mxu0
        %v2872 = vadd.f32 0.0, %v2871
        %v2873 = vpop.f32.mrb[0].mxu0
        %2874 = vmatprep.mubr.f32.mxu0 0.0
        %2875 = vmatmul.mubr.f32.gmra.mrb[0].mxu0 %v2691
        %v2876 = vpop.f32.mrb[0].mxu0
        %v2877 = vadd.f32 0.0, %v2876
        %v2878 = vpop.f32.mrb[0].mxu0
        %2879 = vmatprep.mubr.f32.mxu0 0.0
        %2880 = vmatmul.mubr.f32.gmra.mrb[0].mxu0 %v2694
        %v2881 = vpop.f32.mrb[0].mxu0
        %v2882 = vadd.f32 0.0, %v2881
        %v2883 = vpop.f32.mrb[0].mxu0
        %2884 = vmatprep.mubr.f32.mxu0 0.0
        %2885 = vmatmul.mubr.f32.gmra.mrb[0].mxu0 %v2697
        %v2886 = vpop.f32.mrb[0].mxu0
        %v2887 = vadd.f32 0.0, %v2886
        %v2888 = vpop.f32.mrb[0].mxu0
        %2889 = vmatprep.mubr.f32.mxu0 0.0
        %2890 = vmatmul.mubr.f32.gmra.mrb[0].mxu0 %v2700
        %v2891 = vpop.f32.mrb[0].mxu0
        %v2892 = vadd.f32 0.0, %v2891
        %v2893 = vpop.f32.mrb[0].mxu0
        %2894 = vmatprep.mubr.f32.mxu0 0.0
        %2895 = vmatmul.mubr.f32.gmra.mrb[0].mxu0 %v2703
        %v2896 = vpop.f32.mrb[0].mxu0
        %v2897 = vadd.f32 0.0, %v2896
        %v2898 = vpop.f32.mrb[0].mxu0
        %2899 = vmatprep.mubr.f32.mxu0 0.0
        %2900 = vmatmul.mubr.f32.gmra.mrb[0].mxu0 %v2706
        %v2901 = vpop.f32.mrb[0].mxu0
        %v2902 = vadd.f32 0.0, %v2901
        %v2903 = vpop.f32.mrb[0].mxu0
        %2904 = vmatprep.mubr.f32.mxu0 0.0
        %2905 = vmatmul.mubr.f32.gmra.mrb[0].mxu0 %v2709
        %v2906 = vpop.f32.mrb[0].mxu0
        %v2907 = vadd.f32 0.0, %v2906
        %v2908 = vpop.f32.mrb[0].mxu0
        %2909 = vmatprep.mubr.f32.mxu0 0.0
        %2910 = vmatmul.mubr.f32.gmra.mrb[0].mxu0 %v2712
        %v2911 = vpop.f32.mrb[0].mxu0
        %v2912 = vadd.f32 0.0, %v2911
        %v2913 = vpop.f32.mrb[0].mxu0
        %2914 = vmatprep.mubr.f32.mxu0 0.0
        %2915 = vmatmul.mubr.f32.gmra.mrb[0].mxu0 %v2715
        %v2916 = vpop.f32.mrb[0].mxu0
        %v2917 = vadd.f32 0.0, %v2916
        %v2918 = vpop.f32.mrb[0].mxu0
        %2919 = vmatprep.mubr.f32.mxu0 0.0
        %2920 = vmatmul.mubr.f32.gmra.mrb[0].mxu0 %v2718
        %v2921 = vpop.f32.mrb[0].mxu0
        %v2922 = vadd.f32 0.0, %v2921
        %v2923 = vpop.f32.mrb[0].mxu0
        %2924 = vmatprep.mubr.f32.mxu0 0.0
        %2925 = vmatmul.mubr.f32.gmra.mrb[0].mxu0 %v2721
        %v2926 = vpop.f32.mrb[0].mxu0
        %v2927 = vadd.f32 0.0, %v2926
        %v2928 = vpop.f32.mrb[0].mxu0
        %2929 = vmatprep.mubr.f32.mxu0 0.0
        %2930 = vmatmul.mubr.f32.gmra.mrb[0].mxu0 %v2724
        %v2931 = vpop.f32.mrb[0].mxu0
        %v2932 = vadd.f32 0.0, %v2931
        %v2933 = vpop.f32.mrb[0].mxu0
        %2934 = vmatprep.mubr.f32.mxu0 0.0
        %2935 = vmatmul.mubr.f32.gmra.mrb[0].mxu0 %v2727
        %v2936 = vpop.f32.mrb[0].mxu0
        %v2937 = vadd.f32 0.0, %v2936
        %v2938 = vpop.f32.mrb[0].mxu0
        %2939 = vmatprep.mubr.f32.mxu0 0.0
        %2940 = vmatmul.mubr.f32.gmra.mrb[0].mxu0 %v2730
        %v2941 = vpop.f32.mrb[0].mxu0
        %v2942 = vadd.f32 0.0, %v2941
        %v2943 = vpop.f32.mrb[0].mxu0
        %2944 = vmatprep.mubr.f32.mxu0 0.0
        %2945 = vmatmul.mubr.f32.gmra.mrb[0].mxu0 %v2733
        %v2946 = vpop.f32.mrb[0].mxu0
        %v2947 = vadd.f32 0.0, %v2946
        %v2948 = vpop.f32.mrb[0].mxu0
        %2949 = vmatprep.mubr.f32.mxu0 0.0
        %2950 = vmatmul.mubr.f32.gmra.mrb[0].mxu0 %v2736
        %v2951 = vpop.f32.mrb[0].mxu0
        %v2952 = vadd.f32 0.0, %v2951
        %v2953 = vpop.f32.mrb[0].mxu0
        %2954 = vmatprep.mubr.f32.mxu0 0.0
        %2955 = vmatmul.mubr.f32.gmra.mrb[0].mxu0 %v2739
        %v2956 = vpop.f32.mrb[0].mxu0
        %v2957 = vadd.f32 0.0, %v2956
        %v2958 = vpop.f32.mrb[0].mxu0
        %2959 = vmatprep.mubr.f32.mxu0 0.0
        %2960 = vmatmul.mubr.f32.gmra.mrb[0].mxu0 %v2742
        %v2961 = vpop.f32.mrb[0].mxu0
        %v2962 = vadd.f32 0.0, %v2961
        %v2963 = vpop.f32.mrb[0].mxu0
        %2964 = vmatprep.mubr.f32.mxu0 0.0
        %2965 = vmatmul.mubr.f32.gmra.mrb[0].mxu0 %v2745
        %v2966 = vpop.f32.mrb[0].mxu0
        %v2967 = vadd.f32 0.0, %v2966
        %v2968 = vpop.f32.mrb[0].mxu0
        %2969 = vmatprep.mubr.f32.mxu0 0.0
        %2970 = vmatmul.mubr.f32.gmra.mrb[0].mxu0 %v2748
        %v2971 = vpop.f32.mrb[0].mxu0
        %v2972 = vadd.f32 0.0, %v2971
        %v2973 = vpop.f32.mrb[0].mxu0
        %2974 = vdwg.mxu0
        %v2975 = vadd.f32 %v2590, %v2817
        %v2976 = vadd.f32 %v2591, %v2822
        %v2977 = vadd.f32 %v2592, %v2827
        %v2978 = vadd.f32 %v2593, %v2832
        %v2979 = vadd.f32 %v2594, %v2837
        %v2980 = vadd.f32 %v2595, %v2842
        %v2981 = vadd.f32 %v2596, %v2847
        %v2982 = vadd.f32 %v2597, %v2852
        %v2983 = vadd.f32 %v2598, %v2857
        %v2984 = vadd.f32 %v2599, %v2862
        %v2985 = vadd.f32 %v2600, %v2867
        %v2986 = vadd.f32 %v2601, %v2872
        %v2987 = vadd.f32 %v2602, %v2877
        %v2988 = vadd.f32 %v2603, %v2882
        %v2989 = vadd.f32 %v2604, %v2887
        %v2990 = vadd.f32 %v2605, %v2892
        %v2991 = vadd.f32 %v2606, %v2897
        %v2992 = vadd.f32 %v2607, %v2902
        %v2993 = vadd.f32 %v2608, %v2907
        %v2994 = vadd.f32 %v2609, %v2912
        %v2995 = vadd.f32 %v2610, %v2917
        %v2996 = vadd.f32 %v2611, %v2922
        %v2997 = vadd.f32 %v2612, %v2927
        %v2998 = vadd.f32 %v2613, %v2932
        %v2999 = vadd.f32 %v2614, %v2937
        %v3000 = vadd.f32 %v2615, %v2942
        %v3001 = vadd.f32 %v2616, %v2947
        %v3002 = vadd.f32 %v2617, %v2952
        %v3003 = vadd.f32 %v2618, %v2957
        %v3004 = vadd.f32 %v2619, %v2962
        %v3005 = vadd.f32 %v2620, %v2967
        %v3006 = vadd.f32 %v2621, %v2972
        %s3007 = scalar_lea.vmem %s3, 48
        %v3008 = vld [vmem:[%s3007] sm:$0xff]
        %v3009 = vld [vmem:[%s3007 + $0x8] sm:$0xff]
        %v3010 = vld [vmem:[%s3007 + $0x10] sm:$0xff]
        %s3011 = scalar_lea.vmem [#allocation2], 48
        %v3012 = vld [vmem:[%s3011] sm:$0xff]
        %v3013 = vld [vmem:[%s3011 + $0x8] sm:$0xff]
        %v3014 = vld [vmem:[%s3011 + $0x18] sm:$0xff]
        %v3015 = vld [vmem:[%s3011 + $0x20] sm:$0xff]
        %v3016 = vld [vmem:[%s3011 + $0x30] sm:$0xff]
        %v3017 = vld [vmem:[%s3011 + $0x38] sm:$0xff]
        %v3018 = vld [vmem:[%s3011 + $0x48] sm:$0xff]
        %v3019 = vld [vmem:[%s3011 + $0x50] sm:$0xff]
        %v3020 = vld [vmem:[%s3011 + $0x60] sm:$0xff]
        %v3021 = vld [vmem:[%s3011 + $0x68] sm:$0xff]
        %v3022 = vld [vmem:[%s3011 + $0x78] sm:$0xff]
        %v3023 = vld [vmem:[%s3011 + $0x80] sm:$0xff]
        %v3024 = vld [vmem:[%s3011 + $0x90] sm:$0xff]
        %v3025 = vld [vmem:[%s3011 + $0x98] sm:$0xff]
        %v3026 = vld [vmem:[%s3011 + $0xa8] sm:$0xff]
        %v3027 = vld [vmem:[%s3011 + $0xb0] sm:$0xff]
        %v3028 = vld [vmem:[%s3011 + $0xc0] sm:$0xff]
        %v3029 = vld [vmem:[%s3011 + $0xc8] sm:$0xff]
        %v3030 = vld [vmem:[%s3011 + $0xd8] sm:$0xff]
        %v3031 = vld [vmem:[%s3011 + $0xe0] sm:$0xff]
        %v3032 = vld [vmem:[%s3011 + $0xf0] sm:$0xff]
        %v3033 = vld [vmem:[%s3011 + $0xf8] sm:$0xff]
        %v3034 = vld [vmem:[%s3011 + $0x108] sm:$0xff]
        %v3035 = vld [vmem:[%s3011 + $0x110] sm:$0xff]
        %v3036 = vld [vmem:[%s3011 + $0x120] sm:$0xff]
        %v3037 = vld [vmem:[%s3011 + $0x128] sm:$0xff]
        %v3038 = vld [vmem:[%s3011 + $0x138] sm:$0xff]
        %v3039 = vld [vmem:[%s3011 + $0x140] sm:$0xff]
        %v3040 = vld [vmem:[%s3011 + $0x150] sm:$0xff]
        %v3041 = vld [vmem:[%s3011 + $0x158] sm:$0xff]
        %v3042 = vld [vmem:[%s3011 + $0x168] sm:$0xff]
        %v3043 = vld [vmem:[%s3011 + $0x170] sm:$0xff]
        %v3045 = vsel %vm676, %v3012, 0
        %v3048 = vsel %vm676, %v3013, 0
        %v3051 = vsel %vm676, %v3014, 0
        %v3054 = vsel %vm676, %v3015, 0
        %v3057 = vsel %vm676, %v3016, 0
        %v3060 = vsel %vm676, %v3017, 0
        %v3063 = vsel %vm676, %v3018, 0
        %v3066 = vsel %vm676, %v3019, 0
        %v3069 = vsel %vm676, %v3020, 0
        %v3072 = vsel %vm676, %v3021, 0
        %v3075 = vsel %vm676, %v3022, 0
        %v3078 = vsel %vm676, %v3023, 0
        %v3081 = vsel %vm676, %v3024, 0
        %v3084 = vsel %vm676, %v3025, 0
        %v3087 = vsel %vm676, %v3026, 0
        %v3090 = vsel %vm676, %v3027, 0
        %v3093 = vsel %vm676, %v3028, 0
        %v3096 = vsel %vm676, %v3029, 0
        %v3099 = vsel %vm676, %v3030, 0
        %v3102 = vsel %vm676, %v3031, 0
        %v3105 = vsel %vm676, %v3032, 0
        %v3108 = vsel %vm676, %v3033, 0
        %v3111 = vsel %vm676, %v3034, 0
        %v3114 = vsel %vm676, %v3035, 0
        %v3117 = vsel %vm676, %v3036, 0
        %v3120 = vsel %vm676, %v3037, 0
        %v3123 = vsel %vm676, %v3038, 0
        %v3126 = vsel %vm676, %v3039, 0
        %v3129 = vsel %vm676, %v3040, 0
        %v3132 = vsel %vm676, %v3041, 0
        %v3135 = vsel %vm676, %v3042, 0
        %v3138 = vsel %vm676, %v3043, 0
        %3140 = vmatprep.subr.mxu0 0.0
        %3141 = vmatpush1.msra.mxu0 %v3008
        %3142 = vmatprep.subr.mxu0 0.0
        %3143 = vmatpush1.msra.mxu0 0.0
        %3144 = vmatprep.subr.mxu0 0.0
        %3145 = vmatpush1.msra.mxu0 0.0
        %3146 = vmatprep.subr.mxu0 0.0
        %3147 = vmatpush1.msra.mxu0 0.0
        %3148 = vmatprep.subr.mxu0 0.0
        %3149 = vmatpush1.msra.mxu0 0.0
        %3150 = vmatprep.subr.mxu0 0.0
        %3151 = vmatpush1.msra.mxu0 0.0
        %3152 = vmatprep.subr.mxu0 0.0
        %3153 = vmatpush1.msra.mxu0 0.0
        %3154 = vmatprep.subr.mxu0 0.0
        %3155 = vmatpush1.msra.mxu0 0.0
        %3156 = vmatprep.subr.mxu0 0.0
        %3157 = vmatpush1.msra.mxu0 0.0
        %3158 = vmatprep.subr.mxu0 0.0
        %3159 = vmatpush1.msra.mxu0 0.0
        %3160 = vmatprep.subr.mxu0 0.0
        %3161 = vmatpush1.msra.mxu0 0.0
        %3162 = vmatprep.subr.mxu0 0.0
        %3163 = vmatpush1.msra.mxu0 0.0
        %3164 = vmatprep.subr.mxu0 0.0
        %3165 = vmatpush1.msra.mxu0 0.0
        %3166 = vmatprep.subr.mxu0 0.0
        %3167 = vmatpush1.msra.mxu0 0.0
        %3168 = vmatprep.subr.mxu0 0.0
        %3169 = vmatpush1.msra.mxu0 0.0
        %3170 = vmatprep.subr.mxu0 0.0
        %3171 = vmatpush1.msra.mxu0 0.0
        %3172 = vmatprep.subr.mxu0 0.0
        %3173 = vmatpush1.msra.mxu0 0.0
        %3174 = vmatprep.subr.mxu0 0.0
        %3175 = vmatpush1.msra.mxu0 0.0
        %3176 = vmatprep.subr.mxu0 0.0
        %3177 = vmatpush1.msra.mxu0 0.0
        %3178 = vmatprep.subr.mxu0 0.0
        %3179 = vmatpush1.msra.mxu0 0.0
        %3180 = vmatprep.subr.mxu0 0.0
        %3181 = vmatpush1.msra.mxu0 0.0
        %3182 = vmatprep.subr.mxu0 0.0
        %3183 = vmatpush1.msra.mxu0 0.0
        %3184 = vmatprep.subr.mxu0 0.0
        %3185 = vmatpush1.msra.mxu0 0.0
        %3186 = vmatprep.subr.mxu0 0.0
        %3187 = vmatpush1.msra.mxu0 0.0
        %3188 = vmatprep.subr.mxu0 0.0
        %3189 = vmatpush1.msra.mxu0 0.0
        %3190 = vmatprep.subr.mxu0 0.0
        %3191 = vmatpush1.msra.mxu0 0.0
        %3192 = vmatprep.subr.mxu0 0.0
        %3193 = vmatpush1.msra.mxu0 0.0
        %3194 = vmatprep.subr.mxu0 0.0
        %3195 = vmatpush1.msra.mxu0 0.0
        %3196 = vmatprep.subr.mxu0 0.0
        %3197 = vmatpush1.msra.mxu0 0.0
        %3198 = vmatprep.subr.mxu0 0.0
        %3199 = vmatpush1.msra.mxu0 0.0
        %3200 = vmatprep.subr.mxu0 0.0
        %3201 = vmatpush1.msra.mxu0 0.0
        %3202 = vmatprep.subr.mxu0 0.0
        %3203 = vmatpush1.msra.mxu0 0.0
        %3204 = vmatprep.mubr.f32.mxu0 0.0
        %3205 = vmatmul.mubr.f32.gmra.mrb[0].mxu0 %v3045
        %v3206 = vpop.f32.mrb[0].mxu0
        %v3207 = vadd.f32 0.0, %v3206
        %v3208 = vpop.f32.mrb[0].mxu0
        %3209 = vmatprep.mubr.f32.mxu0 0.0
        %3210 = vmatmul.mubr.f32.gmra.mrb[0].mxu0 %v3048
        %v3211 = vpop.f32.mrb[0].mxu0
        %v3212 = vadd.f32 0.0, %v3211
        %v3213 = vpop.f32.mrb[0].mxu0
        %3214 = vmatprep.mubr.f32.mxu0 0.0
        %3215 = vmatmul.mubr.f32.gmra.mrb[0].mxu0 %v3051
        %v3216 = vpop.f32.mrb[0].mxu0
        %v3217 = vadd.f32 0.0, %v3216
        %v3218 = vpop.f32.mrb[0].mxu0
        %3219 = vmatprep.mubr.f32.mxu0 0.0
        %3220 = vmatmul.mubr.f32.gmra.mrb[0].mxu0 %v3054
        %v3221 = vpop.f32.mrb[0].mxu0
        %v3222 = vadd.f32 0.0, %v3221
        %v3223 = vpop.f32.mrb[0].mxu0
        %3224 = vmatprep.mubr.f32.mxu0 0.0
        %3225 = vmatmul.mubr.f32.gmra.mrb[0].mxu0 %v3057
        %v3226 = vpop.f32.mrb[0].mxu0
        %v3227 = vadd.f32 0.0, %v3226
        %v3228 = vpop.f32.mrb[0].mxu0
        %3229 = vmatprep.mubr.f32.mxu0 0.0
        %3230 = vmatmul.mubr.f32.gmra.mrb[0].mxu0 %v3060
        %v3231 = vpop.f32.mrb[0].mxu0
        %v3232 = vadd.f32 0.0, %v3231
        %v3233 = vpop.f32.mrb[0].mxu0
        %3234 = vmatprep.mubr.f32.mxu0 0.0
        %3235 = vmatmul.mubr.f32.gmra.mrb[0].mxu0 %v3063
        %v3236 = vpop.f32.mrb[0].mxu0
        %v3237 = vadd.f32 0.0, %v3236
        %v3238 = vpop.f32.mrb[0].mxu0
        %3239 = vmatprep.mubr.f32.mxu0 0.0
        %3240 = vmatmul.mubr.f32.gmra.mrb[0].mxu0 %v3066
        %v3241 = vpop.f32.mrb[0].mxu0
        %v3242 = vadd.f32 0.0, %v3241
        %v3243 = vpop.f32.mrb[0].mxu0
        %3244 = vmatprep.mubr.f32.mxu0 0.0
        %3245 = vmatmul.mubr.f32.gmra.mrb[0].mxu0 %v3069
        %v3246 = vpop.f32.mrb[0].mxu0
        %v3247 = vadd.f32 0.0, %v3246
        %v3248 = vpop.f32.mrb[0].mxu0
        %3249 = vmatprep.mubr.f32.mxu0 0.0
        %3250 = vmatmul.mubr.f32.gmra.mrb[0].mxu0 %v3072
        %v3251 = vpop.f32.mrb[0].mxu0
        %v3252 = vadd.f32 0.0, %v3251
        %v3253 = vpop.f32.mrb[0].mxu0
        %3254 = vmatprep.mubr.f32.mxu0 0.0
        %3255 = vmatmul.mubr.f32.gmra.mrb[0].mxu0 %v3075
        %v3256 = vpop.f32.mrb[0].mxu0
        %v3257 = vadd.f32 0.0, %v3256
        %v3258 = vpop.f32.mrb[0].mxu0
        %3259 = vmatprep.mubr.f32.mxu0 0.0
        %3260 = vmatmul.mubr.f32.gmra.mrb[0].mxu0 %v3078
        %v3261 = vpop.f32.mrb[0].mxu0
        %v3262 = vadd.f32 0.0, %v3261
        %v3263 = vpop.f32.mrb[0].mxu0
        %3264 = vmatprep.mubr.f32.mxu0 0.0
        %3265 = vmatmul.mubr.f32.gmra.mrb[0].mxu0 %v3081
        %v3266 = vpop.f32.mrb[0].mxu0
        %v3267 = vadd.f32 0.0, %v3266
        %v3268 = vpop.f32.mrb[0].mxu0
        %3269 = vmatprep.mubr.f32.mxu0 0.0
        %3270 = vmatmul.mubr.f32.gmra.mrb[0].mxu0 %v3084
        %v3271 = vpop.f32.mrb[0].mxu0
        %v3272 = vadd.f32 0.0, %v3271
        %v3273 = vpop.f32.mrb[0].mxu0
        %3274 = vmatprep.mubr.f32.mxu0 0.0
        %3275 = vmatmul.mubr.f32.gmra.mrb[0].mxu0 %v3087
        %v3276 = vpop.f32.mrb[0].mxu0
        %v3277 = vadd.f32 0.0, %v3276
        %v3278 = vpop.f32.mrb[0].mxu0
        %3279 = vmatprep.mubr.f32.mxu0 0.0
        %3280 = vmatmul.mubr.f32.gmra.mrb[0].mxu0 %v3090
        %v3281 = vpop.f32.mrb[0].mxu0
        %v3282 = vadd.f32 0.0, %v3281
        %v3283 = vpop.f32.mrb[0].mxu0
        %3284 = vmatprep.mubr.f32.mxu0 0.0
        %3285 = vmatmul.mubr.f32.gmra.mrb[0].mxu0 %v3093
        %v3286 = vpop.f32.mrb[0].mxu0
        %v3287 = vadd.f32 0.0, %v3286
        %v3288 = vpop.f32.mrb[0].mxu0
        %3289 = vmatprep.mubr.f32.mxu0 0.0
        %3290 = vmatmul.mubr.f32.gmra.mrb[0].mxu0 %v3096
        %v3291 = vpop.f32.mrb[0].mxu0
        %v3292 = vadd.f32 0.0, %v3291
        %v3293 = vpop.f32.mrb[0].mxu0
        %3294 = vmatprep.mubr.f32.mxu0 0.0
        %3295 = vmatmul.mubr.f32.gmra.mrb[0].mxu0 %v3099
        %v3296 = vpop.f32.mrb[0].mxu0
        %v3297 = vadd.f32 0.0, %v3296
        %v3298 = vpop.f32.mrb[0].mxu0
        %3299 = vmatprep.mubr.f32.mxu0 0.0
        %3300 = vmatmul.mubr.f32.gmra.mrb[0].mxu0 %v3102
        %v3301 = vpop.f32.mrb[0].mxu0
        %v3302 = vadd.f32 0.0, %v3301
        %v3303 = vpop.f32.mrb[0].mxu0
        %3304 = vmatprep.mubr.f32.mxu0 0.0
        %3305 = vmatmul.mubr.f32.gmra.mrb[0].mxu0 %v3105
        %v3306 = vpop.f32.mrb[0].mxu0
        %v3307 = vadd.f32 0.0, %v3306
        %v3308 = vpop.f32.mrb[0].mxu0
        %3309 = vmatprep.mubr.f32.mxu0 0.0
        %3310 = vmatmul.mubr.f32.gmra.mrb[0].mxu0 %v3108
        %v3311 = vpop.f32.mrb[0].mxu0
        %v3312 = vadd.f32 0.0, %v3311
        %v3313 = vpop.f32.mrb[0].mxu0
        %3314 = vmatprep.mubr.f32.mxu0 0.0
        %3315 = vmatmul.mubr.f32.gmra.mrb[0].mxu0 %v3111
        %v3316 = vpop.f32.mrb[0].mxu0
        %v3317 = vadd.f32 0.0, %v3316
        %v3318 = vpop.f32.mrb[0].mxu0
        %3319 = vmatprep.mubr.f32.mxu0 0.0
        %3320 = vmatmul.mubr.f32.gmra.mrb[0].mxu0 %v3114
        %v3321 = vpop.f32.mrb[0].mxu0
        %v3322 = vadd.f32 0.0, %v3321
        %v3323 = vpop.f32.mrb[0].mxu0
        %3324 = vmatprep.mubr.f32.mxu0 0.0
        %3325 = vmatmul.mubr.f32.gmra.mrb[0].mxu0 %v3117
        %v3326 = vpop.f32.mrb[0].mxu0
        %v3327 = vadd.f32 0.0, %v3326
        %v3328 = vpop.f32.mrb[0].mxu0
        %3329 = vmatprep.mubr.f32.mxu0 0.0
        %3330 = vmatmul.mubr.f32.gmra.mrb[0].mxu0 %v3120
        %v3331 = vpop.f32.mrb[0].mxu0
        %v3332 = vadd.f32 0.0, %v3331
        %v3333 = vpop.f32.mrb[0].mxu0
        %3334 = vmatprep.mubr.f32.mxu0 0.0
        %3335 = vmatmul.mubr.f32.gmra.mrb[0].mxu0 %v3123
        %v3336 = vpop.f32.mrb[0].mxu0
        %v3337 = vadd.f32 0.0, %v3336
        %v3338 = vpop.f32.mrb[0].mxu0
        %3339 = vmatprep.mubr.f32.mxu0 0.0
        %3340 = vmatmul.mubr.f32.gmra.mrb[0].mxu0 %v3126
        %v3341 = vpop.f32.mrb[0].mxu0
        %v3342 = vadd.f32 0.0, %v3341
        %v3343 = vpop.f32.mrb[0].mxu0
        %3344 = vmatprep.mubr.f32.mxu0 0.0
        %3345 = vmatmul.mubr.f32.gmra.mrb[0].mxu0 %v3129
        %v3346 = vpop.f32.mrb[0].mxu0
        %v3347 = vadd.f32 0.0, %v3346
        %v3348 = vpop.f32.mrb[0].mxu0
        %3349 = vmatprep.mubr.f32.mxu0 0.0
        %3350 = vmatmul.mubr.f32.gmra.mrb[0].mxu0 %v3132
        %v3351 = vpop.f32.mrb[0].mxu0
        %v3352 = vadd.f32 0.0, %v3351
        %v3353 = vpop.f32.mrb[0].mxu0
        %3354 = vmatprep.mubr.f32.mxu0 0.0
        %3355 = vmatmul.mubr.f32.gmra.mrb[0].mxu0 %v3135
        %v3356 = vpop.f32.mrb[0].mxu0
        %v3357 = vadd.f32 0.0, %v3356
        %v3358 = vpop.f32.mrb[0].mxu0
        %3359 = vmatprep.mubr.f32.mxu0 0.0
        %3360 = vmatmul.mubr.f32.gmra.mrb[0].mxu0 %v3138
        %v3361 = vpop.f32.mrb[0].mxu0
        %v3362 = vadd.f32 0.0, %v3361
        %v3363 = vpop.f32.mrb[0].mxu0
        %3364 = vdwg.mxu0
        %v3365 = vadd.f32 %v2975, %v3207
        %v3366 = vadd.f32 %v2976, %v3212
        %v3367 = vadd.f32 %v2977, %v3217
        %v3368 = vadd.f32 %v2978, %v3222
        %v3369 = vadd.f32 %v2979, %v3227
        %v3370 = vadd.f32 %v2980, %v3232
        %v3371 = vadd.f32 %v2981, %v3237
        %v3372 = vadd.f32 %v2982, %v3242
        %v3373 = vadd.f32 %v2983, %v3247
        %v3374 = vadd.f32 %v2984, %v3252
        %v3375 = vadd.f32 %v2985, %v3257
        %v3376 = vadd.f32 %v2986, %v3262
        %v3377 = vadd.f32 %v2987, %v3267
        %v3378 = vadd.f32 %v2988, %v3272
        %v3379 = vadd.f32 %v2989, %v3277
        %v3380 = vadd.f32 %v2990, %v3282
        %v3381 = vadd.f32 %v2991, %v3287
        %v3382 = vadd.f32 %v2992, %v3292
        %v3383 = vadd.f32 %v2993, %v3297
        %v3384 = vadd.f32 %v2994, %v3302
        %v3385 = vadd.f32 %v2995, %v3307
        %v3386 = vadd.f32 %v2996, %v3312
        %v3387 = vadd.f32 %v2997, %v3317
        %v3388 = vadd.f32 %v2998, %v3322
        %v3389 = vadd.f32 %v2999, %v3327
        %v3390 = vadd.f32 %v3000, %v3332
        %v3391 = vadd.f32 %v3001, %v3337
        %v3392 = vadd.f32 %v3002, %v3342
        %v3393 = vadd.f32 %v3003, %v3347
        %v3394 = vadd.f32 %v3004, %v3352
        %v3395 = vadd.f32 %v3005, %v3357
        %v3396 = vadd.f32 %v3006, %v3362
        %v3397 = vld [vmem:[%s3011 + $0x1] sm:$0xff]
        %v3398 = vld [vmem:[%s3011 + $0x9] sm:$0xff]
        %v3399 = vld [vmem:[%s3011 + $0x19] sm:$0xff]
        %v3400 = vld [vmem:[%s3011 + $0x21] sm:$0xff]
        %v3401 = vld [vmem:[%s3011 + $0x31] sm:$0xff]
        %v3402 = vld [vmem:[%s3011 + $0x39] sm:$0xff]
        %v3403 = vld [vmem:[%s3011 + $0x49] sm:$0xff]
        %v3404 = vld [vmem:[%s3011 + $0x51] sm:$0xff]
        %v3405 = vld [vmem:[%s3011 + $0x61] sm:$0xff]
        %v3406 = vld [vmem:[%s3011 + $0x69] sm:$0xff]
        %v3407 = vld [vmem:[%s3011 + $0x79] sm:$0xff]
        %v3408 = vld [vmem:[%s3011 + $0x81] sm:$0xff]
        %v3409 = vld [vmem:[%s3011 + $0x91] sm:$0xff]
        %v3410 = vld [vmem:[%s3011 + $0x99] sm:$0xff]
        %v3411 = vld [vmem:[%s3011 + $0xa9] sm:$0xff]
        %v3412 = vld [vmem:[%s3011 + $0xb1] sm:$0xff]
        %v3413 = vld [vmem:[%s3011 + $0xc1] sm:$0xff]
        %v3414 = vld [vmem:[%s3011 + $0xc9] sm:$0xff]
        %v3415 = vld [vmem:[%s3011 + $0xd9] sm:$0xff]
        %v3416 = vld [vmem:[%s3011 + $0xe1] sm:$0xff]
        %v3417 = vld [vmem:[%s3011 + $0xf1] sm:$0xff]
        %v3418 = vld [vmem:[%s3011 + $0xf9] sm:$0xff]
        %v3419 = vld [vmem:[%s3011 + $0x109] sm:$0xff]
        %v3420 = vld [vmem:[%s3011 + $0x111] sm:$0xff]
        %v3421 = vld [vmem:[%s3011 + $0x121] sm:$0xff]
        %v3422 = vld [vmem:[%s3011 + $0x129] sm:$0xff]
        %v3423 = vld [vmem:[%s3011 + $0x139] sm:$0xff]
        %v3424 = vld [vmem:[%s3011 + $0x141] sm:$0xff]
        %v3425 = vld [vmem:[%s3011 + $0x151] sm:$0xff]
        %v3426 = vld [vmem:[%s3011 + $0x159] sm:$0xff]
        %v3427 = vld [vmem:[%s3011 + $0x169] sm:$0xff]
        %v3428 = vld [vmem:[%s3011 + $0x171] sm:$0xff]
        %v3430 = vsel %vm676, %v3397, 0
        %v3433 = vsel %vm676, %v3398, 0
        %v3436 = vsel %vm676, %v3399, 0
        %v3439 = vsel %vm676, %v3400, 0
        %v3442 = vsel %vm676, %v3401, 0
        %v3445 = vsel %vm676, %v3402, 0
        %v3448 = vsel %vm676, %v3403, 0
        %v3451 = vsel %vm676, %v3404, 0
        %v3454 = vsel %vm676, %v3405, 0
        %v3457 = vsel %vm676, %v3406, 0
        %v3460 = vsel %vm676, %v3407, 0
        %v3463 = vsel %vm676, %v3408, 0
        %v3466 = vsel %vm676, %v3409, 0
        %v3469 = vsel %vm676, %v3410, 0
        %v3472 = vsel %vm676, %v3411, 0
        %v3475 = vsel %vm676, %v3412, 0
        %v3478 = vsel %vm676, %v3413, 0
        %v3481 = vsel %vm676, %v3414, 0
        %v3484 = vsel %vm676, %v3415, 0
        %v3487 = vsel %vm676, %v3416, 0
        %v3490 = vsel %vm676, %v3417, 0
        %v3493 = vsel %vm676, %v3418, 0
        %v3496 = vsel %vm676, %v3419, 0
        %v3499 = vsel %vm676, %v3420, 0
        %v3502 = vsel %vm676, %v3421, 0
        %v3505 = vsel %vm676, %v3422, 0
        %v3508 = vsel %vm676, %v3423, 0
        %v3511 = vsel %vm676, %v3424, 0
        %v3514 = vsel %vm676, %v3425, 0
        %v3517 = vsel %vm676, %v3426, 0
        %v3520 = vsel %vm676, %v3427, 0
        %v3523 = vsel %vm676, %v3428, 0
        %3525 = vmatprep.subr.mxu0 0.0
        %3526 = vmatpush1.msra.mxu0 %v3009
        %3527 = vmatprep.subr.mxu0 0.0
        %3528 = vmatpush1.msra.mxu0 0.0
        %3529 = vmatprep.subr.mxu0 0.0
        %3530 = vmatpush1.msra.mxu0 0.0
        %3531 = vmatprep.subr.mxu0 0.0
        %3532 = vmatpush1.msra.mxu0 0.0
        %3533 = vmatprep.subr.mxu0 0.0
        %3534 = vmatpush1.msra.mxu0 0.0
        %3535 = vmatprep.subr.mxu0 0.0
        %3536 = vmatpush1.msra.mxu0 0.0
        %3537 = vmatprep.subr.mxu0 0.0
        %3538 = vmatpush1.msra.mxu0 0.0
        %3539 = vmatprep.subr.mxu0 0.0
        %3540 = vmatpush1.msra.mxu0 0.0
        %3541 = vmatprep.subr.mxu0 0.0
        %3542 = vmatpush1.msra.mxu0 0.0
        %3543 = vmatprep.subr.mxu0 0.0
        %3544 = vmatpush1.msra.mxu0 0.0
        %3545 = vmatprep.subr.mxu0 0.0
        %3546 = vmatpush1.msra.mxu0 0.0
        %3547 = vmatprep.subr.mxu0 0.0
        %3548 = vmatpush1.msra.mxu0 0.0
        %3549 = vmatprep.subr.mxu0 0.0
        %3550 = vmatpush1.msra.mxu0 0.0
        %3551 = vmatprep.subr.mxu0 0.0
        %3552 = vmatpush1.msra.mxu0 0.0
        %3553 = vmatprep.subr.mxu0 0.0
        %3554 = vmatpush1.msra.mxu0 0.0
        %3555 = vmatprep.subr.mxu0 0.0
        %3556 = vmatpush1.msra.mxu0 0.0
        %3557 = vmatprep.subr.mxu0 0.0
        %3558 = vmatpush1.msra.mxu0 0.0
        %3559 = vmatprep.subr.mxu0 0.0
        %3560 = vmatpush1.msra.mxu0 0.0
        %3561 = vmatprep.subr.mxu0 0.0
        %3562 = vmatpush1.msra.mxu0 0.0
        %3563 = vmatprep.subr.mxu0 0.0
        %3564 = vmatpush1.msra.mxu0 0.0
        %3565 = vmatprep.subr.mxu0 0.0
        %3566 = vmatpush1.msra.mxu0 0.0
        %3567 = vmatprep.subr.mxu0 0.0
        %3568 = vmatpush1.msra.mxu0 0.0
        %3569 = vmatprep.subr.mxu0 0.0
        %3570 = vmatpush1.msra.mxu0 0.0
        %3571 = vmatprep.subr.mxu0 0.0
        %3572 = vmatpush1.msra.mxu0 0.0
        %3573 = vmatprep.subr.mxu0 0.0
        %3574 = vmatpush1.msra.mxu0 0.0
        %3575 = vmatprep.subr.mxu0 0.0
        %3576 = vmatpush1.msra.mxu0 0.0
        %3577 = vmatprep.subr.mxu0 0.0
        %3578 = vmatpush1.msra.mxu0 0.0
        %3579 = vmatprep.subr.mxu0 0.0
        %3580 = vmatpush1.msra.mxu0 0.0
        %3581 = vmatprep.subr.mxu0 0.0
        %3582 = vmatpush1.msra.mxu0 0.0
        %3583 = vmatprep.subr.mxu0 0.0
        %3584 = vmatpush1.msra.mxu0 0.0
        %3585 = vmatprep.subr.mxu0 0.0
        %3586 = vmatpush1.msra.mxu0 0.0
        %3587 = vmatprep.subr.mxu0 0.0
        %3588 = vmatpush1.msra.mxu0 0.0
        %3589 = vmatprep.mubr.f32.mxu0 0.0
        %3590 = vmatmul.mubr.f32.gmra.mrb[0].mxu0 %v3430
        %v3591 = vpop.f32.mrb[0].mxu0
        %v3592 = vadd.f32 0.0, %v3591
        %v3593 = vpop.f32.mrb[0].mxu0
        %3594 = vmatprep.mubr.f32.mxu0 0.0
        %3595 = vmatmul.mubr.f32.gmra.mrb[0].mxu0 %v3433
        %v3596 = vpop.f32.mrb[0].mxu0
        %v3597 = vadd.f32 0.0, %v3596
        %v3598 = vpop.f32.mrb[0].mxu0
        %3599 = vmatprep.mubr.f32.mxu0 0.0
        %3600 = vmatmul.mubr.f32.gmra.mrb[0].mxu0 %v3436
        %v3601 = vpop.f32.mrb[0].mxu0
        %v3602 = vadd.f32 0.0, %v3601
        %v3603 = vpop.f32.mrb[0].mxu0
        %3604 = vmatprep.mubr.f32.mxu0 0.0
        %3605 = vmatmul.mubr.f32.gmra.mrb[0].mxu0 %v3439
        %v3606 = vpop.f32.mrb[0].mxu0
        %v3607 = vadd.f32 0.0, %v3606
        %v3608 = vpop.f32.mrb[0].mxu0
        %3609 = vmatprep.mubr.f32.mxu0 0.0
        %3610 = vmatmul.mubr.f32.gmra.mrb[0].mxu0 %v3442
        %v3611 = vpop.f32.mrb[0].mxu0
        %v3612 = vadd.f32 0.0, %v3611
        %v3613 = vpop.f32.mrb[0].mxu0
        %3614 = vmatprep.mubr.f32.mxu0 0.0
        %3615 = vmatmul.mubr.f32.gmra.mrb[0].mxu0 %v3445
        %v3616 = vpop.f32.mrb[0].mxu0
        %v3617 = vadd.f32 0.0, %v3616
        %v3618 = vpop.f32.mrb[0].mxu0
        %3619 = vmatprep.mubr.f32.mxu0 0.0
        %3620 = vmatmul.mubr.f32.gmra.mrb[0].mxu0 %v3448
        %v3621 = vpop.f32.mrb[0].mxu0
        %v3622 = vadd.f32 0.0, %v3621
        %v3623 = vpop.f32.mrb[0].mxu0
        %3624 = vmatprep.mubr.f32.mxu0 0.0
        %3625 = vmatmul.mubr.f32.gmra.mrb[0].mxu0 %v3451
        %v3626 = vpop.f32.mrb[0].mxu0
        %v3627 = vadd.f32 0.0, %v3626
        %v3628 = vpop.f32.mrb[0].mxu0
        %3629 = vmatprep.mubr.f32.mxu0 0.0
        %3630 = vmatmul.mubr.f32.gmra.mrb[0].mxu0 %v3454
        %v3631 = vpop.f32.mrb[0].mxu0
        %v3632 = vadd.f32 0.0, %v3631
        %v3633 = vpop.f32.mrb[0].mxu0
        %3634 = vmatprep.mubr.f32.mxu0 0.0
        %3635 = vmatmul.mubr.f32.gmra.mrb[0].mxu0 %v3457
        %v3636 = vpop.f32.mrb[0].mxu0
        %v3637 = vadd.f32 0.0, %v3636
        %v3638 = vpop.f32.mrb[0].mxu0
        %3639 = vmatprep.mubr.f32.mxu0 0.0
        %3640 = vmatmul.mubr.f32.gmra.mrb[0].mxu0 %v3460
        %v3641 = vpop.f32.mrb[0].mxu0
        %v3642 = vadd.f32 0.0, %v3641
        %v3643 = vpop.f32.mrb[0].mxu0
        %3644 = vmatprep.mubr.f32.mxu0 0.0
        %3645 = vmatmul.mubr.f32.gmra.mrb[0].mxu0 %v3463
        %v3646 = vpop.f32.mrb[0].mxu0
        %v3647 = vadd.f32 0.0, %v3646
        %v3648 = vpop.f32.mrb[0].mxu0
        %3649 = vmatprep.mubr.f32.mxu0 0.0
        %3650 = vmatmul.mubr.f32.gmra.mrb[0].mxu0 %v3466
        %v3651 = vpop.f32.mrb[0].mxu0
        %v3652 = vadd.f32 0.0, %v3651
        %v3653 = vpop.f32.mrb[0].mxu0
        %3654 = vmatprep.mubr.f32.mxu0 0.0
        %3655 = vmatmul.mubr.f32.gmra.mrb[0].mxu0 %v3469
        %v3656 = vpop.f32.mrb[0].mxu0
        %v3657 = vadd.f32 0.0, %v3656
        %v3658 = vpop.f32.mrb[0].mxu0
        %3659 = vmatprep.mubr.f32.mxu0 0.0
        %3660 = vmatmul.mubr.f32.gmra.mrb[0].mxu0 %v3472
        %v3661 = vpop.f32.mrb[0].mxu0
        %v3662 = vadd.f32 0.0, %v3661
        %v3663 = vpop.f32.mrb[0].mxu0
        %3664 = vmatprep.mubr.f32.mxu0 0.0
        %3665 = vmatmul.mubr.f32.gmra.mrb[0].mxu0 %v3475
        %v3666 = vpop.f32.mrb[0].mxu0
        %v3667 = vadd.f32 0.0, %v3666
        %v3668 = vpop.f32.mrb[0].mxu0
        %3669 = vmatprep.mubr.f32.mxu0 0.0
        %3670 = vmatmul.mubr.f32.gmra.mrb[0].mxu0 %v3478
        %v3671 = vpop.f32.mrb[0].mxu0
        %v3672 = vadd.f32 0.0, %v3671
        %v3673 = vpop.f32.mrb[0].mxu0
        %3674 = vmatprep.mubr.f32.mxu0 0.0
        %3675 = vmatmul.mubr.f32.gmra.mrb[0].mxu0 %v3481
        %v3676 = vpop.f32.mrb[0].mxu0
        %v3677 = vadd.f32 0.0, %v3676
        %v3678 = vpop.f32.mrb[0].mxu0
        %3679 = vmatprep.mubr.f32.mxu0 0.0
        %3680 = vmatmul.mubr.f32.gmra.mrb[0].mxu0 %v3484
        %v3681 = vpop.f32.mrb[0].mxu0
        %v3682 = vadd.f32 0.0, %v3681
        %v3683 = vpop.f32.mrb[0].mxu0
        %3684 = vmatprep.mubr.f32.mxu0 0.0
        %3685 = vmatmul.mubr.f32.gmra.mrb[0].mxu0 %v3487
        %v3686 = vpop.f32.mrb[0].mxu0
        %v3687 = vadd.f32 0.0, %v3686
        %v3688 = vpop.f32.mrb[0].mxu0
        %3689 = vmatprep.mubr.f32.mxu0 0.0
        %3690 = vmatmul.mubr.f32.gmra.mrb[0].mxu0 %v3490
        %v3691 = vpop.f32.mrb[0].mxu0
        %v3692 = vadd.f32 0.0, %v3691
        %v3693 = vpop.f32.mrb[0].mxu0
        %3694 = vmatprep.mubr.f32.mxu0 0.0
        %3695 = vmatmul.mubr.f32.gmra.mrb[0].mxu0 %v3493
        %v3696 = vpop.f32.mrb[0].mxu0
        %v3697 = vadd.f32 0.0, %v3696
        %v3698 = vpop.f32.mrb[0].mxu0
        %3699 = vmatprep.mubr.f32.mxu0 0.0
        %3700 = vmatmul.mubr.f32.gmra.mrb[0].mxu0 %v3496
        %v3701 = vpop.f32.mrb[0].mxu0
        %v3702 = vadd.f32 0.0, %v3701
        %v3703 = vpop.f32.mrb[0].mxu0
        %3704 = vmatprep.mubr.f32.mxu0 0.0
        %3705 = vmatmul.mubr.f32.gmra.mrb[0].mxu0 %v3499
        %v3706 = vpop.f32.mrb[0].mxu0
        %v3707 = vadd.f32 0.0, %v3706
        %v3708 = vpop.f32.mrb[0].mxu0
        %3709 = vmatprep.mubr.f32.mxu0 0.0
        %3710 = vmatmul.mubr.f32.gmra.mrb[0].mxu0 %v3502
        %v3711 = vpop.f32.mrb[0].mxu0
        %v3712 = vadd.f32 0.0, %v3711
        %v3713 = vpop.f32.mrb[0].mxu0
        %3714 = vmatprep.mubr.f32.mxu0 0.0
        %3715 = vmatmul.mubr.f32.gmra.mrb[0].mxu0 %v3505
        %v3716 = vpop.f32.mrb[0].mxu0
        %v3717 = vadd.f32 0.0, %v3716
        %v3718 = vpop.f32.mrb[0].mxu0
        %3719 = vmatprep.mubr.f32.mxu0 0.0
        %3720 = vmatmul.mubr.f32.gmra.mrb[0].mxu0 %v3508
        %v3721 = vpop.f32.mrb[0].mxu0
        %v3722 = vadd.f32 0.0, %v3721
        %v3723 = vpop.f32.mrb[0].mxu0
        %3724 = vmatprep.mubr.f32.mxu0 0.0
        %3725 = vmatmul.mubr.f32.gmra.mrb[0].mxu0 %v3511
        %v3726 = vpop.f32.mrb[0].mxu0
        %v3727 = vadd.f32 0.0, %v3726
        %v3728 = vpop.f32.mrb[0].mxu0
        %3729 = vmatprep.mubr.f32.mxu0 0.0
        %3730 = vmatmul.mubr.f32.gmra.mrb[0].mxu0 %v3514
        %v3731 = vpop.f32.mrb[0].mxu0
        %v3732 = vadd.f32 0.0, %v3731
        %v3733 = vpop.f32.mrb[0].mxu0
        %3734 = vmatprep.mubr.f32.mxu0 0.0
        %3735 = vmatmul.mubr.f32.gmra.mrb[0].mxu0 %v3517
        %v3736 = vpop.f32.mrb[0].mxu0
        %v3737 = vadd.f32 0.0, %v3736
        %v3738 = vpop.f32.mrb[0].mxu0
        %3739 = vmatprep.mubr.f32.mxu0 0.0
        %3740 = vmatmul.mubr.f32.gmra.mrb[0].mxu0 %v3520
        %v3741 = vpop.f32.mrb[0].mxu0
        %v3742 = vadd.f32 0.0, %v3741
        %v3743 = vpop.f32.mrb[0].mxu0
        %3744 = vmatprep.mubr.f32.mxu0 0.0
        %3745 = vmatmul.mubr.f32.gmra.mrb[0].mxu0 %v3523
        %v3746 = vpop.f32.mrb[0].mxu0
        %v3747 = vadd.f32 0.0, %v3746
        %v3748 = vpop.f32.mrb[0].mxu0
        %3749 = vdwg.mxu0
        %v3750 = vadd.f32 %v3365, %v3592
        %v3751 = vadd.f32 %v3366, %v3597
        %v3752 = vadd.f32 %v3367, %v3602
        %v3753 = vadd.f32 %v3368, %v3607
        %v3754 = vadd.f32 %v3369, %v3612
        %v3755 = vadd.f32 %v3370, %v3617
        %v3756 = vadd.f32 %v3371, %v3622
        %v3757 = vadd.f32 %v3372, %v3627
        %v3758 = vadd.f32 %v3373, %v3632
        %v3759 = vadd.f32 %v3374, %v3637
        %v3760 = vadd.f32 %v3375, %v3642
        %v3761 = vadd.f32 %v3376, %v3647
        %v3762 = vadd.f32 %v3377, %v3652
        %v3763 = vadd.f32 %v3378, %v3657
        %v3764 = vadd.f32 %v3379, %v3662
        %v3765 = vadd.f32 %v3380, %v3667
        %v3766 = vadd.f32 %v3381, %v3672
        %v3767 = vadd.f32 %v3382, %v3677
        %v3768 = vadd.f32 %v3383, %v3682
        %v3769 = vadd.f32 %v3384, %v3687
        %v3770 = vadd.f32 %v3385, %v3692
        %v3771 = vadd.f32 %v3386, %v3697
        %v3772 = vadd.f32 %v3387, %v3702
        %v3773 = vadd.f32 %v3388, %v3707
        %v3774 = vadd.f32 %v3389, %v3712
        %v3775 = vadd.f32 %v3390, %v3717
        %v3776 = vadd.f32 %v3391, %v3722
        %v3777 = vadd.f32 %v3392, %v3727
        %v3778 = vadd.f32 %v3393, %v3732
        %v3779 = vadd.f32 %v3394, %v3737
        %v3780 = vadd.f32 %v3395, %v3742
        %v3781 = vadd.f32 %v3396, %v3747
        %v3782 = vld [vmem:[%s3011 + $0x2] sm:$0xff]
        %v3783 = vld [vmem:[%s3011 + $0xa] sm:$0xff]
        %v3784 = vld [vmem:[%s3011 + $0x1a] sm:$0xff]
        %v3785 = vld [vmem:[%s3011 + $0x22] sm:$0xff]
        %v3786 = vld [vmem:[%s3011 + $0x32] sm:$0xff]
        %v3787 = vld [vmem:[%s3011 + $0x3a] sm:$0xff]
        %v3788 = vld [vmem:[%s3011 + $0x4a] sm:$0xff]
        %v3789 = vld [vmem:[%s3011 + $0x52] sm:$0xff]
        %v3790 = vld [vmem:[%s3011 + $0x62] sm:$0xff]
        %v3791 = vld [vmem:[%s3011 + $0x6a] sm:$0xff]
        %v3792 = vld [vmem:[%s3011 + $0x7a] sm:$0xff]
        %v3793 = vld [vmem:[%s3011 + $0x82] sm:$0xff]
        %v3794 = vld [vmem:[%s3011 + $0x92] sm:$0xff]
        %v3795 = vld [vmem:[%s3011 + $0x9a] sm:$0xff]
        %v3796 = vld [vmem:[%s3011 + $0xaa] sm:$0xff]
        %v3797 = vld [vmem:[%s3011 + $0xb2] sm:$0xff]
        %v3798 = vld [vmem:[%s3011 + $0xc2] sm:$0xff]
        %v3799 = vld [vmem:[%s3011 + $0xca] sm:$0xff]
        %v3800 = vld [vmem:[%s3011 + $0xda] sm:$0xff]
        %v3801 = vld [vmem:[%s3011 + $0xe2] sm:$0xff]
        %v3802 = vld [vmem:[%s3011 + $0xf2] sm:$0xff]
        %v3803 = vld [vmem:[%s3011 + $0xfa] sm:$0xff]
        %v3804 = vld [vmem:[%s3011 + $0x10a] sm:$0xff]
        %v3805 = vld [vmem:[%s3011 + $0x112] sm:$0xff]
        %v3806 = vld [vmem:[%s3011 + $0x122] sm:$0xff]
        %v3807 = vld [vmem:[%s3011 + $0x12a] sm:$0xff]
        %v3808 = vld [vmem:[%s3011 + $0x13a] sm:$0xff]
        %v3809 = vld [vmem:[%s3011 + $0x142] sm:$0xff]
        %v3810 = vld [vmem:[%s3011 + $0x152] sm:$0xff]
        %v3811 = vld [vmem:[%s3011 + $0x15a] sm:$0xff]
        %v3812 = vld [vmem:[%s3011 + $0x16a] sm:$0xff]
        %v3813 = vld [vmem:[%s3011 + $0x172] sm:$0xff]
        %v3815 = vsel %vm676, %v3782, 0
        %v3818 = vsel %vm676, %v3783, 0
        %v3821 = vsel %vm676, %v3784, 0
        %v3824 = vsel %vm676, %v3785, 0
        %v3827 = vsel %vm676, %v3786, 0
        %v3830 = vsel %vm676, %v3787, 0
        %v3833 = vsel %vm676, %v3788, 0
        %v3836 = vsel %vm676, %v3789, 0
        %v3839 = vsel %vm676, %v3790, 0
        %v3842 = vsel %vm676, %v3791, 0
        %v3845 = vsel %vm676, %v3792, 0
        %v3848 = vsel %vm676, %v3793, 0
        %v3851 = vsel %vm676, %v3794, 0
        %v3854 = vsel %vm676, %v3795, 0
        %v3857 = vsel %vm676, %v3796, 0
        %v3860 = vsel %vm676, %v3797, 0
        %v3863 = vsel %vm676, %v3798, 0
        %v3866 = vsel %vm676, %v3799, 0
        %v3869 = vsel %vm676, %v3800, 0
        %v3872 = vsel %vm676, %v3801, 0
        %v3875 = vsel %vm676, %v3802, 0
        %v3878 = vsel %vm676, %v3803, 0
        %v3881 = vsel %vm676, %v3804, 0
        %v3884 = vsel %vm676, %v3805, 0
        %v3887 = vsel %vm676, %v3806, 0
        %v3890 = vsel %vm676, %v3807, 0
        %v3893 = vsel %vm676, %v3808, 0
        %v3896 = vsel %vm676, %v3809, 0
        %v3899 = vsel %vm676, %v3810, 0
        %v3902 = vsel %vm676, %v3811, 0
        %v3905 = vsel %vm676, %v3812, 0
        %v3908 = vsel %vm676, %v3813, 0
        %3910 = vmatprep.subr.mxu0 0.0
        %3911 = vmatpush1.msra.mxu0 %v3010
        %3912 = vmatprep.subr.mxu0 0.0
        %3913 = vmatpush1.msra.mxu0 0.0
        %3914 = vmatprep.subr.mxu0 0.0
        %3915 = vmatpush1.msra.mxu0 0.0
        %3916 = vmatprep.subr.mxu0 0.0
        %3917 = vmatpush1.msra.mxu0 0.0
        %3918 = vmatprep.subr.mxu0 0.0
        %3919 = vmatpush1.msra.mxu0 0.0
        %3920 = vmatprep.subr.mxu0 0.0
        %3921 = vmatpush1.msra.mxu0 0.0
        %3922 = vmatprep.subr.mxu0 0.0
        %3923 = vmatpush1.msra.mxu0 0.0
        %3924 = vmatprep.subr.mxu0 0.0
        %3925 = vmatpush1.msra.mxu0 0.0
        %3926 = vmatprep.subr.mxu0 0.0
        %3927 = vmatpush1.msra.mxu0 0.0
        %3928 = vmatprep.subr.mxu0 0.0
        %3929 = vmatpush1.msra.mxu0 0.0
        %3930 = vmatprep.subr.mxu0 0.0
        %3931 = vmatpush1.msra.mxu0 0.0
        %3932 = vmatprep.subr.mxu0 0.0
        %3933 = vmatpush1.msra.mxu0 0.0
        %3934 = vmatprep.subr.mxu0 0.0
        %3935 = vmatpush1.msra.mxu0 0.0
        %3936 = vmatprep.subr.mxu0 0.0
        %3937 = vmatpush1.msra.mxu0 0.0
        %3938 = vmatprep.subr.mxu0 0.0
        %3939 = vmatpush1.msra.mxu0 0.0
        %3940 = vmatprep.subr.mxu0 0.0
        %3941 = vmatpush1.msra.mxu0 0.0
        %3942 = vmatprep.subr.mxu0 0.0
        %3943 = vmatpush1.msra.mxu0 0.0
        %3944 = vmatprep.subr.mxu0 0.0
        %3945 = vmatpush1.msra.mxu0 0.0
        %3946 = vmatprep.subr.mxu0 0.0
        %3947 = vmatpush1.msra.mxu0 0.0
        %3948 = vmatprep.subr.mxu0 0.0
        %3949 = vmatpush1.msra.mxu0 0.0
        %3950 = vmatprep.subr.mxu0 0.0
        %3951 = vmatpush1.msra.mxu0 0.0
        %3952 = vmatprep.subr.mxu0 0.0
        %3953 = vmatpush1.msra.mxu0 0.0
        %3954 = vmatprep.subr.mxu0 0.0
        %3955 = vmatpush1.msra.mxu0 0.0
        %3956 = vmatprep.subr.mxu0 0.0
        %3957 = vmatpush1.msra.mxu0 0.0
        %3958 = vmatprep.subr.mxu0 0.0
        %3959 = vmatpush1.msra.mxu0 0.0
        %3960 = vmatprep.subr.mxu0 0.0
        %3961 = vmatpush1.msra.mxu0 0.0
        %3962 = vmatprep.subr.mxu0 0.0
        %3963 = vmatpush1.msra.mxu0 0.0
        %3964 = vmatprep.subr.mxu0 0.0
        %3965 = vmatpush1.msra.mxu0 0.0
        %3966 = vmatprep.subr.mxu0 0.0
        %3967 = vmatpush1.msra.mxu0 0.0
        %3968 = vmatprep.subr.mxu0 0.0
        %3969 = vmatpush1.msra.mxu0 0.0
        %3970 = vmatprep.subr.mxu0 0.0
        %3971 = vmatpush1.msra.mxu0 0.0
        %3972 = vmatprep.subr.mxu0 0.0
        %3973 = vmatpush1.msra.mxu0 0.0
        %3974 = vmatprep.mubr.f32.mxu0 0.0
        %3975 = vmatmul.mubr.f32.gmra.mrb[0].mxu0 %v3815
        %v3976 = vpop.f32.mrb[0].mxu0
        %v3977 = vadd.f32 0.0, %v3976
        %v3978 = vpop.f32.mrb[0].mxu0
        %3979 = vmatprep.mubr.f32.mxu0 0.0
        %3980 = vmatmul.mubr.f32.gmra.mrb[0].mxu0 %v3818
        %v3981 = vpop.f32.mrb[0].mxu0
        %v3982 = vadd.f32 0.0, %v3981
        %v3983 = vpop.f32.mrb[0].mxu0
        %3984 = vmatprep.mubr.f32.mxu0 0.0
        %3985 = vmatmul.mubr.f32.gmra.mrb[0].mxu0 %v3821
        %v3986 = vpop.f32.mrb[0].mxu0
        %v3987 = vadd.f32 0.0, %v3986
        %v3988 = vpop.f32.mrb[0].mxu0
        %3989 = vmatprep.mubr.f32.mxu0 0.0
        %3990 = vmatmul.mubr.f32.gmra.mrb[0].mxu0 %v3824
        %v3991 = vpop.f32.mrb[0].mxu0
        %v3992 = vadd.f32 0.0, %v3991
        %v3993 = vpop.f32.mrb[0].mxu0
        %3994 = vmatprep.mubr.f32.mxu0 0.0
        %3995 = vmatmul.mubr.f32.gmra.mrb[0].mxu0 %v3827
        %v3996 = vpop.f32.mrb[0].mxu0
        %v3997 = vadd.f32 0.0, %v3996
        %v3998 = vpop.f32.mrb[0].mxu0
        %3999 = vmatprep.mubr.f32.mxu0 0.0
        %4000 = vmatmul.mubr.f32.gmra.mrb[0].mxu0 %v3830
        %v4001 = vpop.f32.mrb[0].mxu0
        %v4002 = vadd.f32 0.0, %v4001
        %v4003 = vpop.f32.mrb[0].mxu0
        %4004 = vmatprep.mubr.f32.mxu0 0.0
        %4005 = vmatmul.mubr.f32.gmra.mrb[0].mxu0 %v3833
        %v4006 = vpop.f32.mrb[0].mxu0
        %v4007 = vadd.f32 0.0, %v4006
        %v4008 = vpop.f32.mrb[0].mxu0
        %4009 = vmatprep.mubr.f32.mxu0 0.0
        %4010 = vmatmul.mubr.f32.gmra.mrb[0].mxu0 %v3836
        %v4011 = vpop.f32.mrb[0].mxu0
        %v4012 = vadd.f32 0.0, %v4011
        %v4013 = vpop.f32.mrb[0].mxu0
        %4014 = vmatprep.mubr.f32.mxu0 0.0
        %4015 = vmatmul.mubr.f32.gmra.mrb[0].mxu0 %v3839
        %v4016 = vpop.f32.mrb[0].mxu0
        %v4017 = vadd.f32 0.0, %v4016
        %v4018 = vpop.f32.mrb[0].mxu0
        %4019 = vmatprep.mubr.f32.mxu0 0.0
        %4020 = vmatmul.mubr.f32.gmra.mrb[0].mxu0 %v3842
        %v4021 = vpop.f32.mrb[0].mxu0
        %v4022 = vadd.f32 0.0, %v4021
        %v4023 = vpop.f32.mrb[0].mxu0
        %4024 = vmatprep.mubr.f32.mxu0 0.0
        %4025 = vmatmul.mubr.f32.gmra.mrb[0].mxu0 %v3845
        %v4026 = vpop.f32.mrb[0].mxu0
        %v4027 = vadd.f32 0.0, %v4026
        %v4028 = vpop.f32.mrb[0].mxu0
        %4029 = vmatprep.mubr.f32.mxu0 0.0
        %4030 = vmatmul.mubr.f32.gmra.mrb[0].mxu0 %v3848
        %v4031 = vpop.f32.mrb[0].mxu0
        %v4032 = vadd.f32 0.0, %v4031
        %v4033 = vpop.f32.mrb[0].mxu0
        %4034 = vmatprep.mubr.f32.mxu0 0.0
        %4035 = vmatmul.mubr.f32.gmra.mrb[0].mxu0 %v3851
        %v4036 = vpop.f32.mrb[0].mxu0
        %v4037 = vadd.f32 0.0, %v4036
        %v4038 = vpop.f32.mrb[0].mxu0
        %4039 = vmatprep.mubr.f32.mxu0 0.0
        %4040 = vmatmul.mubr.f32.gmra.mrb[0].mxu0 %v3854
        %v4041 = vpop.f32.mrb[0].mxu0
        %v4042 = vadd.f32 0.0, %v4041
        %v4043 = vpop.f32.mrb[0].mxu0
        %4044 = vmatprep.mubr.f32.mxu0 0.0
        %4045 = vmatmul.mubr.f32.gmra.mrb[0].mxu0 %v3857
        %v4046 = vpop.f32.mrb[0].mxu0
        %v4047 = vadd.f32 0.0, %v4046
        %v4048 = vpop.f32.mrb[0].mxu0
        %4049 = vmatprep.mubr.f32.mxu0 0.0
        %4050 = vmatmul.mubr.f32.gmra.mrb[0].mxu0 %v3860
        %v4051 = vpop.f32.mrb[0].mxu0
        %v4052 = vadd.f32 0.0, %v4051
        %v4053 = vpop.f32.mrb[0].mxu0
        %4054 = vmatprep.mubr.f32.mxu0 0.0
        %4055 = vmatmul.mubr.f32.gmra.mrb[0].mxu0 %v3863
        %v4056 = vpop.f32.mrb[0].mxu0
        %v4057 = vadd.f32 0.0, %v4056
        %v4058 = vpop.f32.mrb[0].mxu0
        %4059 = vmatprep.mubr.f32.mxu0 0.0
        %4060 = vmatmul.mubr.f32.gmra.mrb[0].mxu0 %v3866
        %v4061 = vpop.f32.mrb[0].mxu0
        %v4062 = vadd.f32 0.0, %v4061
        %v4063 = vpop.f32.mrb[0].mxu0
        %4064 = vmatprep.mubr.f32.mxu0 0.0
        %4065 = vmatmul.mubr.f32.gmra.mrb[0].mxu0 %v3869
        %v4066 = vpop.f32.mrb[0].mxu0
        %v4067 = vadd.f32 0.0, %v4066
        %v4068 = vpop.f32.mrb[0].mxu0
        %4069 = vmatprep.mubr.f32.mxu0 0.0
        %4070 = vmatmul.mubr.f32.gmra.mrb[0].mxu0 %v3872
        %v4071 = vpop.f32.mrb[0].mxu0
        %v4072 = vadd.f32 0.0, %v4071
        %v4073 = vpop.f32.mrb[0].mxu0
        %4074 = vmatprep.mubr.f32.mxu0 0.0
        %4075 = vmatmul.mubr.f32.gmra.mrb[0].mxu0 %v3875
        %v4076 = vpop.f32.mrb[0].mxu0
        %v4077 = vadd.f32 0.0, %v4076
        %v4078 = vpop.f32.mrb[0].mxu0
        %4079 = vmatprep.mubr.f32.mxu0 0.0
        %4080 = vmatmul.mubr.f32.gmra.mrb[0].mxu0 %v3878
        %v4081 = vpop.f32.mrb[0].mxu0
        %v4082 = vadd.f32 0.0, %v4081
        %v4083 = vpop.f32.mrb[0].mxu0
        %4084 = vmatprep.mubr.f32.mxu0 0.0
        %4085 = vmatmul.mubr.f32.gmra.mrb[0].mxu0 %v3881
        %v4086 = vpop.f32.mrb[0].mxu0
        %v4087 = vadd.f32 0.0, %v4086
        %v4088 = vpop.f32.mrb[0].mxu0
        %4089 = vmatprep.mubr.f32.mxu0 0.0
        %4090 = vmatmul.mubr.f32.gmra.mrb[0].mxu0 %v3884
        %v4091 = vpop.f32.mrb[0].mxu0
        %v4092 = vadd.f32 0.0, %v4091
        %v4093 = vpop.f32.mrb[0].mxu0
        %4094 = vmatprep.mubr.f32.mxu0 0.0
        %4095 = vmatmul.mubr.f32.gmra.mrb[0].mxu0 %v3887
        %v4096 = vpop.f32.mrb[0].mxu0
        %v4097 = vadd.f32 0.0, %v4096
        %v4098 = vpop.f32.mrb[0].mxu0
        %4099 = vmatprep.mubr.f32.mxu0 0.0
        %4100 = vmatmul.mubr.f32.gmra.mrb[0].mxu0 %v3890
        %v4101 = vpop.f32.mrb[0].mxu0
        %v4102 = vadd.f32 0.0, %v4101
        %v4103 = vpop.f32.mrb[0].mxu0
        %4104 = vmatprep.mubr.f32.mxu0 0.0
        %4105 = vmatmul.mubr.f32.gmra.mrb[0].mxu0 %v3893
        %v4106 = vpop.f32.mrb[0].mxu0
        %v4107 = vadd.f32 0.0, %v4106
        %v4108 = vpop.f32.mrb[0].mxu0
        %4109 = vmatprep.mubr.f32.mxu0 0.0
        %4110 = vmatmul.mubr.f32.gmra.mrb[0].mxu0 %v3896
        %v4111 = vpop.f32.mrb[0].mxu0
        %v4112 = vadd.f32 0.0, %v4111
        %v4113 = vpop.f32.mrb[0].mxu0
        %4114 = vmatprep.mubr.f32.mxu0 0.0
        %4115 = vmatmul.mubr.f32.gmra.mrb[0].mxu0 %v3899
        %v4116 = vpop.f32.mrb[0].mxu0
        %v4117 = vadd.f32 0.0, %v4116
        %v4118 = vpop.f32.mrb[0].mxu0
        %4119 = vmatprep.mubr.f32.mxu0 0.0
        %4120 = vmatmul.mubr.f32.gmra.mrb[0].mxu0 %v3902
        %v4121 = vpop.f32.mrb[0].mxu0
        %v4122 = vadd.f32 0.0, %v4121
        %v4123 = vpop.f32.mrb[0].mxu0
        %4124 = vmatprep.mubr.f32.mxu0 0.0
        %4125 = vmatmul.mubr.f32.gmra.mrb[0].mxu0 %v3905
        %v4126 = vpop.f32.mrb[0].mxu0
        %v4127 = vadd.f32 0.0, %v4126
        %v4128 = vpop.f32.mrb[0].mxu0
        %4129 = vmatprep.mubr.f32.mxu0 0.0
        %4130 = vmatmul.mubr.f32.gmra.mrb[0].mxu0 %v3908
        %v4131 = vpop.f32.mrb[0].mxu0
        %v4132 = vadd.f32 0.0, %v4131
        %v4133 = vpop.f32.mrb[0].mxu0
        %4134 = vdwg.mxu0
        %v4135 = vadd.f32 %v3750, %v3977
        %v4136 = vadd.f32 %v3751, %v3982
        %v4137 = vadd.f32 %v3752, %v3987
        %v4138 = vadd.f32 %v3753, %v3992
        %v4139 = vadd.f32 %v3754, %v3997
        %v4140 = vadd.f32 %v3755, %v4002
        %v4141 = vadd.f32 %v3756, %v4007
        %v4142 = vadd.f32 %v3757, %v4012
        %v4143 = vadd.f32 %v3758, %v4017
        %v4144 = vadd.f32 %v3759, %v4022
        %v4145 = vadd.f32 %v3760, %v4027
        %v4146 = vadd.f32 %v3761, %v4032
        %v4147 = vadd.f32 %v3762, %v4037
        %v4148 = vadd.f32 %v3763, %v4042
        %v4149 = vadd.f32 %v3764, %v4047
        %v4150 = vadd.f32 %v3765, %v4052
        %v4151 = vadd.f32 %v3766, %v4057
        %v4152 = vadd.f32 %v3767, %v4062
        %v4153 = vadd.f32 %v3768, %v4067
        %v4154 = vadd.f32 %v3769, %v4072
        %v4155 = vadd.f32 %v3770, %v4077
        %v4156 = vadd.f32 %v3771, %v4082
        %v4157 = vadd.f32 %v3772, %v4087
        %v4158 = vadd.f32 %v3773, %v4092
        %v4159 = vadd.f32 %v3774, %v4097
        %v4160 = vadd.f32 %v3775, %v4102
        %v4161 = vadd.f32 %v3776, %v4107
        %v4162 = vadd.f32 %v3777, %v4112
        %v4163 = vadd.f32 %v3778, %v4117
        %v4164 = vadd.f32 %v3779, %v4122
        %v4165 = vadd.f32 %v3780, %v4127
        %v4166 = vadd.f32 %v3781, %v4132
        %v4167 = vld [vmem:[%s4] sm:$0x1]
        %v4169 = vlaneseq
        %v4170 = vshrl.u32 %v4169, 7
        %v4171 = vsub.s32 0, %v4170
        %v4172 = vrot.slane %v4167, %v4171
        %v4174 = vadd.f32 %v4135, %v4172
        %v4175 = vadd.f32 %v4136, %v4172
        %v4176 = vadd.f32 %v4137, %v4172
        %v4177 = vadd.f32 %v4138, %v4172
        %v4178 = vadd.f32 %v4139, %v4172
        %v4179 = vadd.f32 %v4140, %v4172
        %v4180 = vadd.f32 %v4141, %v4172
        %v4181 = vadd.f32 %v4142, %v4172
        %v4182 = vadd.f32 %v4143, %v4172
        %v4183 = vadd.f32 %v4144, %v4172
        %v4184 = vadd.f32 %v4145, %v4172
        %v4185 = vadd.f32 %v4146, %v4172
        %v4186 = vadd.f32 %v4147, %v4172
        %v4187 = vadd.f32 %v4148, %v4172
        %v4188 = vadd.f32 %v4149, %v4172
        %v4189 = vadd.f32 %v4150, %v4172
        %v4190 = vadd.f32 %v4151, %v4172
        %v4191 = vadd.f32 %v4152, %v4172
        %v4192 = vadd.f32 %v4153, %v4172
        %v4193 = vadd.f32 %v4154, %v4172
        %v4194 = vadd.f32 %v4155, %v4172
        %v4195 = vadd.f32 %v4156, %v4172
        %v4196 = vadd.f32 %v4157, %v4172
        %v4197 = vadd.f32 %v4158, %v4172
        %v4198 = vadd.f32 %v4159, %v4172
        %v4199 = vadd.f32 %v4160, %v4172
        %v4200 = vadd.f32 %v4161, %v4172
        %v4201 = vadd.f32 %v4162, %v4172
        %v4202 = vadd.f32 %v4163, %v4172
        %v4203 = vadd.f32 %v4164, %v4172
        %v4204 = vadd.f32 %v4165, %v4172
        %v4205 = vadd.f32 %v4166, %v4172
        %v4206 = vmax.f32 %v4174, 0.0
        %v4207 = vmax.f32 %v4175, 0.0
        %v4208 = vmax.f32 %v4176, 0.0
        %v4209 = vmax.f32 %v4177, 0.0
        %v4210 = vmax.f32 %v4178, 0.0
        %v4211 = vmax.f32 %v4179, 0.0
        %v4212 = vmax.f32 %v4180, 0.0
        %v4213 = vmax.f32 %v4181, 0.0
        %v4214 = vmax.f32 %v4182, 0.0
        %v4215 = vmax.f32 %v4183, 0.0
        %v4216 = vmax.f32 %v4184, 0.0
        %v4217 = vmax.f32 %v4185, 0.0
        %v4218 = vmax.f32 %v4186, 0.0
        %v4219 = vmax.f32 %v4187, 0.0
        %v4220 = vmax.f32 %v4188, 0.0
        %v4221 = vmax.f32 %v4189, 0.0
        %v4222 = vmax.f32 %v4190, 0.0
        %v4223 = vmax.f32 %v4191, 0.0
        %v4224 = vmax.f32 %v4192, 0.0
        %v4225 = vmax.f32 %v4193, 0.0
        %v4226 = vmax.f32 %v4194, 0.0
        %v4227 = vmax.f32 %v4195, 0.0
        %v4228 = vmax.f32 %v4196, 0.0
        %v4229 = vmax.f32 %v4197, 0.0
        %v4230 = vmax.f32 %v4198, 0.0
        %v4231 = vmax.f32 %v4199, 0.0
        %v4232 = vmax.f32 %v4200, 0.0
        %v4233 = vmax.f32 %v4201, 0.0
        %v4234 = vmax.f32 %v4202, 0.0
        %v4235 = vmax.f32 %v4203, 0.0
        %v4236 = vmax.f32 %v4204, 0.0
        %v4237 = vmax.f32 %v4205, 0.0
        %v4238 = vld [vmem:[%s5] sm:$0xff]
        %v4239 = vld [vmem:[%s6] sm:$0x1]
        %v4241 = vlaneseq
        %v4242 = vshrl.u32 %v4241, 7
        %v4243 = vsub.s32 0, %v4242
        %v4244 = vrot.slane %v4239, %v4243
        %v4247 = vsel %vm676, %v4206, 0
        %v4250 = vsel %vm676, %v4207, 0
        %v4253 = vsel %vm676, %v4208, 0
        %v4256 = vsel %vm676, %v4209, 0
        %v4259 = vsel %vm676, %v4210, 0
        %v4262 = vsel %vm676, %v4211, 0
        %v4265 = vsel %vm676, %v4212, 0
        %v4268 = vsel %vm676, %v4213, 0
        %v4271 = vsel %vm676, %v4214, 0
        %v4274 = vsel %vm676, %v4215, 0
        %v4277 = vsel %vm676, %v4216, 0
        %v4280 = vsel %vm676, %v4217, 0
        %v4283 = vsel %vm676, %v4218, 0
        %v4286 = vsel %vm676, %v4219, 0
        %v4289 = vsel %vm676, %v4220, 0
        %v4292 = vsel %vm676, %v4221, 0
        %v4295 = vsel %vm676, %v4222, 0
        %v4298 = vsel %vm676, %v4223, 0
        %v4301 = vsel %vm676, %v4224, 0
        %v4304 = vsel %vm676, %v4225, 0
        %v4307 = vsel %vm676, %v4226, 0
        %v4310 = vsel %vm676, %v4227, 0
        %v4313 = vsel %vm676, %v4228, 0
        %v4316 = vsel %vm676, %v4229, 0
        %v4319 = vsel %vm676, %v4230, 0
        %v4322 = vsel %vm676, %v4231, 0
        %v4325 = vsel %vm676, %v4232, 0
        %v4328 = vsel %vm676, %v4233, 0
        %v4331 = vsel %vm676, %v4234, 0
        %v4334 = vsel %vm676, %v4235, 0
        %v4337 = vsel %vm676, %v4236, 0
        %v4340 = vsel %vm676, %v4237, 0
        %4342 = vmatprep.subr.mxu0 0.0
        %4343 = vmatpush1.msra.mxu0 %v4238
        %4344 = vmatprep.subr.mxu0 0.0
        %4345 = vmatpush1.msra.mxu0 0.0
        %4346 = vmatprep.subr.mxu0 0.0
        %4347 = vmatpush1.msra.mxu0 0.0
        %4348 = vmatprep.subr.mxu0 0.0
        %4349 = vmatpush1.msra.mxu0 0.0
        %4350 = vmatprep.subr.mxu0 0.0
        %4351 = vmatpush1.msra.mxu0 0.0
        %4352 = vmatprep.subr.mxu0 0.0
        %4353 = vmatpush1.msra.mxu0 0.0
        %4354 = vmatprep.subr.mxu0 0.0
        %4355 = vmatpush1.msra.mxu0 0.0
        %4356 = vmatprep.subr.mxu0 0.0
        %4357 = vmatpush1.msra.mxu0 0.0
        %4358 = vmatprep.subr.mxu0 0.0
        %4359 = vmatpush1.msra.mxu0 0.0
        %4360 = vmatprep.subr.mxu0 0.0
        %4361 = vmatpush1.msra.mxu0 0.0
        %4362 = vmatprep.subr.mxu0 0.0
        %4363 = vmatpush1.msra.mxu0 0.0
        %4364 = vmatprep.subr.mxu0 0.0
        %4365 = vmatpush1.msra.mxu0 0.0
        %4366 = vmatprep.subr.mxu0 0.0
        %4367 = vmatpush1.msra.mxu0 0.0
        %4368 = vmatprep.subr.mxu0 0.0
        %4369 = vmatpush1.msra.mxu0 0.0
        %4370 = vmatprep.subr.mxu0 0.0
        %4371 = vmatpush1.msra.mxu0 0.0
        %4372 = vmatprep.subr.mxu0 0.0
        %4373 = vmatpush1.msra.mxu0 0.0
        %4374 = vmatprep.subr.mxu0 0.0
        %4375 = vmatpush1.msra.mxu0 0.0
        %4376 = vmatprep.subr.mxu0 0.0
        %4377 = vmatpush1.msra.mxu0 0.0
        %4378 = vmatprep.subr.mxu0 0.0
        %4379 = vmatpush1.msra.mxu0 0.0
        %4380 = vmatprep.subr.mxu0 0.0
        %4381 = vmatpush1.msra.mxu0 0.0
        %4382 = vmatprep.subr.mxu0 0.0
        %4383 = vmatpush1.msra.mxu0 0.0
        %4384 = vmatprep.subr.mxu0 0.0
        %4385 = vmatpush1.msra.mxu0 0.0
        %4386 = vmatprep.subr.mxu0 0.0
        %4387 = vmatpush1.msra.mxu0 0.0
        %4388 = vmatprep.subr.mxu0 0.0
        %4389 = vmatpush1.msra.mxu0 0.0
        %4390 = vmatprep.subr.mxu0 0.0
        %4391 = vmatpush1.msra.mxu0 0.0
        %4392 = vmatprep.subr.mxu0 0.0
        %4393 = vmatpush1.msra.mxu0 0.0
        %4394 = vmatprep.subr.mxu0 0.0
        %4395 = vmatpush1.msra.mxu0 0.0
        %4396 = vmatprep.subr.mxu0 0.0
        %4397 = vmatpush1.msra.mxu0 0.0
        %4398 = vmatprep.subr.mxu0 0.0
        %4399 = vmatpush1.msra.mxu0 0.0
        %4400 = vmatprep.subr.mxu0 0.0
        %4401 = vmatpush1.msra.mxu0 0.0
        %4402 = vmatprep.subr.mxu0 0.0
        %4403 = vmatpush1.msra.mxu0 0.0
        %4404 = vmatprep.subr.mxu0 0.0
        %4405 = vmatpush1.msra.mxu0 0.0
        %4406 = vmatprep.mubr.f32.mxu0 0.0
        %4407 = vmatmul.mubr.f32.gmra.mrb[0].mxu0 %v4247
        %v4408 = vpop.f32.mrb[0].mxu0
        %v4409 = vadd.f32 %v4244, %v4408
        %v4410 = vpop.f32.mrb[0].mxu0
        %4411 = vmatprep.mubr.f32.mxu0 0.0
        %4412 = vmatmul.mubr.f32.gmra.mrb[0].mxu0 %v4250
        %v4413 = vpop.f32.mrb[0].mxu0
        %v4414 = vadd.f32 %v4244, %v4413
        %v4415 = vpop.f32.mrb[0].mxu0
        %4416 = vmatprep.mubr.f32.mxu0 0.0
        %4417 = vmatmul.mubr.f32.gmra.mrb[0].mxu0 %v4253
        %v4418 = vpop.f32.mrb[0].mxu0
        %v4419 = vadd.f32 %v4244, %v4418
        %v4420 = vpop.f32.mrb[0].mxu0
        %4421 = vmatprep.mubr.f32.mxu0 0.0
        %4422 = vmatmul.mubr.f32.gmra.mrb[0].mxu0 %v4256
        %v4423 = vpop.f32.mrb[0].mxu0
        %v4424 = vadd.f32 %v4244, %v4423
        %v4425 = vpop.f32.mrb[0].mxu0
        %4426 = vmatprep.mubr.f32.mxu0 0.0
        %4427 = vmatmul.mubr.f32.gmra.mrb[0].mxu0 %v4259
        %v4428 = vpop.f32.mrb[0].mxu0
        %v4429 = vadd.f32 %v4244, %v4428
        %v4430 = vpop.f32.mrb[0].mxu0
        %4431 = vmatprep.mubr.f32.mxu0 0.0
        %4432 = vmatmul.mubr.f32.gmra.mrb[0].mxu0 %v4262
        %v4433 = vpop.f32.mrb[0].mxu0
        %v4434 = vadd.f32 %v4244, %v4433
        %v4435 = vpop.f32.mrb[0].mxu0
        %4436 = vmatprep.mubr.f32.mxu0 0.0
        %4437 = vmatmul.mubr.f32.gmra.mrb[0].mxu0 %v4265
        %v4438 = vpop.f32.mrb[0].mxu0
        %v4439 = vadd.f32 %v4244, %v4438
        %v4440 = vpop.f32.mrb[0].mxu0
        %4441 = vmatprep.mubr.f32.mxu0 0.0
        %4442 = vmatmul.mubr.f32.gmra.mrb[0].mxu0 %v4268
        %v4443 = vpop.f32.mrb[0].mxu0
        %v4444 = vadd.f32 %v4244, %v4443
        %v4445 = vpop.f32.mrb[0].mxu0
        %4446 = vmatprep.mubr.f32.mxu0 0.0
        %4447 = vmatmul.mubr.f32.gmra.mrb[0].mxu0 %v4271
        %v4448 = vpop.f32.mrb[0].mxu0
        %v4449 = vadd.f32 %v4244, %v4448
        %v4450 = vpop.f32.mrb[0].mxu0
        %4451 = vmatprep.mubr.f32.mxu0 0.0
        %4452 = vmatmul.mubr.f32.gmra.mrb[0].mxu0 %v4274
        %v4453 = vpop.f32.mrb[0].mxu0
        %v4454 = vadd.f32 %v4244, %v4453
        %v4455 = vpop.f32.mrb[0].mxu0
        %4456 = vmatprep.mubr.f32.mxu0 0.0
        %4457 = vmatmul.mubr.f32.gmra.mrb[0].mxu0 %v4277
        %v4458 = vpop.f32.mrb[0].mxu0
        %v4459 = vadd.f32 %v4244, %v4458
        %v4460 = vpop.f32.mrb[0].mxu0
        %4461 = vmatprep.mubr.f32.mxu0 0.0
        %4462 = vmatmul.mubr.f32.gmra.mrb[0].mxu0 %v4280
        %v4463 = vpop.f32.mrb[0].mxu0
        %v4464 = vadd.f32 %v4244, %v4463
        %v4465 = vpop.f32.mrb[0].mxu0
        %4466 = vmatprep.mubr.f32.mxu0 0.0
        %4467 = vmatmul.mubr.f32.gmra.mrb[0].mxu0 %v4283
        %v4468 = vpop.f32.mrb[0].mxu0
        %v4469 = vadd.f32 %v4244, %v4468
        %v4470 = vpop.f32.mrb[0].mxu0
        %4471 = vmatprep.mubr.f32.mxu0 0.0
        %4472 = vmatmul.mubr.f32.gmra.mrb[0].mxu0 %v4286
        %v4473 = vpop.f32.mrb[0].mxu0
        %v4474 = vadd.f32 %v4244, %v4473
        %v4475 = vpop.f32.mrb[0].mxu0
        %4476 = vmatprep.mubr.f32.mxu0 0.0
        %4477 = vmatmul.mubr.f32.gmra.mrb[0].mxu0 %v4289
        %v4478 = vpop.f32.mrb[0].mxu0
        %v4479 = vadd.f32 %v4244, %v4478
        %v4480 = vpop.f32.mrb[0].mxu0
        %4481 = vmatprep.mubr.f32.mxu0 0.0
        %4482 = vmatmul.mubr.f32.gmra.mrb[0].mxu0 %v4292
        %v4483 = vpop.f32.mrb[0].mxu0
        %v4484 = vadd.f32 %v4244, %v4483
        %v4485 = vpop.f32.mrb[0].mxu0
        %4486 = vmatprep.mubr.f32.mxu0 0.0
        %4487 = vmatmul.mubr.f32.gmra.mrb[0].mxu0 %v4295
        %v4488 = vpop.f32.mrb[0].mxu0
        %v4489 = vadd.f32 %v4244, %v4488
        %v4490 = vpop.f32.mrb[0].mxu0
        %4491 = vmatprep.mubr.f32.mxu0 0.0
        %4492 = vmatmul.mubr.f32.gmra.mrb[0].mxu0 %v4298
        %v4493 = vpop.f32.mrb[0].mxu0
        %v4494 = vadd.f32 %v4244, %v4493
        %v4495 = vpop.f32.mrb[0].mxu0
        %4496 = vmatprep.mubr.f32.mxu0 0.0
        %4497 = vmatmul.mubr.f32.gmra.mrb[0].mxu0 %v4301
        %v4498 = vpop.f32.mrb[0].mxu0
        %v4499 = vadd.f32 %v4244, %v4498
        %v4500 = vpop.f32.mrb[0].mxu0
        %4501 = vmatprep.mubr.f32.mxu0 0.0
        %4502 = vmatmul.mubr.f32.gmra.mrb[0].mxu0 %v4304
        %v4503 = vpop.f32.mrb[0].mxu0
        %v4504 = vadd.f32 %v4244, %v4503
        %v4505 = vpop.f32.mrb[0].mxu0
        %4506 = vmatprep.mubr.f32.mxu0 0.0
        %4507 = vmatmul.mubr.f32.gmra.mrb[0].mxu0 %v4307
        %v4508 = vpop.f32.mrb[0].mxu0
        %v4509 = vadd.f32 %v4244, %v4508
        %v4510 = vpop.f32.mrb[0].mxu0
        %4511 = vmatprep.mubr.f32.mxu0 0.0
        %4512 = vmatmul.mubr.f32.gmra.mrb[0].mxu0 %v4310
        %v4513 = vpop.f32.mrb[0].mxu0
        %v4514 = vadd.f32 %v4244, %v4513
        %v4515 = vpop.f32.mrb[0].mxu0
        %4516 = vmatprep.mubr.f32.mxu0 0.0
        %4517 = vmatmul.mubr.f32.gmra.mrb[0].mxu0 %v4313
        %v4518 = vpop.f32.mrb[0].mxu0
        %v4519 = vadd.f32 %v4244, %v4518
        %v4520 = vpop.f32.mrb[0].mxu0
        %4521 = vmatprep.mubr.f32.mxu0 0.0
        %4522 = vmatmul.mubr.f32.gmra.mrb[0].mxu0 %v4316
        %v4523 = vpop.f32.mrb[0].mxu0
        %v4524 = vadd.f32 %v4244, %v4523
        %v4525 = vpop.f32.mrb[0].mxu0
        %4526 = vmatprep.mubr.f32.mxu0 0.0
        %4527 = vmatmul.mubr.f32.gmra.mrb[0].mxu0 %v4319
        %v4528 = vpop.f32.mrb[0].mxu0
        %v4529 = vadd.f32 %v4244, %v4528
        %v4530 = vpop.f32.mrb[0].mxu0
        %4531 = vmatprep.mubr.f32.mxu0 0.0
        %4532 = vmatmul.mubr.f32.gmra.mrb[0].mxu0 %v4322
        %v4533 = vpop.f32.mrb[0].mxu0
        %v4534 = vadd.f32 %v4244, %v4533
        %v4535 = vpop.f32.mrb[0].mxu0
        %4536 = vmatprep.mubr.f32.mxu0 0.0
        %4537 = vmatmul.mubr.f32.gmra.mrb[0].mxu0 %v4325
        %v4538 = vpop.f32.mrb[0].mxu0
        %v4539 = vadd.f32 %v4244, %v4538
        %v4540 = vpop.f32.mrb[0].mxu0
        %4541 = vmatprep.mubr.f32.mxu0 0.0
        %4542 = vmatmul.mubr.f32.gmra.mrb[0].mxu0 %v4328
        %v4543 = vpop.f32.mrb[0].mxu0
        %v4544 = vadd.f32 %v4244, %v4543
        %v4545 = vpop.f32.mrb[0].mxu0
        %4546 = vmatprep.mubr.f32.mxu0 0.0
        %4547 = vmatmul.mubr.f32.gmra.mrb[0].mxu0 %v4331
        %v4548 = vpop.f32.mrb[0].mxu0
        %v4549 = vadd.f32 %v4244, %v4548
        %v4550 = vpop.f32.mrb[0].mxu0
        %4551 = vmatprep.mubr.f32.mxu0 0.0
        %4552 = vmatmul.mubr.f32.gmra.mrb[0].mxu0 %v4334
        %v4553 = vpop.f32.mrb[0].mxu0
        %v4554 = vadd.f32 %v4244, %v4553
        %v4555 = vpop.f32.mrb[0].mxu0
        %4556 = vmatprep.mubr.f32.mxu0 0.0
        %4557 = vmatmul.mubr.f32.gmra.mrb[0].mxu0 %v4337
        %v4558 = vpop.f32.mrb[0].mxu0
        %v4559 = vadd.f32 %v4244, %v4558
        %v4560 = vpop.f32.mrb[0].mxu0
        %4561 = vmatprep.mubr.f32.mxu0 0.0
        %4562 = vmatmul.mubr.f32.gmra.mrb[0].mxu0 %v4340
        %v4563 = vpop.f32.mrb[0].mxu0
        %v4564 = vadd.f32 %v4244, %v4563
        %v4565 = vpop.f32.mrb[0].mxu0
        %4566 = vdwg.mxu0
        %4599 = vrot.lane.b32.xlu0 %v485, 120
        %v4600 = vpop.permute.xlu0 %4599
        %4601 = vrot.lane.b32.xlu0 %v490, 120
        %v4602 = vpop.permute.xlu0 %4601
        %4603 = vrot.lane.b32.xlu0 %v495, 120
        %v4604 = vpop.permute.xlu0 %4603
        %4605 = vrot.lane.b32.xlu0 %v500, 120
        %v4606 = vpop.permute.xlu0 %4605
        %4607 = vrot.lane.b32.xlu0 %v505, 120
        %v4608 = vpop.permute.xlu0 %4607
        %4609 = vrot.lane.b32.xlu0 %v510, 120
        %v4610 = vpop.permute.xlu0 %4609
        %4611 = vrot.lane.b32.xlu0 %v515, 120
        %v4612 = vpop.permute.xlu0 %4611
        %4613 = vrot.lane.b32.xlu0 %v520, 120
        %v4614 = vpop.permute.xlu0 %4613
        %4615 = vrot.lane.b32.xlu0 %v525, 120
        %v4616 = vpop.permute.xlu0 %4615
        %4617 = vrot.lane.b32.xlu0 %v530, 120
        %v4618 = vpop.permute.xlu0 %4617
        %4619 = vrot.lane.b32.xlu0 %v535, 120
        %v4620 = vpop.permute.xlu0 %4619
        %4621 = vrot.lane.b32.xlu0 %v540, 120
        %v4622 = vpop.permute.xlu0 %4621
        %4623 = vrot.lane.b32.xlu0 %v545, 120
        %v4624 = vpop.permute.xlu0 %4623
        %4625 = vrot.lane.b32.xlu0 %v550, 120
        %v4626 = vpop.permute.xlu0 %4625
        %4627 = vrot.lane.b32.xlu0 %v555, 120
        %v4628 = vpop.permute.xlu0 %4627
        %4629 = vrot.lane.b32.xlu0 %v560, 120
        %v4630 = vpop.permute.xlu0 %4629
        %4631 = vrot.lane.b32.xlu0 %v565, 120
        %v4632 = vpop.permute.xlu0 %4631
        %4633 = vrot.lane.b32.xlu0 %v570, 120
        %v4634 = vpop.permute.xlu0 %4633
        %4635 = vrot.lane.b32.xlu0 %v575, 120
        %v4636 = vpop.permute.xlu0 %4635
        %4637 = vrot.lane.b32.xlu0 %v580, 120
        %v4638 = vpop.permute.xlu0 %4637
        %4639 = vrot.lane.b32.xlu0 %v585, 120
        %v4640 = vpop.permute.xlu0 %4639
        %4641 = vrot.lane.b32.xlu0 %v590, 120
        %v4642 = vpop.permute.xlu0 %4641
        %4643 = vrot.lane.b32.xlu0 %v595, 120
        %v4644 = vpop.permute.xlu0 %4643
        %4645 = vrot.lane.b32.xlu0 %v600, 120
        %v4646 = vpop.permute.xlu0 %4645
        %4647 = vrot.lane.b32.xlu0 %v605, 120
        %v4648 = vpop.permute.xlu0 %4647
        %4649 = vrot.lane.b32.xlu0 %v610, 120
        %v4650 = vpop.permute.xlu0 %4649
        %4651 = vrot.lane.b32.xlu0 %v615, 120
        %v4652 = vpop.permute.xlu0 %4651
        %4653 = vrot.lane.b32.xlu0 %v620, 120
        %v4654 = vpop.permute.xlu0 %4653
        %4655 = vrot.lane.b32.xlu0 %v625, 120
        %v4656 = vpop.permute.xlu0 %4655
        %4657 = vrot.lane.b32.xlu0 %v630, 120
        %v4658 = vpop.permute.xlu0 %4657
        %4659 = vrot.lane.b32.xlu0 %v635, 120
        %v4660 = vpop.permute.xlu0 %4659
        %4661 = vrot.lane.b32.xlu0 %v640, 120
        %v4662 = vpop.permute.xlu0 %4661
        %v4695 = vadd.f32 %v4409, %v4600
        %v4696 = vadd.f32 %v4414, %v4602
        %v4697 = vadd.f32 %v4419, %v4604
        %v4698 = vadd.f32 %v4424, %v4606
        %v4699 = vadd.f32 %v4429, %v4608
        %v4700 = vadd.f32 %v4434, %v4610
        %v4701 = vadd.f32 %v4439, %v4612
        %v4702 = vadd.f32 %v4444, %v4614
        %v4703 = vadd.f32 %v4449, %v4616
        %v4704 = vadd.f32 %v4454, %v4618
        %v4705 = vadd.f32 %v4459, %v4620
        %v4706 = vadd.f32 %v4464, %v4622
        %v4707 = vadd.f32 %v4469, %v4624
        %v4708 = vadd.f32 %v4474, %v4626
        %v4709 = vadd.f32 %v4479, %v4628
        %v4710 = vadd.f32 %v4484, %v4630
        %v4711 = vadd.f32 %v4489, %v4632
        %v4712 = vadd.f32 %v4494, %v4634
        %v4713 = vadd.f32 %v4499, %v4636
        %v4714 = vadd.f32 %v4504, %v4638
        %v4715 = vadd.f32 %v4509, %v4640
        %v4716 = vadd.f32 %v4514, %v4642
        %v4717 = vadd.f32 %v4519, %v4644
        %v4718 = vadd.f32 %v4524, %v4646
        %v4719 = vadd.f32 %v4529, %v4648
        %v4720 = vadd.f32 %v4534, %v4650
        %v4721 = vadd.f32 %v4539, %v4652
        %v4722 = vadd.f32 %v4544, %v4654
        %v4723 = vadd.f32 %v4549, %v4656
        %v4724 = vadd.f32 %v4554, %v4658
        %v4725 = vadd.f32 %v4559, %v4660
        %v4726 = vadd.f32 %v4564, %v4662
        %v4727 = vmax.f32 %v4695, 0.0
        %v4728 = vmax.f32 %v4696, 0.0
        %v4729 = vmax.f32 %v4697, 0.0
        %v4730 = vmax.f32 %v4698, 0.0
        %v4731 = vmax.f32 %v4699, 0.0
        %v4732 = vmax.f32 %v4700, 0.0
        %v4733 = vmax.f32 %v4701, 0.0
        %v4734 = vmax.f32 %v4702, 0.0
        %v4735 = vmax.f32 %v4703, 0.0
        %v4736 = vmax.f32 %v4704, 0.0
        %v4737 = vmax.f32 %v4705, 0.0
        %v4738 = vmax.f32 %v4706, 0.0
        %v4739 = vmax.f32 %v4707, 0.0
        %v4740 = vmax.f32 %v4708, 0.0
        %v4741 = vmax.f32 %v4709, 0.0
        %v4742 = vmax.f32 %v4710, 0.0
        %v4743 = vmax.f32 %v4711, 0.0
        %v4744 = vmax.f32 %v4712, 0.0
        %v4745 = vmax.f32 %v4713, 0.0
        %v4746 = vmax.f32 %v4714, 0.0
        %v4747 = vmax.f32 %v4715, 0.0
        %v4748 = vmax.f32 %v4716, 0.0
        %v4749 = vmax.f32 %v4717, 0.0
        %v4750 = vmax.f32 %v4718, 0.0
        %v4751 = vmax.f32 %v4719, 0.0
        %v4752 = vmax.f32 %v4720, 0.0
        %v4753 = vmax.f32 %v4721, 0.0
        %v4754 = vmax.f32 %v4722, 0.0
        %v4755 = vmax.f32 %v4723, 0.0
        %v4756 = vmax.f32 %v4724, 0.0
        %v4757 = vmax.f32 %v4725, 0.0
        %v4758 = vmax.f32 %v4726, 0.0
        %vm4759 = vcmask 261120
        %4760 = vst.msk [vmem:[%s271] sm:$0xff] %vm4759, %v4727
        %4761 = vst.msk [vmem:[%s271 + $0x8] sm:$0xff] %vm4759, %v4728
        %4762 = vst.msk [vmem:[%s271 + $0x10] sm:$0xff] %vm4759, %v4729
        %4763 = vst.msk [vmem:[%s271 + $0x18] sm:$0xff] %vm4759, %v4730
        %4764 = vst.msk [vmem:[%s271 + $0x20] sm:$0xff] %vm4759, %v4731
        %4765 = vst.msk [vmem:[%s271 + $0x28] sm:$0xff] %vm4759, %v4732
        %4766 = vst.msk [vmem:[%s271 + $0x30] sm:$0xff] %vm4759, %v4733
        %4767 = vst.msk [vmem:[%s271 + $0x38] sm:$0xff] %vm4759, %v4734
        %4768 = vst.msk [vmem:[%s271 + $0x40] sm:$0xff] %vm4759, %v4735
        %4769 = vst.msk [vmem:[%s271 + $0x48] sm:$0xff] %vm4759, %v4736
        %4770 = vst.msk [vmem:[%s271 + $0x50] sm:$0xff] %vm4759, %v4737
        %4771 = vst.msk [vmem:[%s271 + $0x58] sm:$0xff] %vm4759, %v4738
        %4772 = vst.msk [vmem:[%s271 + $0x60] sm:$0xff] %vm4759, %v4739
        %4773 = vst.msk [vmem:[%s271 + $0x68] sm:$0xff] %vm4759, %v4740
        %4774 = vst.msk [vmem:[%s271 + $0x70] sm:$0xff] %vm4759, %v4741
        %4775 = vst.msk [vmem:[%s271 + $0x78] sm:$0xff] %vm4759, %v4742
        %4776 = vst.msk [vmem:[%s271 + $0x80] sm:$0xff] %vm4759, %v4743
        %4777 = vst.msk [vmem:[%s271 + $0x88] sm:$0xff] %vm4759, %v4744
        %4778 = vst.msk [vmem:[%s271 + $0x90] sm:$0xff] %vm4759, %v4745
        %4779 = vst.msk [vmem:[%s271 + $0x98] sm:$0xff] %vm4759, %v4746
        %4780 = vst.msk [vmem:[%s271 + $0xa0] sm:$0xff] %vm4759, %v4747
        %4781 = vst.msk [vmem:[%s271 + $0xa8] sm:$0xff] %vm4759, %v4748
        %4782 = vst.msk [vmem:[%s271 + $0xb0] sm:$0xff] %vm4759, %v4749
        %4783 = vst.msk [vmem:[%s271 + $0xb8] sm:$0xff] %vm4759, %v4750
        %4784 = vst.msk [vmem:[%s271 + $0xc0] sm:$0xff] %vm4759, %v4751
        %4785 = vst.msk [vmem:[%s271 + $0xc8] sm:$0xff] %vm4759, %v4752
        %4786 = vst.msk [vmem:[%s271 + $0xd0] sm:$0xff] %vm4759, %v4753
        %4787 = vst.msk [vmem:[%s271 + $0xd8] sm:$0xff] %vm4759, %v4754
        %4788 = vst.msk [vmem:[%s271 + $0xe0] sm:$0xff] %vm4759, %v4755
        %4789 = vst.msk [vmem:[%s271 + $0xe8] sm:$0xff] %vm4759, %v4756
        %4790 = vst.msk [vmem:[%s271 + $0xf0] sm:$0xff] %vm4759, %v4757
        %4791 = vst.msk [vmem:[%s271 + $0xf8] sm:$0xff] %vm4759, %v4758
        %s4792 = sand.u32 %s181, 1
        %s4793 = scalar_lea.sflag [#allocation4], %s4792
        %s4794 = sand.u32 %s181, 1
        %s4795 = smul.addr %s4794, 256
        %s4796 = scalar_lea.vmem [#allocation3], %s4795
        // Predicated region
        $region49: #{tpu_custom_call.1} parent=47 // pred_check
          %p4797 = pneg %p191
        $region50: #{tpu_custom_call.1} parent=47 // pred_check_branch
          %4799 = sbr.rel (%p4797) target = $region52
        $region51: #{tpu_custom_call.1} parent=47 // pred_region
          %s4801 = ssub.s32 4096, 4096
          %4802 = vsyncadd %s4793, %s4801
          %s4803 = smul.addr %s21, 32
          %s4804 = smul.addr %s4803, 128
          %s4805 = scalar_lea.hbm %s7, %s4804
          %s4806 = sshll.u32 %s4796, 4
          %s4807 = int_to_ptr.vmem [resolvable:$true] %s4806
          %4812 = dma.vmem_to_hbm [thread:$0]  %s4807, 4096, %s4805, %s4793, 128, 128, 8
        $region52: #{tpu_custom_call.1} parent=47 // pred_fallthru
          _
      $region48: #{tpu_custom_call.1} parent=5 // pred_fallthru
        _
      %p4813 = scmp.le.s32.totalorder 2, %s16
      // Predicated region
      $region53: #{tpu_custom_call.1} parent=5 // pred_check
        %p4814 = pneg %p4813
      $region54: #{tpu_custom_call.1} parent=5 // pred_check_branch
        %4816 = sbr.rel (%p4814) target = $region56
      $region55: #{tpu_custom_call.1} parent=5 // pred_region
        %s4817 = ssub.s32 %s16, 2
        // Predicated region
        $region57: #{tpu_custom_call.1} parent=55 // pred_check
          %p4818 = pneg %p197
        $region58: #{tpu_custom_call.1} parent=55 // pred_check_branch
          %4820 = sbr.rel (%p4818) target = $region60
        $region59: #{tpu_custom_call.1} parent=55 // pred_region
          %s4821 = sand.u32 %s182, 1
          %s4822 = scalar_lea.sflag [#allocation4], %s4821
          %s4823 = sand.u32 %s182, 1
          %s4824 = smul.addr %s4823, 256
          %s4825 = scalar_lea.vmem [#allocation3], %s4824
          %4826 = dma.done %s4822, 4096
        $region60: #{tpu_custom_call.1} parent=55 // pred_fallthru
          _
      $region56: #{tpu_custom_call.1} parent=5 // pred_fallthru
        _
    $region6: #{tpu_custom_call.1} parent=1 // loop_footer
      %s20 = sadd.s32 1, %s16
    $region7: #{tpu_custom_call.1} parent=1 // loop_footer_branch
      %15 = sbr.rel target = $region3
    $region8: #{tpu_custom_call.1} parent=1 // loop_exit
      _
    %4827 = vsyncpa [#allocation4], 1
    %s4828 = scalar_lea.sflag [#allocation4], 1
    %4829 = vsyncpa %s4828, 1

</llo_original>
